<compile_context>
chip_gen: v7x
topology: tpu7x:2x2x1
jax: 0.10.0
libtpu: 0.0.40
codegen_flags: <defaults>
</compile_context>

<pallas_src>
import jax
import jax.numpy as jnp
import numpy as np
from jax import lax
from jax.experimental import pallas as pl
from jax.experimental.pallas import tpu as pltpu

LANES = 128   # everything is padded to a lane-dense 128-wide layout
BB = 8        # images per grid step; keeps every sublane slice 8-aligned


# ---------------------------------------------------------------------------
# The fused whole-network kernel (one grid step == BB images)
# ---------------------------------------------------------------------------
def _network_kernel(x_ref, w1_ref, b1_ref, w2_ref, b2_ref,
                    a1_ref, fb1_ref, w_fc2_ref, fb2_ref,
                    w_out_ref, b_out_ref, o_ref):
    f32 = jnp.float32

    # ---- conv1 (5x5, 3->6) + bias + ReLU fused with 2x2 max-pool -----------
    # x_ref[0]: (2*14*BB, 128); sublane = parity*14*BB + row_pos*BB + img,
    # lane = w*3 + c (84 valid).  For kernel row di, the "lower"/"upper" conv
    # rows of each 2x2 pool window each need one CONTIGUOUS 12-row-position
    # slice of one parity plane -- no strided ref access.
    acc_l = jnp.zeros((12 * BB, 2 * LANES), f32)
    acc_u = jnp.zeros((12 * BB, 2 * LANES), f32)
    for di in range(5):
        w = w1_ref[di]                                   # (128, 256) even|odd cols
        off_l = (di % 2) * 14 * BB + (di // 2) * BB
        off_u = ((di + 1) % 2) * 14 * BB + ((di + 1) // 2) * BB
        acc_l = acc_l + jnp.dot(x_ref[0, pl.ds(off_l, 12 * BB), :], w,
                                preferred_element_type=f32)
        acc_u = acc_u + jnp.dot(x_ref[0, pl.ds(off_u, 12 * BB), :], w,
                                preferred_element_type=f32)
    # 2x2 pool = max over {lower,upper} conv rows x {even,odd} conv columns
    # (columns live in the two 128-lane halves); relu(max(.)+b) == pool(relu).
    m1 = jnp.maximum(jnp.maximum(acc_l[:, :LANES], acc_l[:, LANES:]),
                     jnp.maximum(acc_u[:, :LANES], acc_u[:, LANES:]))
    p1 = jnp.maximum(m1 + b1_ref[...], 0.0)              # (12*BB,128), lane=w*6+c

    # Deinterleave pooled rows by whole 8-sublane blocks (value-level, no
    # strided ref access) so conv2's row slices are contiguous as well.
    p1_e = jnp.concatenate([p1[(2 * k) * BB:(2 * k + 1) * BB] for k in range(6)], 0)
    p1_o = jnp.concatenate([p1[(2 * k + 1) * BB:(2 * k + 2) * BB] for k in range(6)], 0)

    # ---- conv2 (5x5, 6->12) + bias + ReLU fused with 2x2 max-pool ----------
    acc2_l = jnp.zeros((4 * BB, 2 * LANES), f32)
    acc2_u = jnp.zeros((4 * BB, 2 * LANES), f32)
    for di in range(5):
        w = w2_ref[di]                                   # (128, 256)
        src_l = p1_e if di % 2 == 0 else p1_o
        src_u = p1_o if di % 2 == 0 else p1_e
        sl = (di // 2) * BB
        su = ((di + 1) // 2) * BB
        acc2_l = acc2_l + jnp.dot(src_l[sl:sl + 4 * BB], w,
                                  preferred_element_type=f32)
        acc2_u = acc2_u + jnp.dot(src_u[su:su + 4 * BB], w,
                                  preferred_element_type=f32)
    m2 = jnp.maximum(jnp.maximum(acc2_l[:, :LANES], acc2_l[:, LANES:]),
                     jnp.maximum(acc2_u[:, :LANES], acc2_u[:, LANES:]))
    p2 = jnp.maximum(m2 + b2_ref[...], 0.0)              # (4*BB,128), lane=w*12+c

    # ---- fc1 + ReLU (PyTorch NCHW flatten folded into a1's permutation) ----
    h1 = jnp.zeros((BB, LANES), f32)
    for h in range(4):
        h1 = h1 + jnp.dot(p2[h * BB:(h + 1) * BB], a1_ref[h],
                          preferred_element_type=f32)
    h1 = jnp.maximum(h1 + fb1_ref[...], 0.0)             # (BB,128), 120 valid

    # ---- fc2 + ReLU ----
    h2 = jnp.dot(h1, w_fc2_ref[...], preferred_element_type=f32) + fb2_ref[...]
    h2 = jnp.maximum(h2, 0.0)                            # (BB,128), 60 valid

    # ---- out (zero-padded to 128 lanes; first class_num columns valid) ----
    logits = (jnp.dot(h2, w_out_ref[...], preferred_element_type=f32)
              + b_out_ref[...])
    o_ref[...] = logits.reshape(1, BB, LANES).astype(o_ref.dtype)


# ---------------------------------------------------------------------------
# One-time (untraced) weight preprocessing
# ---------------------------------------------------------------------------
def _lower_conv_weight(w_oihw, in_width, parity):
    """Lower a (Cout, Cin, K, K) conv weight to K banded 128x128 matrices.

    rows: j_in * Cin + ci  (input column layout [w*Cin + c]),
    cols: j2 * Cout + co   where the output column is 2*j2 + parity.
    """
    cout, cin, kh, kw = w_oihw.shape
    out_width = in_width - kw + 1
    mats = np.zeros((kh, LANES, LANES), np.float32)
    for di in range(kh):
        for p_idx, j_out in enumerate(range(parity, out_width, 2)):
            for dj in range(kw):
                j_in = j_out + dj
                mats[di,
                     j_in * cin:(j_in + 1) * cin,
                     p_idx * cout:(p_idx + 1) * cout] = w_oihw[:, :, di, dj].T
    return mats


def _pack_conv_weight(w_oihw, in_width):
    """Even- and odd-output-column banded weights packed along N -> (K,128,256)."""
    even = _lower_conv_weight(w_oihw, in_width, 0)
    odd = _lower_conv_weight(w_oihw, in_width, 1)
    return np.concatenate([even, odd], axis=-1)


def prepare_params(params, class_num):
    """Banded+packed conv weights, tiled biases, flatten-permuted fc1,
    transposed fc2/out -- all zero-padded so every kernel matmul is lane-dense."""
    w1 = np.asarray(params["conv1_w"]); b1 = np.asarray(params["conv1_b"])
    w2 = np.asarray(params["conv2_w"]); b2 = np.asarray(params["conv2_b"])
    fc1w = np.asarray(params["fc1_w"]); fc1b = np.asarray(params["fc1_b"])
    fc2w = np.asarray(params["fc2_w"]); fc2b = np.asarray(params["fc2_b"])
    outw = np.asarray(params["out_w"]); outb = np.asarray(params["out_b"])

    b1t = np.zeros((1, LANES), np.float32); b1t[0, :12 * 6] = np.tile(b1, 12)
    b2t = np.zeros((1, LANES), np.float32); b2t[0, :4 * 12] = np.tile(b2, 4)

    # fc1 columns reordered to the kernel's pooled-conv2 layout [h, w*12 + c]
    # (PyTorch flattens NCHW -> index c*16 + h*4 + w); one matrix per pooled row h.
    a1 = np.zeros((4, LANES, LANES), np.float32)
    for h in range(4):
        for ww in range(4):
            for c in range(12):
                a1[h, ww * 12 + c, :120] = fc1w[:, c * 16 + h * 4 + ww]

    fb1 = np.zeros((1, LANES), np.float32); fb1[0, :120] = fc1b
    fc2wp = np.zeros((LANES, LANES), np.float32); fc2wp[:120, :60] = fc2w.T
    fb2 = np.zeros((1, LANES), np.float32); fb2[0, :60] = fc2b
    outwp = np.zeros((LANES, LANES), np.float32)
    outbp = np.zeros((1, LANES), np.float32)
    if class_num > 0:
        outwp[:60, :class_num] = outw.T
        outbp[0, :class_num] = outb

    prep = {
        "w1": _pack_conv_weight(w1, 28), "b1": b1t,
        "w2": _pack_conv_weight(w2, 12), "b2": b2t,
        "a1": a1, "fb1": fb1, "fc2w": fc2wp, "fb2": fb2,
        "outw": outwp, "outb": outbp,
    }
    return {k: jnp.asarray(v) for k, v in prep.items()}


# ---------------------------------------------------------------------------
# Forward pass: one fused pallas_call, 8 images per grid step
# ---------------------------------------------------------------------------
def _full_spec(shape):
    zeros = (0,) * len(shape)
    return pl.BlockSpec(shape, lambda i, _z=zeros: _z)


@jax.jit
def _forward_padded(prep, x_nchw):
    n = x_nchw.shape[0]
    nb = (n + BB - 1) // BB
    n_pad = nb * BB
    # Layout plumbing only (~10 KB/image): NCHW -> rows x (w*3+c) lanes, lane
    # pad to 128, deinterleave even/odd rows, and interleave BB images into the
    # sublane dimension (sublane = parity*14*BB + row_pos*BB + img).
    x = jnp.transpose(x_nchw, (0, 2, 3, 1)).reshape(n, 28, 28 * 3)
    x = jnp.pad(x, ((0, n_pad - n), (0, 0), (0, LANES - 28 * 3)))
    x = x.reshape(n_pad, 14, 2, LANES).transpose(0, 2, 1, 3)       # (n,2,14,L)
    x = (x.reshape(nb, BB, 2, 14, LANES)
          .transpose(0, 2, 3, 1, 4)
          .reshape(nb, 2 * 14 * BB, LANES))

    flops_per_block = 2 * (10 * 12 * BB * 128 * 256 + 10 * 4 * BB * 128 * 256
                           + 4 * BB * 128 * 128 + 2 * BB * 128 * 128)
    weight_bytes = 4 * (2 * 5 * 128 * 256 + 4 * 128 * 128 + 2 * 128 * 128
                        + 6 * 128)
    bytes_accessed = nb * 4 * (2 * 14 * BB + BB) * LANES + weight_bytes

    out = pl.pallas_call(
        _network_kernel,
        out_shape=jax.ShapeDtypeStruct((nb, BB, LANES), jnp.float32),
        grid=(nb,),
        in_specs=[
            pl.BlockSpec((1, 2 * 14 * BB, LANES), lambda i: (i, 0, 0)),  # input block
            _full_spec((5, LANES, 2 * LANES)),   # conv1 banded weights (even|odd cols)
            _full_spec((1, LANES)),              # conv1 bias (tiled per output col)
            _full_spec((5, LANES, 2 * LANES)),   # conv2 banded weights (even|odd cols)
            _full_spec((1, LANES)),              # conv2 bias
            _full_spec((4, LANES, LANES)),       # fc1 (flatten-permuted, per pooled row)
            _full_spec((1, LANES)),              # fc1 bias
            _full_spec((LANES, LANES)),          # fc2
            _full_spec((1, LANES)),              # fc2 bias
            _full_spec((LANES, LANES)),          # out (padded to 128 classes)
            _full_spec((1, LANES)),              # out bias
        ],
        out_specs=pl.BlockSpec((1, BB, LANES), lambda i: (i, 0, 0)),
        compiler_params=pltpu.CompilerParams(
            dimension_semantics=("parallel",)),                      # 2 TCs split blocks
        cost_estimate=pl.CostEstimate(
            flops=int(nb * flops_per_block), transcendentals=0,
            bytes_accessed=int(bytes_accessed)),
    )(x,
      prep["w1"], prep["b1"], prep["w2"], prep["b2"],
      prep["a1"], prep["fb1"], prep["fc2w"], prep["fb2"],
      prep["outw"], prep["outb"])
    return out.reshape(n_pad, LANES)[:n]


def network_forward(prep, x_nchw, class_num):
    return _forward_padded(prep, x_nchw)[:, :class_num]


# ---------------------------------------------------------------------------
# Parameter init (PyTorch-convention shapes) and a plain-JAX reference
# ---------------------------------------------------------------------------
def init_params(key, class_num):
    ks = jax.random.split(key, 10)
    s = 0.1
    return {
        "conv1_w": s * jax.random.normal(ks[0], (6, 3, 5, 5), jnp.float32),
        "conv1_b": s * jax.random.normal(ks[1], (6,), jnp.float32),
        "conv2_w": s * jax.random.normal(ks[2], (12, 6, 5, 5), jnp.float32),
        "conv2_b": s * jax.random.normal(ks[3], (12,), jnp.float32),
        "fc1_w": s * jax.random.normal(ks[4], (120, 12 * 4 * 4), jnp.float32),
        "fc1_b": s * jax.random.normal(ks[5], (120,), jnp.float32),
        "fc2_w": s * jax.random.normal(ks[6], (60, 120), jnp.float32),
        "fc2_b": s * jax.random.normal(ks[7], (60,), jnp.float32),
        "out_w": s * jax.random.normal(ks[8], (class_num, 60), jnp.float32),
        "out_b": s * jax.random.normal(ks[9], (class_num,), jnp.float32),
    }


def reference_forward(params, x):
    hp = lax.Precision.HIGHEST
    y = lax.conv_general_dilated(x, params["conv1_w"], (1, 1), "VALID",
                                 dimension_numbers=("NCHW", "OIHW", "NCHW"),
                                 precision=hp)
    y = jax.nn.relu(y + params["conv1_b"].reshape(1, -1, 1, 1))
    y = lax.reduce_window(y, -jnp.inf, lax.max, (1, 1, 2, 2), (1, 1, 2, 2), "VALID")
    y = lax.conv_general_dilated(y, params["conv2_w"], (1, 1), "VALID",
                                 dimension_numbers=("NCHW", "OIHW", "NCHW"),
                                 precision=hp)
    y = jax.nn.relu(y + params["conv2_b"].reshape(1, -1, 1, 1))
    y = lax.reduce_window(y, -jnp.inf, lax.max, (1, 1, 2, 2), (1, 1, 2, 2), "VALID")
    y = y.reshape(y.shape[0], -1)
    y = jax.nn.relu(jnp.dot(y, params["fc1_w"].T, precision=hp) + params["fc1_b"])
    y = jax.nn.relu(jnp.dot(y, params["fc2_w"].T, precision=hp) + params["fc2_b"])
    return jnp.dot(y, params["out_w"].T, precision=hp) + params["out_b"]


if __name__ == "__main__":
    key = jax.random.PRNGKey(0)
    pkey, xkey = jax.random.split(key)
    # Input implied by the module: 12*4*4 flatten => 3x28x28 NCHW images.
    x = jax.random.normal(xkey, (2, 3, 28, 28), jnp.float32)

    # The reference module has class_num = class_sum = 0  ->  Linear(60, 0).
    CLASS_NUM = 0
    params = init_params(pkey, CLASS_NUM)
    prep = prepare_params(params, CLASS_NUM)
    out = jax.block_until_ready(network_forward(prep, x, CLASS_NUM))
    assert out.shape == (2, CLASS_NUM), out.shape

    # Self-check of the fused kernel against a plain-JAX reference with a
    # non-degenerate head (class_num=10) so the comparison is non-empty
    # (same array shapes -> reuses the already-compiled kernel).
    params10 = init_params(pkey, 10)
    prep10 = prepare_params(params10, 10)
    out10 = jax.block_until_ready(network_forward(prep10, x, 10))
    ref10 = reference_forward(params10, x)
    assert out10.shape == (2, 10), out10.shape
    max_err = float(jnp.max(jnp.abs(out10 - ref10)))
    assert bool(jnp.allclose(out10, ref10, rtol=1e-4, atol=1e-4)), max_err

    print("KERNEL_OK")
</pallas_src>

<mosaic_0001>
module attributes {stable_mosaic.version = 11 : i64} {
  func.func @_network_kernel(%arg0: i32, %arg1: memref<1x224x128xf32, #tpu.memory_space<vmem>>, %arg2: memref<5x128x256xf32, #tpu.memory_space<vmem>>, %arg3: memref<1x128xf32, #tpu.memory_space<vmem>>, %arg4: memref<5x128x256xf32, #tpu.memory_space<vmem>>, %arg5: memref<1x128xf32, #tpu.memory_space<vmem>>, %arg6: memref<4x128x128xf32, #tpu.memory_space<vmem>>, %arg7: memref<1x128xf32, #tpu.memory_space<vmem>>, %arg8: memref<128x128xf32, #tpu.memory_space<vmem>>, %arg9: memref<1x128xf32, #tpu.memory_space<vmem>>, %arg10: memref<128x128xf32, #tpu.memory_space<vmem>>, %arg11: memref<1x128xf32, #tpu.memory_space<vmem>>, %arg12: memref<1x8x128xf32, #tpu.memory_space<vmem>>) attributes {dimension_semantics = [#tpu.dimension_semantics<parallel>], iteration_bounds = array<i64: 1>, scalar_prefetch = 0 : i64, scratch_operands = 0 : i64, tpu.core_type = #tpu.core_type<tc>, window_params = [{transform_indices = @transform_0, window_bounds = array<i64: 1, 224, 128>}, {pipeline_mode = #tpu.pipeline_mode<synchronous>, transform_indices = @transform_1, window_bounds = array<i64: 5, 128, 256>}, {pipeline_mode = #tpu.pipeline_mode<synchronous>, transform_indices = @transform_2, window_bounds = array<i64: 1, 128>}, {pipeline_mode = #tpu.pipeline_mode<synchronous>, transform_indices = @transform_3, window_bounds = array<i64: 5, 128, 256>}, {pipeline_mode = #tpu.pipeline_mode<synchronous>, transform_indices = @transform_4, window_bounds = array<i64: 1, 128>}, {pipeline_mode = #tpu.pipeline_mode<synchronous>, transform_indices = @transform_5, window_bounds = array<i64: 4, 128, 128>}, {pipeline_mode = #tpu.pipeline_mode<synchronous>, transform_indices = @transform_6, window_bounds = array<i64: 1, 128>}, {pipeline_mode = #tpu.pipeline_mode<synchronous>, transform_indices = @transform_7, window_bounds = array<i64: 128, 128>}, {pipeline_mode = #tpu.pipeline_mode<synchronous>, transform_indices = @transform_8, window_bounds = array<i64: 1, 128>}, {pipeline_mode = #tpu.pipeline_mode<synchronous>, transform_indices = @transform_9, window_bounds = array<i64: 128, 128>}, {pipeline_mode = #tpu.pipeline_mode<synchronous>, transform_indices = @transform_10, window_bounds = array<i64: 1, 128>}, {transform_indices = @transform_11, window_bounds = array<i64: 1, 8, 128>}]} {
    %cst = arith.constant 0.000000e+00 : f32
    %0 = vector.broadcast %cst : f32 to vector<96x256xf32>
    %cst_0 = arith.constant 0.000000e+00 : f32
    %1 = vector.broadcast %cst_0 : f32 to vector<96x256xf32>
    %c0 = arith.constant 0 : index
    %c0_1 = arith.constant 0 : index
    %c0_2 = arith.constant 0 : index
    %2 = vector.load %arg2[%c0, %c0_1, %c0_2] : memref<5x128x256xf32, #tpu.memory_space<vmem>>, vector<1x128x256xf32>
    %3 = vector.shape_cast %2 : vector<1x128x256xf32> to vector<128x256xf32>
    %c0_3 = arith.constant 0 : index
    %c0_4 = arith.constant 0 : index
    %c0_5 = arith.constant 0 : index
    %4 = vector.load %arg1[%c0_3, %c0_4, %c0_5] : memref<1x224x128xf32, #tpu.memory_space<vmem>>, vector<1x96x128xf32>
    %5 = vector.shape_cast %4 : vector<1x96x128xf32> to vector<96x128xf32>
    %cst_6 = arith.constant dense<0.000000e+00> : vector<96x256xf32>
    %6 = tpu.matmul %5, %3, %cst_6 {dimension_numbers = #tpu.dot_dimension_numbers<[1], [0], [0], [1], [0, 0, 1, 1], [], []>} : vector<96x128xf32>, vector<128x256xf32>, vector<96x256xf32> -> vector<96x256xf32>
    %7 = arith.addf %0, %6 : vector<96x256xf32>
    %c0_7 = arith.constant 0 : index
    %c112 = arith.constant 112 : index
    %c0_8 = arith.constant 0 : index
    %8 = vector.load %arg1[%c0_7, %c112, %c0_8] : memref<1x224x128xf32, #tpu.memory_space<vmem>>, vector<1x96x128xf32>
    %9 = vector.shape_cast %8 : vector<1x96x128xf32> to vector<96x128xf32>
    %cst_9 = arith.constant dense<0.000000e+00> : vector<96x256xf32>
    %10 = tpu.matmul %9, %3, %cst_9 {dimension_numbers = #tpu.dot_dimension_numbers<[1], [0], [0], [1], [0, 0, 1, 1], [], []>} : vector<96x128xf32>, vector<128x256xf32>, vector<96x256xf32> -> vector<96x256xf32>
    %11 = arith.addf %1, %10 : vector<96x256xf32>
    %c1 = arith.constant 1 : index
    %c0_10 = arith.constant 0 : index
    %c0_11 = arith.constant 0 : index
    %12 = vector.load %arg2[%c1, %c0_10, %c0_11] : memref<5x128x256xf32, #tpu.memory_space<vmem>>, vector<1x128x256xf32>
    %13 = vector.shape_cast %12 : vector<1x128x256xf32> to vector<128x256xf32>
    %c0_12 = arith.constant 0 : index
    %c112_13 = arith.constant 112 : index
    %c0_14 = arith.constant 0 : index
    %14 = vector.load %arg1[%c0_12, %c112_13, %c0_14] : memref<1x224x128xf32, #tpu.memory_space<vmem>>, vector<1x96x128xf32>
    %15 = vector.shape_cast %14 : vector<1x96x128xf32> to vector<96x128xf32>
    %cst_15 = arith.constant dense<0.000000e+00> : vector<96x256xf32>
    %16 = tpu.matmul %15, %13, %cst_15 {dimension_numbers = #tpu.dot_dimension_numbers<[1], [0], [0], [1], [0, 0, 1, 1], [], []>} : vector<96x128xf32>, vector<128x256xf32>, vector<96x256xf32> -> vector<96x256xf32>
    %17 = arith.addf %7, %16 : vector<96x256xf32>
    %c0_16 = arith.constant 0 : index
    %c8 = arith.constant 8 : index
    %c0_17 = arith.constant 0 : index
    %18 = vector.load %arg1[%c0_16, %c8, %c0_17] : memref<1x224x128xf32, #tpu.memory_space<vmem>>, vector<1x96x128xf32>
    %19 = vector.shape_cast %18 : vector<1x96x128xf32> to vector<96x128xf32>
    %cst_18 = arith.constant dense<0.000000e+00> : vector<96x256xf32>
    %20 = tpu.matmul %19, %13, %cst_18 {dimension_numbers = #tpu.dot_dimension_numbers<[1], [0], [0], [1], [0, 0, 1, 1], [], []>} : vector<96x128xf32>, vector<128x256xf32>, vector<96x256xf32> -> vector<96x256xf32>
    %21 = arith.addf %11, %20 : vector<96x256xf32>
    %c2 = arith.constant 2 : index
    %c0_19 = arith.constant 0 : index
    %c0_20 = arith.constant 0 : index
    %22 = vector.load %arg2[%c2, %c0_19, %c0_20] : memref<5x128x256xf32, #tpu.memory_space<vmem>>, vector<1x128x256xf32>
    %23 = vector.shape_cast %22 : vector<1x128x256xf32> to vector<128x256xf32>
    %c0_21 = arith.constant 0 : index
    %c8_22 = arith.constant 8 : index
    %c0_23 = arith.constant 0 : index
    %24 = vector.load %arg1[%c0_21, %c8_22, %c0_23] : memref<1x224x128xf32, #tpu.memory_space<vmem>>, vector<1x96x128xf32>
    %25 = vector.shape_cast %24 : vector<1x96x128xf32> to vector<96x128xf32>
    %cst_24 = arith.constant dense<0.000000e+00> : vector<96x256xf32>
    %26 = tpu.matmul %25, %23, %cst_24 {dimension_numbers = #tpu.dot_dimension_numbers<[1], [0], [0], [1], [0, 0, 1, 1], [], []>} : vector<96x128xf32>, vector<128x256xf32>, vector<96x256xf32> -> vector<96x256xf32>
    %27 = arith.addf %17, %26 : vector<96x256xf32>
    %c0_25 = arith.constant 0 : index
    %c120 = arith.constant 120 : index
    %c0_26 = arith.constant 0 : index
    %28 = vector.load %arg1[%c0_25, %c120, %c0_26] : memref<1x224x128xf32, #tpu.memory_space<vmem>>, vector<1x96x128xf32>
    %29 = vector.shape_cast %28 : vector<1x96x128xf32> to vector<96x128xf32>
    %cst_27 = arith.constant dense<0.000000e+00> : vector<96x256xf32>
    %30 = tpu.matmul %29, %23, %cst_27 {dimension_numbers = #tpu.dot_dimension_numbers<[1], [0], [0], [1], [0, 0, 1, 1], [], []>} : vector<96x128xf32>, vector<128x256xf32>, vector<96x256xf32> -> vector<96x256xf32>
    %31 = arith.addf %21, %30 : vector<96x256xf32>
    %c3 = arith.constant 3 : index
    %c0_28 = arith.constant 0 : index
    %c0_29 = arith.constant 0 : index
    %32 = vector.load %arg2[%c3, %c0_28, %c0_29] : memref<5x128x256xf32, #tpu.memory_space<vmem>>, vector<1x128x256xf32>
    %33 = vector.shape_cast %32 : vector<1x128x256xf32> to vector<128x256xf32>
    %c0_30 = arith.constant 0 : index
    %c120_31 = arith.constant 120 : index
    %c0_32 = arith.constant 0 : index
    %34 = vector.load %arg1[%c0_30, %c120_31, %c0_32] : memref<1x224x128xf32, #tpu.memory_space<vmem>>, vector<1x96x128xf32>
    %35 = vector.shape_cast %34 : vector<1x96x128xf32> to vector<96x128xf32>
    %cst_33 = arith.constant dense<0.000000e+00> : vector<96x256xf32>
    %36 = tpu.matmul %35, %33, %cst_33 {dimension_numbers = #tpu.dot_dimension_numbers<[1], [0], [0], [1], [0, 0, 1, 1], [], []>} : vector<96x128xf32>, vector<128x256xf32>, vector<96x256xf32> -> vector<96x256xf32>
    %37 = arith.addf %27, %36 : vector<96x256xf32>
    %c0_34 = arith.constant 0 : index
    %c16 = arith.constant 16 : index
    %c0_35 = arith.constant 0 : index
    %38 = vector.load %arg1[%c0_34, %c16, %c0_35] : memref<1x224x128xf32, #tpu.memory_space<vmem>>, vector<1x96x128xf32>
    %39 = vector.shape_cast %38 : vector<1x96x128xf32> to vector<96x128xf32>
    %cst_36 = arith.constant dense<0.000000e+00> : vector<96x256xf32>
    %40 = tpu.matmul %39, %33, %cst_36 {dimension_numbers = #tpu.dot_dimension_numbers<[1], [0], [0], [1], [0, 0, 1, 1], [], []>} : vector<96x128xf32>, vector<128x256xf32>, vector<96x256xf32> -> vector<96x256xf32>
    %41 = arith.addf %31, %40 : vector<96x256xf32>
    %c4 = arith.constant 4 : index
    %c0_37 = arith.constant 0 : index
    %c0_38 = arith.constant 0 : index
    %42 = vector.load %arg2[%c4, %c0_37, %c0_38] : memref<5x128x256xf32, #tpu.memory_space<vmem>>, vector<1x128x256xf32>
    %43 = vector.shape_cast %42 : vector<1x128x256xf32> to vector<128x256xf32>
    %c0_39 = arith.constant 0 : index
    %c16_40 = arith.constant 16 : index
    %c0_41 = arith.constant 0 : index
    %44 = vector.load %arg1[%c0_39, %c16_40, %c0_41] : memref<1x224x128xf32, #tpu.memory_space<vmem>>, vector<1x96x128xf32>
    %45 = vector.shape_cast %44 : vector<1x96x128xf32> to vector<96x128xf32>
    %cst_42 = arith.constant dense<0.000000e+00> : vector<96x256xf32>
    %46 = tpu.matmul %45, %43, %cst_42 {dimension_numbers = #tpu.dot_dimension_numbers<[1], [0], [0], [1], [0, 0, 1, 1], [], []>} : vector<96x128xf32>, vector<128x256xf32>, vector<96x256xf32> -> vector<96x256xf32>
    %47 = arith.addf %37, %46 : vector<96x256xf32>
    %c0_43 = arith.constant 0 : index
    %c128 = arith.constant 128 : index
    %c0_44 = arith.constant 0 : index
    %48 = vector.load %arg1[%c0_43, %c128, %c0_44] : memref<1x224x128xf32, #tpu.memory_space<vmem>>, vector<1x96x128xf32>
    %49 = vector.shape_cast %48 : vector<1x96x128xf32> to vector<96x128xf32>
    %cst_45 = arith.constant dense<0.000000e+00> : vector<96x256xf32>
    %50 = tpu.matmul %49, %43, %cst_45 {dimension_numbers = #tpu.dot_dimension_numbers<[1], [0], [0], [1], [0, 0, 1, 1], [], []>} : vector<96x128xf32>, vector<128x256xf32>, vector<96x256xf32> -> vector<96x256xf32>
    %51 = arith.addf %41, %50 : vector<96x256xf32>
    %52 = vector.extract_strided_slice %47 {offsets = [0, 0], sizes = [96, 128], strides = [1, 1]} : vector<96x256xf32> to vector<96x128xf32>
    %53 = vector.extract_strided_slice %47 {offsets = [0, 128], sizes = [96, 128], strides = [1, 1]} : vector<96x256xf32> to vector<96x128xf32>
    %54 = arith.maximumf %52, %53 : vector<96x128xf32>
    %55 = vector.extract_strided_slice %51 {offsets = [0, 0], sizes = [96, 128], strides = [1, 1]} : vector<96x256xf32> to vector<96x128xf32>
    %56 = vector.extract_strided_slice %51 {offsets = [0, 128], sizes = [96, 128], strides = [1, 1]} : vector<96x256xf32> to vector<96x128xf32>
    %57 = arith.maximumf %55, %56 : vector<96x128xf32>
    %58 = arith.maximumf %54, %57 : vector<96x128xf32>
    %c0_46 = arith.constant 0 : index
    %c0_47 = arith.constant 0 : index
    %59 = vector.load %arg3[%c0_46, %c0_47] : memref<1x128xf32, #tpu.memory_space<vmem>>, vector<1x128xf32>
    %60 = vector.broadcast %59 : vector<1x128xf32> to vector<96x128xf32>
    %61 = arith.addf %58, %60 : vector<96x128xf32>
    %cst_48 = arith.constant 0.000000e+00 : f32
    %62 = vector.broadcast %cst_48 : f32 to vector<96x128xf32>
    %63 = arith.maximumf %61, %62 : vector<96x128xf32>
    %64 = vector.extract_strided_slice %63 {offsets = [0, 0], sizes = [8, 128], strides = [1, 1]} : vector<96x128xf32> to vector<8x128xf32>
    %65 = vector.extract_strided_slice %63 {offsets = [16, 0], sizes = [8, 128], strides = [1, 1]} : vector<96x128xf32> to vector<8x128xf32>
    %66 = vector.extract_strided_slice %63 {offsets = [32, 0], sizes = [8, 128], strides = [1, 1]} : vector<96x128xf32> to vector<8x128xf32>
    %67 = vector.extract_strided_slice %63 {offsets = [48, 0], sizes = [8, 128], strides = [1, 1]} : vector<96x128xf32> to vector<8x128xf32>
    %68 = vector.extract_strided_slice %63 {offsets = [64, 0], sizes = [8, 128], strides = [1, 1]} : vector<96x128xf32> to vector<8x128xf32>
    %69 = vector.extract_strided_slice %63 {offsets = [80, 0], sizes = [8, 128], strides = [1, 1]} : vector<96x128xf32> to vector<8x128xf32>
    %70 = tpu.concatenate %64, %65, %66, %67, %68, %69 in 0 : vector<8x128xf32>, vector<8x128xf32>, vector<8x128xf32>, vector<8x128xf32>, vector<8x128xf32>, vector<8x128xf32> -> vector<48x128xf32>
    %71 = vector.extract_strided_slice %63 {offsets = [8, 0], sizes = [8, 128], strides = [1, 1]} : vector<96x128xf32> to vector<8x128xf32>
    %72 = vector.extract_strided_slice %63 {offsets = [24, 0], sizes = [8, 128], strides = [1, 1]} : vector<96x128xf32> to vector<8x128xf32>
    %73 = vector.extract_strided_slice %63 {offsets = [40, 0], sizes = [8, 128], strides = [1, 1]} : vector<96x128xf32> to vector<8x128xf32>
    %74 = vector.extract_strided_slice %63 {offsets = [56, 0], sizes = [8, 128], strides = [1, 1]} : vector<96x128xf32> to vector<8x128xf32>
    %75 = vector.extract_strided_slice %63 {offsets = [72, 0], sizes = [8, 128], strides = [1, 1]} : vector<96x128xf32> to vector<8x128xf32>
    %76 = vector.extract_strided_slice %63 {offsets = [88, 0], sizes = [8, 128], strides = [1, 1]} : vector<96x128xf32> to vector<8x128xf32>
    %77 = tpu.concatenate %71, %72, %73, %74, %75, %76 in 0 : vector<8x128xf32>, vector<8x128xf32>, vector<8x128xf32>, vector<8x128xf32>, vector<8x128xf32>, vector<8x128xf32> -> vector<48x128xf32>
    %cst_49 = arith.constant 0.000000e+00 : f32
    %78 = vector.broadcast %cst_49 : f32 to vector<32x256xf32>
    %cst_50 = arith.constant 0.000000e+00 : f32
    %79 = vector.broadcast %cst_50 : f32 to vector<32x256xf32>
    %c0_51 = arith.constant 0 : index
    %c0_52 = arith.constant 0 : index
    %c0_53 = arith.constant 0 : index
    %80 = vector.load %arg4[%c0_51, %c0_52, %c0_53] : memref<5x128x256xf32, #tpu.memory_space<vmem>>, vector<1x128x256xf32>
    %81 = vector.shape_cast %80 : vector<1x128x256xf32> to vector<128x256xf32>
    %82 = vector.extract_strided_slice %70 {offsets = [0, 0], sizes = [32, 128], strides = [1, 1]} : vector<48x128xf32> to vector<32x128xf32>
    %cst_54 = arith.constant dense<0.000000e+00> : vector<32x256xf32>
    %83 = tpu.matmul %82, %81, %cst_54 {dimension_numbers = #tpu.dot_dimension_numbers<[1], [0], [0], [1], [0, 0, 1, 1], [], []>} : vector<32x128xf32>, vector<128x256xf32>, vector<32x256xf32> -> vector<32x256xf32>
    %84 = arith.addf %78, %83 : vector<32x256xf32>
    %85 = vector.extract_strided_slice %77 {offsets = [0, 0], sizes = [32, 128], strides = [1, 1]} : vector<48x128xf32> to vector<32x128xf32>
    %cst_55 = arith.constant dense<0.000000e+00> : vector<32x256xf32>
    %86 = tpu.matmul %85, %81, %cst_55 {dimension_numbers = #tpu.dot_dimension_numbers<[1], [0], [0], [1], [0, 0, 1, 1], [], []>} : vector<32x128xf32>, vector<128x256xf32>, vector<32x256xf32> -> vector<32x256xf32>
    %87 = arith.addf %79, %86 : vector<32x256xf32>
    %c1_56 = arith.constant 1 : index
    %c0_57 = arith.constant 0 : index
    %c0_58 = arith.constant 0 : index
    %88 = vector.load %arg4[%c1_56, %c0_57, %c0_58] : memref<5x128x256xf32, #tpu.memory_space<vmem>>, vector<1x128x256xf32>
    %89 = vector.shape_cast %88 : vector<1x128x256xf32> to vector<128x256xf32>
    %90 = vector.extract_strided_slice %77 {offsets = [0, 0], sizes = [32, 128], strides = [1, 1]} : vector<48x128xf32> to vector<32x128xf32>
    %cst_59 = arith.constant dense<0.000000e+00> : vector<32x256xf32>
    %91 = tpu.matmul %90, %89, %cst_59 {dimension_numbers = #tpu.dot_dimension_numbers<[1], [0], [0], [1], [0, 0, 1, 1], [], []>} : vector<32x128xf32>, vector<128x256xf32>, vector<32x256xf32> -> vector<32x256xf32>
    %92 = arith.addf %84, %91 : vector<32x256xf32>
    %93 = vector.extract_strided_slice %70 {offsets = [8, 0], sizes = [32, 128], strides = [1, 1]} : vector<48x128xf32> to vector<32x128xf32>
    %cst_60 = arith.constant dense<0.000000e+00> : vector<32x256xf32>
    %94 = tpu.matmul %93, %89, %cst_60 {dimension_numbers = #tpu.dot_dimension_numbers<[1], [0], [0], [1], [0, 0, 1, 1], [], []>} : vector<32x128xf32>, vector<128x256xf32>, vector<32x256xf32> -> vector<32x256xf32>
    %95 = arith.addf %87, %94 : vector<32x256xf32>
    %c2_61 = arith.constant 2 : index
    %c0_62 = arith.constant 0 : index
    %c0_63 = arith.constant 0 : index
    %96 = vector.load %arg4[%c2_61, %c0_62, %c0_63] : memref<5x128x256xf32, #tpu.memory_space<vmem>>, vector<1x128x256xf32>
    %97 = vector.shape_cast %96 : vector<1x128x256xf32> to vector<128x256xf32>
    %98 = vector.extract_strided_slice %70 {offsets = [8, 0], sizes = [32, 128], strides = [1, 1]} : vector<48x128xf32> to vector<32x128xf32>
    %cst_64 = arith.constant dense<0.000000e+00> : vector<32x256xf32>
    %99 = tpu.matmul %98, %97, %cst_64 {dimension_numbers = #tpu.dot_dimension_numbers<[1], [0], [0], [1], [0, 0, 1, 1], [], []>} : vector<32x128xf32>, vector<128x256xf32>, vector<32x256xf32> -> vector<32x256xf32>
    %100 = arith.addf %92, %99 : vector<32x256xf32>
    %101 = vector.extract_strided_slice %77 {offsets = [8, 0], sizes = [32, 128], strides = [1, 1]} : vector<48x128xf32> to vector<32x128xf32>
    %cst_65 = arith.constant dense<0.000000e+00> : vector<32x256xf32>
    %102 = tpu.matmul %101, %97, %cst_65 {dimension_numbers = #tpu.dot_dimension_numbers<[1], [0], [0], [1], [0, 0, 1, 1], [], []>} : vector<32x128xf32>, vector<128x256xf32>, vector<32x256xf32> -> vector<32x256xf32>
    %103 = arith.addf %95, %102 : vector<32x256xf32>
    %c3_66 = arith.constant 3 : index
    %c0_67 = arith.constant 0 : index
    %c0_68 = arith.constant 0 : index
    %104 = vector.load %arg4[%c3_66, %c0_67, %c0_68] : memref<5x128x256xf32, #tpu.memory_space<vmem>>, vector<1x128x256xf32>
    %105 = vector.shape_cast %104 : vector<1x128x256xf32> to vector<128x256xf32>
    %106 = vector.extract_strided_slice %77 {offsets = [8, 0], sizes = [32, 128], strides = [1, 1]} : vector<48x128xf32> to vector<32x128xf32>
    %cst_69 = arith.constant dense<0.000000e+00> : vector<32x256xf32>
    %107 = tpu.matmul %106, %105, %cst_69 {dimension_numbers = #tpu.dot_dimension_numbers<[1], [0], [0], [1], [0, 0, 1, 1], [], []>} : vector<32x128xf32>, vector<128x256xf32>, vector<32x256xf32> -> vector<32x256xf32>
    %108 = arith.addf %100, %107 : vector<32x256xf32>
    %109 = vector.extract_strided_slice %70 {offsets = [16, 0], sizes = [32, 128], strides = [1, 1]} : vector<48x128xf32> to vector<32x128xf32>
    %cst_70 = arith.constant dense<0.000000e+00> : vector<32x256xf32>
    %110 = tpu.matmul %109, %105, %cst_70 {dimension_numbers = #tpu.dot_dimension_numbers<[1], [0], [0], [1], [0, 0, 1, 1], [], []>} : vector<32x128xf32>, vector<128x256xf32>, vector<32x256xf32> -> vector<32x256xf32>
    %111 = arith.addf %103, %110 : vector<32x256xf32>
    %c4_71 = arith.constant 4 : index
    %c0_72 = arith.constant 0 : index
    %c0_73 = arith.constant 0 : index
    %112 = vector.load %arg4[%c4_71, %c0_72, %c0_73] : memref<5x128x256xf32, #tpu.memory_space<vmem>>, vector<1x128x256xf32>
    %113 = vector.shape_cast %112 : vector<1x128x256xf32> to vector<128x256xf32>
    %114 = vector.extract_strided_slice %70 {offsets = [16, 0], sizes = [32, 128], strides = [1, 1]} : vector<48x128xf32> to vector<32x128xf32>
    %cst_74 = arith.constant dense<0.000000e+00> : vector<32x256xf32>
    %115 = tpu.matmul %114, %113, %cst_74 {dimension_numbers = #tpu.dot_dimension_numbers<[1], [0], [0], [1], [0, 0, 1, 1], [], []>} : vector<32x128xf32>, vector<128x256xf32>, vector<32x256xf32> -> vector<32x256xf32>
    %116 = arith.addf %108, %115 : vector<32x256xf32>
    %117 = vector.extract_strided_slice %77 {offsets = [16, 0], sizes = [32, 128], strides = [1, 1]} : vector<48x128xf32> to vector<32x128xf32>
    %cst_75 = arith.constant dense<0.000000e+00> : vector<32x256xf32>
    %118 = tpu.matmul %117, %113, %cst_75 {dimension_numbers = #tpu.dot_dimension_numbers<[1], [0], [0], [1], [0, 0, 1, 1], [], []>} : vector<32x128xf32>, vector<128x256xf32>, vector<32x256xf32> -> vector<32x256xf32>
    %119 = arith.addf %111, %118 : vector<32x256xf32>
    %120 = vector.extract_strided_slice %116 {offsets = [0, 0], sizes = [32, 128], strides = [1, 1]} : vector<32x256xf32> to vector<32x128xf32>
    %121 = vector.extract_strided_slice %116 {offsets = [0, 128], sizes = [32, 128], strides = [1, 1]} : vector<32x256xf32> to vector<32x128xf32>
    %122 = arith.maximumf %120, %121 : vector<32x128xf32>
    %123 = vector.extract_strided_slice %119 {offsets = [0, 0], sizes = [32, 128], strides = [1, 1]} : vector<32x256xf32> to vector<32x128xf32>
    %124 = vector.extract_strided_slice %119 {offsets = [0, 128], sizes = [32, 128], strides = [1, 1]} : vector<32x256xf32> to vector<32x128xf32>
    %125 = arith.maximumf %123, %124 : vector<32x128xf32>
    %126 = arith.maximumf %122, %125 : vector<32x128xf32>
    %c0_76 = arith.constant 0 : index
    %c0_77 = arith.constant 0 : index
    %127 = vector.load %arg5[%c0_76, %c0_77] : memref<1x128xf32, #tpu.memory_space<vmem>>, vector<1x128xf32>
    %128 = vector.broadcast %127 : vector<1x128xf32> to vector<32x128xf32>
    %129 = arith.addf %126, %128 : vector<32x128xf32>
    %cst_78 = arith.constant 0.000000e+00 : f32
    %130 = vector.broadcast %cst_78 : f32 to vector<32x128xf32>
    %131 = arith.maximumf %129, %130 : vector<32x128xf32>
    %cst_79 = arith.constant 0.000000e+00 : f32
    %132 = vector.broadcast %cst_79 : f32 to vector<8x128xf32>
    %133 = vector.extract_strided_slice %131 {offsets = [0, 0], sizes = [8, 128], strides = [1, 1]} : vector<32x128xf32> to vector<8x128xf32>
    %c0_80 = arith.constant 0 : index
    %c0_81 = arith.constant 0 : index
    %c0_82 = arith.constant 0 : index
    %134 = vector.load %arg6[%c0_80, %c0_81, %c0_82] : memref<4x128x128xf32, #tpu.memory_space<vmem>>, vector<1x128x128xf32>
    %135 = vector.shape_cast %134 : vector<1x128x128xf32> to vector<128x128xf32>
    %cst_83 = arith.constant dense<0.000000e+00> : vector<8x128xf32>
    %136 = tpu.matmul %133, %135, %cst_83 {dimension_numbers = #tpu.dot_dimension_numbers<[1], [0], [0], [1], [0, 0, 1, 1], [], []>} : vector<8x128xf32>, vector<128x128xf32>, vector<8x128xf32> -> vector<8x128xf32>
    %137 = arith.addf %132, %136 : vector<8x128xf32>
    %138 = vector.extract_strided_slice %131 {offsets = [8, 0], sizes = [8, 128], strides = [1, 1]} : vector<32x128xf32> to vector<8x128xf32>
    %c1_84 = arith.constant 1 : index
    %c0_85 = arith.constant 0 : index
    %c0_86 = arith.constant 0 : index
    %139 = vector.load %arg6[%c1_84, %c0_85, %c0_86] : memref<4x128x128xf32, #tpu.memory_space<vmem>>, vector<1x128x128xf32>
    %140 = vector.shape_cast %139 : vector<1x128x128xf32> to vector<128x128xf32>
    %cst_87 = arith.constant dense<0.000000e+00> : vector<8x128xf32>
    %141 = tpu.matmul %138, %140, %cst_87 {dimension_numbers = #tpu.dot_dimension_numbers<[1], [0], [0], [1], [0, 0, 1, 1], [], []>} : vector<8x128xf32>, vector<128x128xf32>, vector<8x128xf32> -> vector<8x128xf32>
    %142 = arith.addf %137, %141 : vector<8x128xf32>
    %143 = vector.extract_strided_slice %131 {offsets = [16, 0], sizes = [8, 128], strides = [1, 1]} : vector<32x128xf32> to vector<8x128xf32>
    %c2_88 = arith.constant 2 : index
    %c0_89 = arith.constant 0 : index
    %c0_90 = arith.constant 0 : index
    %144 = vector.load %arg6[%c2_88, %c0_89, %c0_90] : memref<4x128x128xf32, #tpu.memory_space<vmem>>, vector<1x128x128xf32>
    %145 = vector.shape_cast %144 : vector<1x128x128xf32> to vector<128x128xf32>
    %cst_91 = arith.constant dense<0.000000e+00> : vector<8x128xf32>
    %146 = tpu.matmul %143, %145, %cst_91 {dimension_numbers = #tpu.dot_dimension_numbers<[1], [0], [0], [1], [0, 0, 1, 1], [], []>} : vector<8x128xf32>, vector<128x128xf32>, vector<8x128xf32> -> vector<8x128xf32>
    %147 = arith.addf %142, %146 : vector<8x128xf32>
    %148 = vector.extract_strided_slice %131 {offsets = [24, 0], sizes = [8, 128], strides = [1, 1]} : vector<32x128xf32> to vector<8x128xf32>
    %c3_92 = arith.constant 3 : index
    %c0_93 = arith.constant 0 : index
    %c0_94 = arith.constant 0 : index
    %149 = vector.load %arg6[%c3_92, %c0_93, %c0_94] : memref<4x128x128xf32, #tpu.memory_space<vmem>>, vector<1x128x128xf32>
    %150 = vector.shape_cast %149 : vector<1x128x128xf32> to vector<128x128xf32>
    %cst_95 = arith.constant dense<0.000000e+00> : vector<8x128xf32>
    %151 = tpu.matmul %148, %150, %cst_95 {dimension_numbers = #tpu.dot_dimension_numbers<[1], [0], [0], [1], [0, 0, 1, 1], [], []>} : vector<8x128xf32>, vector<128x128xf32>, vector<8x128xf32> -> vector<8x128xf32>
    %152 = arith.addf %147, %151 : vector<8x128xf32>
    %c0_96 = arith.constant 0 : index
    %c0_97 = arith.constant 0 : index
    %153 = vector.load %arg7[%c0_96, %c0_97] : memref<1x128xf32, #tpu.memory_space<vmem>>, vector<1x128xf32>
    %154 = vector.broadcast %153 : vector<1x128xf32> to vector<8x128xf32>
    %155 = arith.addf %152, %154 : vector<8x128xf32>
    %cst_98 = arith.constant 0.000000e+00 : f32
    %156 = vector.broadcast %cst_98 : f32 to vector<8x128xf32>
    %157 = arith.maximumf %155, %156 : vector<8x128xf32>
    %c0_99 = arith.constant 0 : index
    %c0_100 = arith.constant 0 : index
    %158 = vector.load %arg8[%c0_99, %c0_100] : memref<128x128xf32, #tpu.memory_space<vmem>>, vector<128x128xf32>
    %cst_101 = arith.constant dense<0.000000e+00> : vector<8x128xf32>
    %159 = tpu.matmul %157, %158, %cst_101 {dimension_numbers = #tpu.dot_dimension_numbers<[1], [0], [0], [1], [0, 0, 1, 1], [], []>} : vector<8x128xf32>, vector<128x128xf32>, vector<8x128xf32> -> vector<8x128xf32>
    %c0_102 = arith.constant 0 : index
    %c0_103 = arith.constant 0 : index
    %160 = vector.load %arg9[%c0_102, %c0_103] : memref<1x128xf32, #tpu.memory_space<vmem>>, vector<1x128xf32>
    %161 = vector.broadcast %160 : vector<1x128xf32> to vector<8x128xf32>
    %162 = arith.addf %159, %161 : vector<8x128xf32>
    %cst_104 = arith.constant 0.000000e+00 : f32
    %163 = vector.broadcast %cst_104 : f32 to vector<8x128xf32>
    %164 = arith.maximumf %162, %163 : vector<8x128xf32>
    %c0_105 = arith.constant 0 : index
    %c0_106 = arith.constant 0 : index
    %165 = vector.load %arg10[%c0_105, %c0_106] : memref<128x128xf32, #tpu.memory_space<vmem>>, vector<128x128xf32>
    %cst_107 = arith.constant dense<0.000000e+00> : vector<8x128xf32>
    %166 = tpu.matmul %164, %165, %cst_107 {dimension_numbers = #tpu.dot_dimension_numbers<[1], [0], [0], [1], [0, 0, 1, 1], [], []>} : vector<8x128xf32>, vector<128x128xf32>, vector<8x128xf32> -> vector<8x128xf32>
    %c0_108 = arith.constant 0 : index
    %c0_109 = arith.constant 0 : index
    %167 = vector.load %arg11[%c0_108, %c0_109] : memref<1x128xf32, #tpu.memory_space<vmem>>, vector<1x128xf32>
    %168 = vector.broadcast %167 : vector<1x128xf32> to vector<8x128xf32>
    %169 = arith.addf %166, %168 : vector<8x128xf32>
    %170 = vector.shape_cast %169 : vector<8x128xf32> to vector<1x8x128xf32>
    %c0_110 = arith.constant 0 : index
    %c0_111 = arith.constant 0 : index
    %c0_112 = arith.constant 0 : index
    %171 = vector.load %arg12[%c0_110, %c0_111, %c0_112] : memref<1x8x128xf32, #tpu.memory_space<vmem>>, vector<1x8x128xf32>
    tpu.vector_store %arg12[%c0_110, %c0_111, %c0_112], %170 {strides = array<i32>} : memref<1x8x128xf32, #tpu.memory_space<vmem>>, vector<1x8x128xf32>,
    return
  }
  func.func @transform_0(%arg0: i32) -> (i32, i32, i32) {
    %c0_i32 = arith.constant 0 : i32
    %c0_i32_0 = arith.constant 0 : i32
    %c0_i32_1 = arith.constant 0 : i32
    return %arg0, %c0_i32, %c0_i32_0 : i32, i32, i32
  }
  func.func @transform_1(%arg0: i32) -> (i32, i32, i32) {
    %c0_i32 = arith.constant 0 : i32
    %c0_i32_0 = arith.constant 0 : i32
    %c0_i32_1 = arith.constant 0 : i32
    %c0_i32_2 = arith.constant 0 : i32
    return %c0_i32, %c0_i32_0, %c0_i32_1 : i32, i32, i32
  }
  func.func @transform_2(%arg0: i32) -> (i32, i32) {
    %c0_i32 = arith.constant 0 : i32
    %c0_i32_0 = arith.constant 0 : i32
    %c0_i32_1 = arith.constant 0 : i32
    return %c0_i32, %c0_i32_0 : i32, i32
  }
  func.func @transform_3(%arg0: i32) -> (i32, i32, i32) {
    %c0_i32 = arith.constant 0 : i32
    %c0_i32_0 = arith.constant 0 : i32
    %c0_i32_1 = arith.constant 0 : i32
    %c0_i32_2 = arith.constant 0 : i32
    return %c0_i32, %c0_i32_0, %c0_i32_1 : i32, i32, i32
  }
  func.func @transform_4(%arg0: i32) -> (i32, i32) {
    %c0_i32 = arith.constant 0 : i32
    %c0_i32_0 = arith.constant 0 : i32
    %c0_i32_1 = arith.constant 0 : i32
    return %c0_i32, %c0_i32_0 : i32, i32
  }
  func.func @transform_5(%arg0: i32) -> (i32, i32, i32) {
    %c0_i32 = arith.constant 0 : i32
    %c0_i32_0 = arith.constant 0 : i32
    %c0_i32_1 = arith.constant 0 : i32
    %c0_i32_2 = arith.constant 0 : i32
    return %c0_i32, %c0_i32_0, %c0_i32_1 : i32, i32, i32
  }
  func.func @transform_6(%arg0: i32) -> (i32, i32) {
    %c0_i32 = arith.constant 0 : i32
    %c0_i32_0 = arith.constant 0 : i32
    %c0_i32_1 = arith.constant 0 : i32
    return %c0_i32, %c0_i32_0 : i32, i32
  }
  func.func @transform_7(%arg0: i32) -> (i32, i32) {
    %c0_i32 = arith.constant 0 : i32
    %c0_i32_0 = arith.constant 0 : i32
    %c0_i32_1 = arith.constant 0 : i32
    return %c0_i32, %c0_i32_0 : i32, i32
  }
  func.func @transform_8(%arg0: i32) -> (i32, i32) {
    %c0_i32 = arith.constant 0 : i32
    %c0_i32_0 = arith.constant 0 : i32
    %c0_i32_1 = arith.constant 0 : i32
    return %c0_i32, %c0_i32_0 : i32, i32
  }
  func.func @transform_9(%arg0: i32) -> (i32, i32) {
    %c0_i32 = arith.constant 0 : i32
    %c0_i32_0 = arith.constant 0 : i32
    %c0_i32_1 = arith.constant 0 : i32
    return %c0_i32, %c0_i32_0 : i32, i32
  }
  func.func @transform_10(%arg0: i32) -> (i32, i32) {
    %c0_i32 = arith.constant 0 : i32
    %c0_i32_0 = arith.constant 0 : i32
    %c0_i32_1 = arith.constant 0 : i32
    return %c0_i32, %c0_i32_0 : i32, i32
  }
  func.func @transform_11(%arg0: i32) -> (i32, i32, i32) {
    %c0_i32 = arith.constant 0 : i32
    %c0_i32_0 = arith.constant 0 : i32
    %c0_i32_1 = arith.constant 0 : i32
    return %arg0, %c0_i32, %c0_i32_0 : i32, i32, i32
  }
}

</mosaic_0001>

<llo_original>
// kernel: _forward_padded.1
$region0: #{_forward_padded.1}
  #allocation0 [shape = 'u32[]', space=smem, size = 0x4, offset = 0x4, fixed_abs, tag = 'smem constant byte address 0x4 - core index']
  #allocation1 [shape = 'u32[144,128]{1,0:T(1,128)}', space=vmem, size = 0x12000, scoped, tag = 'internal scratch']
  %s0 = inlined_call_operand.vmem [shape: f32[1,224,128], index: 0, kind: input, shape index: {}]
  %s1 = inlined_call_operand.vmem [shape: f32[5,128,256], index: 1, kind: input, shape index: {}]
  %s2 = inlined_call_operand.vmem [shape: f32[1,128], index: 2, kind: input, shape index: {}]
  %s3 = inlined_call_operand.hbm [shape: f32[5,128,256], index: 3, kind: input, shape index: {}]
  %s4 = inlined_call_operand.vmem [shape: f32[1,128], index: 4, kind: input, shape index: {}]
  %s5 = inlined_call_operand.hbm [shape: f32[4,128,128], index: 5, kind: input, shape index: {}]
  %s6 = inlined_call_operand.vmem [shape: f32[1,128], index: 6, kind: input, shape index: {}]
  %s7 = inlined_call_operand.hbm [shape: f32[128,128], index: 7, kind: input, shape index: {}]
  %s8 = inlined_call_operand.vmem [shape: f32[1,128], index: 8, kind: input, shape index: {}]
  %s9 = inlined_call_operand.hbm [shape: f32[128,128], index: 9, kind: input, shape index: {}]
  %s10 = inlined_call_operand.vmem [shape: f32[1,128], index: 10, kind: input, shape index: {}]
  %s11 = inlined_call_operand.vmem [shape: f32[1,8,128], index: 11, kind: output, shape index: {}]
  %s12 = sld [smem:[#allocation0]]
  $region70: #{_forward_padded.1} parent=0
    _
  %s14 = ssub.s32 1, %s12
  %s15 = scalar_select 0, %s14, %s12
  $region1: #{_forward_padded.1} parent=0
    #allocation2 [shape = 'u8[655360]{0}', space=vmem, size = 0xa0000, scoped, tag = 'input window, operand 3, single buffered']
    #allocation3 [shape = 's32[1]{0}', space=sflag, size = 0x4, scoped, tag = 'scoped memory for _forward_padded.1']
    #allocation4 [shape = 'u8[262144]{0}', space=vmem, size = 0x40000, scoped, tag = 'input window, operand 5, single buffered']
    #allocation5 [shape = 's32[1]{0}', space=sflag, size = 0x4, scoped, tag = 'scoped memory for _forward_padded.1']
    #allocation6 [shape = 'u8[65536]{0}', space=vmem, size = 0x10000, scoped, tag = 'input window, operand 7, single buffered']
    #allocation7 [shape = 'u8[65536]{0}', space=vmem, size = 0x10000, scoped, tag = 'input window, operand 9, single buffered']
    #allocation8 [shape = 's32[1]{0}', space=sflag, size = 0x4, scoped, tag = 'scoped memory for _forward_padded.1']
    %16 = vsyncpa [#allocation3], 0
    %17 = vsyncpa [#allocation5], 0
    %18 = vsyncpa [#allocation8], 0
    // Predicated region
    $region2: #{_forward_padded.1} parent=1 // pred_check
      _
    $region3: #{_forward_padded.1} parent=1 // pred_check_branch
      %20 = sbr.rel (0) target = $region5
    $region4: #{_forward_padded.1} parent=1 // pred_region
      _
    $region5: #{_forward_padded.1} parent=1 // pred_fallthru
      _
    // Predicated region
    $region6: #{_forward_padded.1} parent=1 // pred_check
      _
    $region7: #{_forward_padded.1} parent=1 // pred_check_branch
      %22 = sbr.rel (0) target = $region9
    $region8: #{_forward_padded.1} parent=1 // pred_region
      _
    $region9: #{_forward_padded.1} parent=1 // pred_fallthru
      _
    // Predicated region
    $region10: #{_forward_padded.1} parent=1 // pred_check
      _
    $region11: #{_forward_padded.1} parent=1 // pred_check_branch
      %24 = sbr.rel (0) target = $region13
    $region12: #{_forward_padded.1} parent=1 // pred_region
      _
    $region13: #{_forward_padded.1} parent=1 // pred_fallthru
      _
    // Predicated region
    $region14: #{_forward_padded.1} parent=1 // pred_check
      _
    $region15: #{_forward_padded.1} parent=1 // pred_check_branch
      %26 = sbr.rel (0) target = $region17
    $region16: #{_forward_padded.1} parent=1 // pred_region
      %s28 = ssub.s32 20480, 20480
      %29 = vsyncadd [#allocation3], %s28
      %s30 = sshll.u32 [#allocation2], 4
      %s31 = int_to_ptr.vmem [resolvable:$true] %s30
      %36 = dma.hbm_to_vmem [thread:$0]  %s3, 20480, %s31, [#allocation3], 256, 256, 16
    $region17: #{_forward_padded.1} parent=1 // pred_fallthru
      _
    // Predicated region
    $region18: #{_forward_padded.1} parent=1 // pred_check
      _
    $region19: #{_forward_padded.1} parent=1 // pred_check_branch
      %38 = sbr.rel (0) target = $region21
    $region20: #{_forward_padded.1} parent=1 // pred_region
      _
    $region21: #{_forward_padded.1} parent=1 // pred_fallthru
      _
    // Predicated region
    $region22: #{_forward_padded.1} parent=1 // pred_check
      _
    $region23: #{_forward_padded.1} parent=1 // pred_check_branch
      %40 = sbr.rel (0) target = $region25
    $region24: #{_forward_padded.1} parent=1 // pred_region
      %s42 = ssub.s32 8192, 8192
      %43 = vsyncadd [#allocation5], %s42
      %s44 = sshll.u32 [#allocation4], 4
      %s45 = int_to_ptr.vmem [resolvable:$true] %s44
      %50 = dma.hbm_to_vmem [thread:$0]  %s5, 8192, %s45, [#allocation5], 128, 128, 8
    $region25: #{_forward_padded.1} parent=1 // pred_fallthru
      _
    // Predicated region
    $region26: #{_forward_padded.1} parent=1 // pred_check
      _
    $region27: #{_forward_padded.1} parent=1 // pred_check_branch
      %52 = sbr.rel (0) target = $region29
    $region28: #{_forward_padded.1} parent=1 // pred_region
      _
    $region29: #{_forward_padded.1} parent=1 // pred_fallthru
      _
    // Predicated region
    $region30: #{_forward_padded.1} parent=1 // pred_check
      _
    $region31: #{_forward_padded.1} parent=1 // pred_check_branch
      %54 = sbr.rel (0) target = $region33
    $region32: #{_forward_padded.1} parent=1 // pred_region
      %s56 = ssub.s32 2048, 2048
      %57 = vsyncadd [#allocation5], %s56
      %s58 = sshll.u32 [#allocation6], 4
      %s59 = int_to_ptr.vmem [resolvable:$true] %s58
      %64 = dma.hbm_to_vmem [thread:$0]  %s7, 2048, %s59, [#allocation5], 128, 128, 8
    $region33: #{_forward_padded.1} parent=1 // pred_fallthru
      _
    // Predicated region
    $region34: #{_forward_padded.1} parent=1 // pred_check
      _
    $region35: #{_forward_padded.1} parent=1 // pred_check_branch
      %66 = sbr.rel (0) target = $region37
    $region36: #{_forward_padded.1} parent=1 // pred_region
      _
    $region37: #{_forward_padded.1} parent=1 // pred_fallthru
      _
    // Predicated region
    $region38: #{_forward_padded.1} parent=1 // pred_check
      _
    $region39: #{_forward_padded.1} parent=1 // pred_check_branch
      %68 = sbr.rel (0) target = $region41
    $region40: #{_forward_padded.1} parent=1 // pred_region
      %s70 = ssub.s32 2048, 2048
      %71 = vsyncadd [#allocation8], %s70
      %s72 = sshll.u32 [#allocation7], 4
      %s73 = int_to_ptr.vmem [resolvable:$true] %s72
      %78 = dma.hbm_to_vmem [thread:$0]  %s9, 2048, %s73, [#allocation8], 128, 128, 8
    $region41: #{_forward_padded.1} parent=1 // pred_fallthru
      _
    // Predicated region
    $region42: #{_forward_padded.1} parent=1 // pred_check
      _
    $region43: #{_forward_padded.1} parent=1 // pred_check_branch
      %80 = sbr.rel (0) target = $region45
    $region44: #{_forward_padded.1} parent=1 // pred_region
      _
    $region45: #{_forward_padded.1} parent=1 // pred_fallthru
      _
    // Predicated region
    $region46: #{_forward_padded.1} parent=1 // pred_check
      _
    $region47: #{_forward_padded.1} parent=1 // pred_check_branch
      %82 = sbr.rel (0) target = $region49
    $region48: #{_forward_padded.1} parent=1 // pred_region
      %83 = dma.done [#allocation3], 20480
    $region49: #{_forward_padded.1} parent=1 // pred_fallthru
      _
    // Predicated region
    $region50: #{_forward_padded.1} parent=1 // pred_check
      _
    $region51: #{_forward_padded.1} parent=1 // pred_check_branch
      %85 = sbr.rel (0) target = $region53
    $region52: #{_forward_padded.1} parent=1 // pred_region
      %86 = dma.done [#allocation5], 8192
    $region53: #{_forward_padded.1} parent=1 // pred_fallthru
      _
    // Predicated region
    $region54: #{_forward_padded.1} parent=1 // pred_check
      _
    $region55: #{_forward_padded.1} parent=1 // pred_check_branch
      %88 = sbr.rel (0) target = $region57
    $region56: #{_forward_padded.1} parent=1 // pred_region
      %89 = dma.done [#allocation5], 2048
    $region57: #{_forward_padded.1} parent=1 // pred_fallthru
      _
    // Predicated region
    $region58: #{_forward_padded.1} parent=1 // pred_check
      _
    $region59: #{_forward_padded.1} parent=1 // pred_check_branch
      %91 = sbr.rel (0) target = $region61
    $region60: #{_forward_padded.1} parent=1 // pred_region
      %92 = dma.done [#allocation8], 2048
    $region61: #{_forward_padded.1} parent=1 // pred_fallthru
      _
    %v93 = vld [vmem:[%s1] sm:$0xff]
    %v94 = vld [vmem:[%s1 + $0x8] sm:$0xff]
    %v95 = vld [vmem:[%s1 + $0x10] sm:$0xff]
    %v96 = vld [vmem:[%s1 + $0x18] sm:$0xff]
    %v97 = vld [vmem:[%s1 + $0x20] sm:$0xff]
    %v98 = vld [vmem:[%s1 + $0x28] sm:$0xff]
    %v99 = vld [vmem:[%s1 + $0x30] sm:$0xff]
    %v100 = vld [vmem:[%s1 + $0x38] sm:$0xff]
    %v101 = vld [vmem:[%s1 + $0x40] sm:$0xff]
    %v102 = vld [vmem:[%s1 + $0x48] sm:$0xff]
    %v103 = vld [vmem:[%s1 + $0x50] sm:$0xff]
    %v104 = vld [vmem:[%s1 + $0x58] sm:$0xff]
    %v105 = vld [vmem:[%s1 + $0x60] sm:$0xff]
    %v106 = vld [vmem:[%s1 + $0x68] sm:$0xff]
    %v107 = vld [vmem:[%s1 + $0x70] sm:$0xff]
    %v108 = vld [vmem:[%s1 + $0x78] sm:$0xff]
    %v109 = vld [vmem:[%s1 + $0x80] sm:$0xff]
    %v110 = vld [vmem:[%s1 + $0x88] sm:$0xff]
    %v111 = vld [vmem:[%s1 + $0x90] sm:$0xff]
    %v112 = vld [vmem:[%s1 + $0x98] sm:$0xff]
    %v113 = vld [vmem:[%s1 + $0xa0] sm:$0xff]
    %v114 = vld [vmem:[%s1 + $0xa8] sm:$0xff]
    %v115 = vld [vmem:[%s1 + $0xb0] sm:$0xff]
    %v116 = vld [vmem:[%s1 + $0xb8] sm:$0xff]
    %v117 = vld [vmem:[%s1 + $0xc0] sm:$0xff]
    %v118 = vld [vmem:[%s1 + $0xc8] sm:$0xff]
    %v119 = vld [vmem:[%s1 + $0xd0] sm:$0xff]
    %v120 = vld [vmem:[%s1 + $0xd8] sm:$0xff]
    %v121 = vld [vmem:[%s1 + $0xe0] sm:$0xff]
    %v122 = vld [vmem:[%s1 + $0xe8] sm:$0xff]
    %v123 = vld [vmem:[%s1 + $0xf0] sm:$0xff]
    %v124 = vld [vmem:[%s1 + $0xf8] sm:$0xff]
    %v125 = vld [vmem:[%s0] sm:$0xff]
    %v126 = vld [vmem:[%s0 + $0x8] sm:$0xff]
    %v127 = vld [vmem:[%s0 + $0x10] sm:$0xff]
    %v128 = vld [vmem:[%s0 + $0x18] sm:$0xff]
    %v129 = vld [vmem:[%s0 + $0x20] sm:$0xff]
    %v130 = vld [vmem:[%s0 + $0x28] sm:$0xff]
    %v131 = vld [vmem:[%s0 + $0x30] sm:$0xff]
    %v132 = vld [vmem:[%s0 + $0x38] sm:$0xff]
    %v133 = vld [vmem:[%s0 + $0x40] sm:$0xff]
    %v134 = vld [vmem:[%s0 + $0x48] sm:$0xff]
    %v135 = vld [vmem:[%s0 + $0x50] sm:$0xff]
    %v136 = vld [vmem:[%s0 + $0x58] sm:$0xff]
    %v137 = vld [vmem:[%s0 + $0x70] sm:$0xff]
    %v138 = vld [vmem:[%s0 + $0x78] sm:$0xff]
    %v139 = vld [vmem:[%s0 + $0x80] sm:$0xff]
    %v140 = vld [vmem:[%s0 + $0x88] sm:$0xff]
    %v141 = vld [vmem:[%s0 + $0x90] sm:$0xff]
    %v142 = vld [vmem:[%s0 + $0x98] sm:$0xff]
    %v143 = vld [vmem:[%s0 + $0xa0] sm:$0xff]
    %v144 = vld [vmem:[%s0 + $0xa8] sm:$0xff]
    %v145 = vld [vmem:[%s0 + $0xb0] sm:$0xff]
    %v146 = vld [vmem:[%s0 + $0xb8] sm:$0xff]
    %v147 = vld [vmem:[%s0 + $0xc0] sm:$0xff]
    %v148 = vld [vmem:[%s0 + $0xc8] sm:$0xff]
    %s149 = scalar_lea.vmem %s1, 256
    %v150 = vld [vmem:[%s149] sm:$0xff]
    %v151 = vld [vmem:[%s149 + $0x8] sm:$0xff]
    %v152 = vld [vmem:[%s149 + $0x10] sm:$0xff]
    %v153 = vld [vmem:[%s149 + $0x18] sm:$0xff]
    %v154 = vld [vmem:[%s149 + $0x20] sm:$0xff]
    %v155 = vld [vmem:[%s149 + $0x28] sm:$0xff]
    %v156 = vld [vmem:[%s149 + $0x30] sm:$0xff]
    %v157 = vld [vmem:[%s149 + $0x38] sm:$0xff]
    %v158 = vld [vmem:[%s149 + $0x40] sm:$0xff]
    %v159 = vld [vmem:[%s149 + $0x48] sm:$0xff]
    %v160 = vld [vmem:[%s149 + $0x50] sm:$0xff]
    %v161 = vld [vmem:[%s149 + $0x58] sm:$0xff]
    %v162 = vld [vmem:[%s149 + $0x60] sm:$0xff]
    %v163 = vld [vmem:[%s149 + $0x68] sm:$0xff]
    %v164 = vld [vmem:[%s149 + $0x70] sm:$0xff]
    %v165 = vld [vmem:[%s149 + $0x78] sm:$0xff]
    %v166 = vld [vmem:[%s149 + $0x80] sm:$0xff]
    %v167 = vld [vmem:[%s149 + $0x88] sm:$0xff]
    %v168 = vld [vmem:[%s149 + $0x90] sm:$0xff]
    %v169 = vld [vmem:[%s149 + $0x98] sm:$0xff]
    %v170 = vld [vmem:[%s149 + $0xa0] sm:$0xff]
    %v171 = vld [vmem:[%s149 + $0xa8] sm:$0xff]
    %v172 = vld [vmem:[%s149 + $0xb0] sm:$0xff]
    %v173 = vld [vmem:[%s149 + $0xb8] sm:$0xff]
    %v174 = vld [vmem:[%s149 + $0xc0] sm:$0xff]
    %v175 = vld [vmem:[%s149 + $0xc8] sm:$0xff]
    %v176 = vld [vmem:[%s149 + $0xd0] sm:$0xff]
    %v177 = vld [vmem:[%s149 + $0xd8] sm:$0xff]
    %v178 = vld [vmem:[%s149 + $0xe0] sm:$0xff]
    %v179 = vld [vmem:[%s149 + $0xe8] sm:$0xff]
    %v180 = vld [vmem:[%s149 + $0xf0] sm:$0xff]
    %v181 = vld [vmem:[%s149 + $0xf8] sm:$0xff]
    %182 = vmatprep.subr.mxu0 %v151
    %183 = vmatpush1.msra.mxu0 %v150
    %184 = vmatprep.subr.mxu0 %v153
    %185 = vmatpush1.msra.mxu0 %v152
    %186 = vmatprep.subr.mxu0 %v155
    %187 = vmatpush1.msra.mxu0 %v154
    %188 = vmatprep.subr.mxu0 %v157
    %189 = vmatpush1.msra.mxu0 %v156
    %190 = vmatprep.subr.mxu0 %v159
    %191 = vmatpush1.msra.mxu0 %v158
    %192 = vmatprep.subr.mxu0 %v161
    %193 = vmatpush1.msra.mxu0 %v160
    %194 = vmatprep.subr.mxu0 %v163
    %195 = vmatpush1.msra.mxu0 %v162
    %196 = vmatprep.subr.mxu0 %v165
    %197 = vmatpush1.msra.mxu0 %v164
    %198 = vmatprep.subr.mxu0 %v167
    %199 = vmatpush1.msra.mxu0 %v166
    %200 = vmatprep.subr.mxu0 %v169
    %201 = vmatpush1.msra.mxu0 %v168
    %202 = vmatprep.subr.mxu0 %v171
    %203 = vmatpush1.msra.mxu0 %v170
    %204 = vmatprep.subr.mxu0 %v173
    %205 = vmatpush1.msra.mxu0 %v172
    %206 = vmatprep.subr.mxu0 %v175
    %207 = vmatpush1.msra.mxu0 %v174
    %208 = vmatprep.subr.mxu0 %v177
    %209 = vmatpush1.msra.mxu0 %v176
    %210 = vmatprep.subr.mxu0 %v179
    %211 = vmatpush1.msra.mxu0 %v178
    %212 = vmatprep.subr.mxu0 %v181
    %213 = vmatpush1.msra.mxu0 %v180
    %214 = vmatprep.subr.mxu0 0.0
    %215 = vmatpush1.msra.mxu0 0.0
    %216 = vmatprep.subr.mxu0 0.0
    %217 = vmatpush1.msra.mxu0 0.0
    %218 = vmatprep.subr.mxu0 0.0
    %219 = vmatpush1.msra.mxu0 0.0
    %220 = vmatprep.subr.mxu0 0.0
    %221 = vmatpush1.msra.mxu0 0.0
    %222 = vmatprep.subr.mxu0 0.0
    %223 = vmatpush1.msra.mxu0 0.0
    %224 = vmatprep.subr.mxu0 0.0
    %225 = vmatpush1.msra.mxu0 0.0
    %226 = vmatprep.subr.mxu0 0.0
    %227 = vmatpush1.msra.mxu0 0.0
    %228 = vmatprep.subr.mxu0 0.0
    %229 = vmatpush1.msra.mxu0 0.0
    %230 = vmatprep.subr.mxu0 0.0
    %231 = vmatpush1.msra.mxu0 0.0
    %232 = vmatprep.subr.mxu0 0.0
    %233 = vmatpush1.msra.mxu0 0.0
    %234 = vmatprep.subr.mxu0 0.0
    %235 = vmatpush1.msra.mxu0 0.0
    %236 = vmatprep.subr.mxu0 0.0
    %237 = vmatpush1.msra.mxu0 0.0
    %238 = vmatprep.subr.mxu0 0.0
    %239 = vmatpush1.msra.mxu0 0.0
    %240 = vmatprep.subr.mxu0 0.0
    %241 = vmatpush1.msra.mxu0 0.0
    %242 = vmatprep.subr.mxu0 0.0
    %243 = vmatpush1.msra.mxu0 0.0
    %244 = vmatprep.subr.mxu0 0.0
    %245 = vmatpush1.msra.mxu0 0.0
    %246 = vmatprep.mubr.f32.mxu0 0.0
    %247 = vmatmul.mubr.f32.gmra.mrb[0].mxu0 %v137
    %v248 = vpop.f32.mrb[0].mxu0
    %v249 = vadd.f32 0.0, %v248
    %v250 = vpop.f32.mrb[0].mxu0
    %v251 = vadd.f32 0.0, %v250
    %252 = vmatprep.mubr.f32.mxu0 0.0
    %253 = vmatmul.mubr.f32.gmra.mrb[0].mxu0 %v138
    %v254 = vpop.f32.mrb[0].mxu0
    %v255 = vadd.f32 0.0, %v254
    %v256 = vpop.f32.mrb[0].mxu0
    %v257 = vadd.f32 0.0, %v256
    %258 = vmatprep.mubr.f32.mxu0 0.0
    %259 = vmatmul.mubr.f32.gmra.mrb[0].mxu0 %v139
    %v260 = vpop.f32.mrb[0].mxu0
    %v261 = vadd.f32 0.0, %v260
    %v262 = vpop.f32.mrb[0].mxu0
    %v263 = vadd.f32 0.0, %v262
    %264 = vmatprep.mubr.f32.mxu0 0.0
    %265 = vmatmul.mubr.f32.gmra.mrb[0].mxu0 %v140
    %v266 = vpop.f32.mrb[0].mxu0
    %v267 = vadd.f32 0.0, %v266
    %v268 = vpop.f32.mrb[0].mxu0
    %v269 = vadd.f32 0.0, %v268
    %270 = vmatprep.mubr.f32.mxu0 0.0
    %271 = vmatmul.mubr.f32.gmra.mrb[0].mxu0 %v141
    %v272 = vpop.f32.mrb[0].mxu0
    %v273 = vadd.f32 0.0, %v272
    %v274 = vpop.f32.mrb[0].mxu0
    %v275 = vadd.f32 0.0, %v274
    %276 = vmatprep.mubr.f32.mxu0 0.0
    %277 = vmatmul.mubr.f32.gmra.mrb[0].mxu0 %v142
    %v278 = vpop.f32.mrb[0].mxu0
    %v279 = vadd.f32 0.0, %v278
    %v280 = vpop.f32.mrb[0].mxu0
    %v281 = vadd.f32 0.0, %v280
    %282 = vmatprep.mubr.f32.mxu0 0.0
    %283 = vmatmul.mubr.f32.gmra.mrb[0].mxu0 %v143
    %v284 = vpop.f32.mrb[0].mxu0
    %v285 = vadd.f32 0.0, %v284
    %v286 = vpop.f32.mrb[0].mxu0
    %v287 = vadd.f32 0.0, %v286
    %288 = vmatprep.mubr.f32.mxu0 0.0
    %289 = vmatmul.mubr.f32.gmra.mrb[0].mxu0 %v144
    %v290 = vpop.f32.mrb[0].mxu0
    %v291 = vadd.f32 0.0, %v290
    %v292 = vpop.f32.mrb[0].mxu0
    %v293 = vadd.f32 0.0, %v292
    %294 = vmatprep.mubr.f32.mxu0 0.0
    %295 = vmatmul.mubr.f32.gmra.mrb[0].mxu0 %v145
    %v296 = vpop.f32.mrb[0].mxu0
    %v297 = vadd.f32 0.0, %v296
    %v298 = vpop.f32.mrb[0].mxu0
    %v299 = vadd.f32 0.0, %v298
    %300 = vmatprep.mubr.f32.mxu0 0.0
    %301 = vmatmul.mubr.f32.gmra.mrb[0].mxu0 %v146
    %v302 = vpop.f32.mrb[0].mxu0
    %v303 = vadd.f32 0.0, %v302
    %v304 = vpop.f32.mrb[0].mxu0
    %v305 = vadd.f32 0.0, %v304
    %306 = vmatprep.mubr.f32.mxu0 0.0
    %307 = vmatmul.mubr.f32.gmra.mrb[0].mxu0 %v147
    %v308 = vpop.f32.mrb[0].mxu0
    %v309 = vadd.f32 0.0, %v308
    %v310 = vpop.f32.mrb[0].mxu0
    %v311 = vadd.f32 0.0, %v310
    %312 = vmatprep.mubr.f32.mxu0 0.0
    %313 = vmatmul.mubr.f32.gmra.mrb[0].mxu0 %v148
    %v314 = vpop.f32.mrb[0].mxu0
    %v315 = vadd.f32 0.0, %v314
    %v316 = vpop.f32.mrb[0].mxu0
    %v317 = vadd.f32 0.0, %v316
    %318 = vdwg.mxu0
    %319 = vmatprep.subr.mxu0 %v94
    %320 = vmatpush1.msra.mxu0 %v93
    %321 = vmatprep.subr.mxu0 %v96
    %322 = vmatpush1.msra.mxu0 %v95
    %323 = vmatprep.subr.mxu0 %v98
    %324 = vmatpush1.msra.mxu0 %v97
    %325 = vmatprep.subr.mxu0 %v100
    %326 = vmatpush1.msra.mxu0 %v99
    %327 = vmatprep.subr.mxu0 %v102
    %328 = vmatpush1.msra.mxu0 %v101
    %329 = vmatprep.subr.mxu0 %v104
    %330 = vmatpush1.msra.mxu0 %v103
    %331 = vmatprep.subr.mxu0 %v106
    %332 = vmatpush1.msra.mxu0 %v105
    %333 = vmatprep.subr.mxu0 %v108
    %334 = vmatpush1.msra.mxu0 %v107
    %335 = vmatprep.subr.mxu0 %v110
    %336 = vmatpush1.msra.mxu0 %v109
    %337 = vmatprep.subr.mxu0 %v112
    %338 = vmatpush1.msra.mxu0 %v111
    %339 = vmatprep.subr.mxu0 %v114
    %340 = vmatpush1.msra.mxu0 %v113
    %341 = vmatprep.subr.mxu0 %v116
    %342 = vmatpush1.msra.mxu0 %v115
    %343 = vmatprep.subr.mxu0 %v118
    %344 = vmatpush1.msra.mxu0 %v117
    %345 = vmatprep.subr.mxu0 %v120
    %346 = vmatpush1.msra.mxu0 %v119
    %347 = vmatprep.subr.mxu0 %v122
    %348 = vmatpush1.msra.mxu0 %v121
    %349 = vmatprep.subr.mxu0 %v124
    %350 = vmatpush1.msra.mxu0 %v123
    %351 = vmatprep.subr.mxu0 0.0
    %352 = vmatpush1.msra.mxu0 0.0
    %353 = vmatprep.subr.mxu0 0.0
    %354 = vmatpush1.msra.mxu0 0.0
    %355 = vmatprep.subr.mxu0 0.0
    %356 = vmatpush1.msra.mxu0 0.0
    %357 = vmatprep.subr.mxu0 0.0
    %358 = vmatpush1.msra.mxu0 0.0
    %359 = vmatprep.subr.mxu0 0.0
    %360 = vmatpush1.msra.mxu0 0.0
    %361 = vmatprep.subr.mxu0 0.0
    %362 = vmatpush1.msra.mxu0 0.0
    %363 = vmatprep.subr.mxu0 0.0
    %364 = vmatpush1.msra.mxu0 0.0
    %365 = vmatprep.subr.mxu0 0.0
    %366 = vmatpush1.msra.mxu0 0.0
    %367 = vmatprep.subr.mxu0 0.0
    %368 = vmatpush1.msra.mxu0 0.0
    %369 = vmatprep.subr.mxu0 0.0
    %370 = vmatpush1.msra.mxu0 0.0
    %371 = vmatprep.subr.mxu0 0.0
    %372 = vmatpush1.msra.mxu0 0.0
    %373 = vmatprep.subr.mxu0 0.0
    %374 = vmatpush1.msra.mxu0 0.0
    %375 = vmatprep.subr.mxu0 0.0
    %376 = vmatpush1.msra.mxu0 0.0
    %377 = vmatprep.subr.mxu0 0.0
    %378 = vmatpush1.msra.mxu0 0.0
    %379 = vmatprep.subr.mxu0 0.0
    %380 = vmatpush1.msra.mxu0 0.0
    %381 = vmatprep.subr.mxu0 0.0
    %382 = vmatpush1.msra.mxu0 0.0
    %383 = vmatprep.mubr.f32.mxu0 0.0
    %384 = vmatmul.mubr.f32.gmra.mrb[0].mxu0 %v125
    %v385 = vpop.f32.mrb[0].mxu0
    %v386 = vadd.f32 %v249, %v385
    %v387 = vpop.f32.mrb[0].mxu0
    %v388 = vadd.f32 %v251, %v387
    %389 = vmatprep.mubr.f32.mxu0 0.0
    %390 = vmatmul.mubr.f32.gmra.mrb[0].mxu0 %v126
    %v391 = vpop.f32.mrb[0].mxu0
    %v392 = vadd.f32 %v255, %v391
    %v393 = vpop.f32.mrb[0].mxu0
    %v394 = vadd.f32 %v257, %v393
    %395 = vmatprep.mubr.f32.mxu0 0.0
    %396 = vmatmul.mubr.f32.gmra.mrb[0].mxu0 %v127
    %v397 = vpop.f32.mrb[0].mxu0
    %v398 = vadd.f32 %v261, %v397
    %v399 = vpop.f32.mrb[0].mxu0
    %v400 = vadd.f32 %v263, %v399
    %401 = vmatprep.mubr.f32.mxu0 0.0
    %402 = vmatmul.mubr.f32.gmra.mrb[0].mxu0 %v128
    %v403 = vpop.f32.mrb[0].mxu0
    %v404 = vadd.f32 %v267, %v403
    %v405 = vpop.f32.mrb[0].mxu0
    %v406 = vadd.f32 %v269, %v405
    %407 = vmatprep.mubr.f32.mxu0 0.0
    %408 = vmatmul.mubr.f32.gmra.mrb[0].mxu0 %v129
    %v409 = vpop.f32.mrb[0].mxu0
    %v410 = vadd.f32 %v273, %v409
    %v411 = vpop.f32.mrb[0].mxu0
    %v412 = vadd.f32 %v275, %v411
    %413 = vmatprep.mubr.f32.mxu0 0.0
    %414 = vmatmul.mubr.f32.gmra.mrb[0].mxu0 %v130
    %v415 = vpop.f32.mrb[0].mxu0
    %v416 = vadd.f32 %v279, %v415
    %v417 = vpop.f32.mrb[0].mxu0
    %v418 = vadd.f32 %v281, %v417
    %419 = vmatprep.mubr.f32.mxu0 0.0
    %420 = vmatmul.mubr.f32.gmra.mrb[0].mxu0 %v131
    %v421 = vpop.f32.mrb[0].mxu0
    %v422 = vadd.f32 %v285, %v421
    %v423 = vpop.f32.mrb[0].mxu0
    %v424 = vadd.f32 %v287, %v423
    %425 = vmatprep.mubr.f32.mxu0 0.0
    %426 = vmatmul.mubr.f32.gmra.mrb[0].mxu0 %v132
    %v427 = vpop.f32.mrb[0].mxu0
    %v428 = vadd.f32 %v291, %v427
    %v429 = vpop.f32.mrb[0].mxu0
    %v430 = vadd.f32 %v293, %v429
    %431 = vmatprep.mubr.f32.mxu0 0.0
    %432 = vmatmul.mubr.f32.gmra.mrb[0].mxu0 %v133
    %v433 = vpop.f32.mrb[0].mxu0
    %v434 = vadd.f32 %v297, %v433
    %v435 = vpop.f32.mrb[0].mxu0
    %v436 = vadd.f32 %v299, %v435
    %437 = vmatprep.mubr.f32.mxu0 0.0
    %438 = vmatmul.mubr.f32.gmra.mrb[0].mxu0 %v134
    %v439 = vpop.f32.mrb[0].mxu0
    %v440 = vadd.f32 %v303, %v439
    %v441 = vpop.f32.mrb[0].mxu0
    %v442 = vadd.f32 %v305, %v441
    %443 = vmatprep.mubr.f32.mxu0 0.0
    %444 = vmatmul.mubr.f32.gmra.mrb[0].mxu0 %v135
    %v445 = vpop.f32.mrb[0].mxu0
    %v446 = vadd.f32 %v309, %v445
    %v447 = vpop.f32.mrb[0].mxu0
    %v448 = vadd.f32 %v311, %v447
    %449 = vmatprep.mubr.f32.mxu0 0.0
    %450 = vmatmul.mubr.f32.gmra.mrb[0].mxu0 %v136
    %v451 = vpop.f32.mrb[0].mxu0
    %v452 = vadd.f32 %v315, %v451
    %v453 = vpop.f32.mrb[0].mxu0
    %v454 = vadd.f32 %v317, %v453
    %455 = vdwg.mxu0
    %v456 = vld [vmem:[%s0 + $0x8] sm:$0xff]
    %v457 = vld [vmem:[%s0 + $0x10] sm:$0xff]
    %v458 = vld [vmem:[%s0 + $0x18] sm:$0xff]
    %v459 = vld [vmem:[%s0 + $0x20] sm:$0xff]
    %v460 = vld [vmem:[%s0 + $0x28] sm:$0xff]
    %v461 = vld [vmem:[%s0 + $0x30] sm:$0xff]
    %v462 = vld [vmem:[%s0 + $0x38] sm:$0xff]
    %v463 = vld [vmem:[%s0 + $0x40] sm:$0xff]
    %v464 = vld [vmem:[%s0 + $0x48] sm:$0xff]
    %v465 = vld [vmem:[%s0 + $0x50] sm:$0xff]
    %v466 = vld [vmem:[%s0 + $0x58] sm:$0xff]
    %v467 = vld [vmem:[%s0 + $0x60] sm:$0xff]
    %468 = vmatprep.subr.mxu0 %v151
    %469 = vmatpush1.msra.mxu0 %v150
    %470 = vmatprep.subr.mxu0 %v153
    %471 = vmatpush1.msra.mxu0 %v152
    %472 = vmatprep.subr.mxu0 %v155
    %473 = vmatpush1.msra.mxu0 %v154
    %474 = vmatprep.subr.mxu0 %v157
    %475 = vmatpush1.msra.mxu0 %v156
    %476 = vmatprep.subr.mxu0 %v159
    %477 = vmatpush1.msra.mxu0 %v158
    %478 = vmatprep.subr.mxu0 %v161
    %479 = vmatpush1.msra.mxu0 %v160
    %480 = vmatprep.subr.mxu0 %v163
    %481 = vmatpush1.msra.mxu0 %v162
    %482 = vmatprep.subr.mxu0 %v165
    %483 = vmatpush1.msra.mxu0 %v164
    %484 = vmatprep.subr.mxu0 %v167
    %485 = vmatpush1.msra.mxu0 %v166
    %486 = vmatprep.subr.mxu0 %v169
    %487 = vmatpush1.msra.mxu0 %v168
    %488 = vmatprep.subr.mxu0 %v171
    %489 = vmatpush1.msra.mxu0 %v170
    %490 = vmatprep.subr.mxu0 %v173
    %491 = vmatpush1.msra.mxu0 %v172
    %492 = vmatprep.subr.mxu0 %v175
    %493 = vmatpush1.msra.mxu0 %v174
    %494 = vmatprep.subr.mxu0 %v177
    %495 = vmatpush1.msra.mxu0 %v176
    %496 = vmatprep.subr.mxu0 %v179
    %497 = vmatpush1.msra.mxu0 %v178
    %498 = vmatprep.subr.mxu0 %v181
    %499 = vmatpush1.msra.mxu0 %v180
    %500 = vmatprep.subr.mxu0 0.0
    %501 = vmatpush1.msra.mxu0 0.0
    %502 = vmatprep.subr.mxu0 0.0
    %503 = vmatpush1.msra.mxu0 0.0
    %504 = vmatprep.subr.mxu0 0.0
    %505 = vmatpush1.msra.mxu0 0.0
    %506 = vmatprep.subr.mxu0 0.0
    %507 = vmatpush1.msra.mxu0 0.0
    %508 = vmatprep.subr.mxu0 0.0
    %509 = vmatpush1.msra.mxu0 0.0
    %510 = vmatprep.subr.mxu0 0.0
    %511 = vmatpush1.msra.mxu0 0.0
    %512 = vmatprep.subr.mxu0 0.0
    %513 = vmatpush1.msra.mxu0 0.0
    %514 = vmatprep.subr.mxu0 0.0
    %515 = vmatpush1.msra.mxu0 0.0
    %516 = vmatprep.subr.mxu0 0.0
    %517 = vmatpush1.msra.mxu0 0.0
    %518 = vmatprep.subr.mxu0 0.0
    %519 = vmatpush1.msra.mxu0 0.0
    %520 = vmatprep.subr.mxu0 0.0
    %521 = vmatpush1.msra.mxu0 0.0
    %522 = vmatprep.subr.mxu0 0.0
    %523 = vmatpush1.msra.mxu0 0.0
    %524 = vmatprep.subr.mxu0 0.0
    %525 = vmatpush1.msra.mxu0 0.0
    %526 = vmatprep.subr.mxu0 0.0
    %527 = vmatpush1.msra.mxu0 0.0
    %528 = vmatprep.subr.mxu0 0.0
    %529 = vmatpush1.msra.mxu0 0.0
    %530 = vmatprep.subr.mxu0 0.0
    %531 = vmatpush1.msra.mxu0 0.0
    %532 = vmatprep.mubr.f32.mxu0 0.0
    %533 = vmatmul.mubr.f32.gmra.mrb[0].mxu0 %v456
    %v534 = vpop.f32.mrb[0].mxu0
    %v535 = vadd.f32 0.0, %v534
    %v536 = vpop.f32.mrb[0].mxu0
    %v537 = vadd.f32 0.0, %v536
    %538 = vmatprep.mubr.f32.mxu0 0.0
    %539 = vmatmul.mubr.f32.gmra.mrb[0].mxu0 %v457
    %v540 = vpop.f32.mrb[0].mxu0
    %v541 = vadd.f32 0.0, %v540
    %v542 = vpop.f32.mrb[0].mxu0
    %v543 = vadd.f32 0.0, %v542
    %544 = vmatprep.mubr.f32.mxu0 0.0
    %545 = vmatmul.mubr.f32.gmra.mrb[0].mxu0 %v458
    %v546 = vpop.f32.mrb[0].mxu0
    %v547 = vadd.f32 0.0, %v546
    %v548 = vpop.f32.mrb[0].mxu0
    %v549 = vadd.f32 0.0, %v548
    %550 = vmatprep.mubr.f32.mxu0 0.0
    %551 = vmatmul.mubr.f32.gmra.mrb[0].mxu0 %v459
    %v552 = vpop.f32.mrb[0].mxu0
    %v553 = vadd.f32 0.0, %v552
    %v554 = vpop.f32.mrb[0].mxu0
    %v555 = vadd.f32 0.0, %v554
    %556 = vmatprep.mubr.f32.mxu0 0.0
    %557 = vmatmul.mubr.f32.gmra.mrb[0].mxu0 %v460
    %v558 = vpop.f32.mrb[0].mxu0
    %v559 = vadd.f32 0.0, %v558
    %v560 = vpop.f32.mrb[0].mxu0
    %v561 = vadd.f32 0.0, %v560
    %562 = vmatprep.mubr.f32.mxu0 0.0
    %563 = vmatmul.mubr.f32.gmra.mrb[0].mxu0 %v461
    %v564 = vpop.f32.mrb[0].mxu0
    %v565 = vadd.f32 0.0, %v564
    %v566 = vpop.f32.mrb[0].mxu0
    %v567 = vadd.f32 0.0, %v566
    %568 = vmatprep.mubr.f32.mxu0 0.0
    %569 = vmatmul.mubr.f32.gmra.mrb[0].mxu0 %v462
    %v570 = vpop.f32.mrb[0].mxu0
    %v571 = vadd.f32 0.0, %v570
    %v572 = vpop.f32.mrb[0].mxu0
    %v573 = vadd.f32 0.0, %v572
    %574 = vmatprep.mubr.f32.mxu0 0.0
    %575 = vmatmul.mubr.f32.gmra.mrb[0].mxu0 %v463
    %v576 = vpop.f32.mrb[0].mxu0
    %v577 = vadd.f32 0.0, %v576
    %v578 = vpop.f32.mrb[0].mxu0
    %v579 = vadd.f32 0.0, %v578
    %580 = vmatprep.mubr.f32.mxu0 0.0
    %581 = vmatmul.mubr.f32.gmra.mrb[0].mxu0 %v464
    %v582 = vpop.f32.mrb[0].mxu0
    %v583 = vadd.f32 0.0, %v582
    %v584 = vpop.f32.mrb[0].mxu0
    %v585 = vadd.f32 0.0, %v584
    %586 = vmatprep.mubr.f32.mxu0 0.0
    %587 = vmatmul.mubr.f32.gmra.mrb[0].mxu0 %v465
    %v588 = vpop.f32.mrb[0].mxu0
    %v589 = vadd.f32 0.0, %v588
    %v590 = vpop.f32.mrb[0].mxu0
    %v591 = vadd.f32 0.0, %v590
    %592 = vmatprep.mubr.f32.mxu0 0.0
    %593 = vmatmul.mubr.f32.gmra.mrb[0].mxu0 %v466
    %v594 = vpop.f32.mrb[0].mxu0
    %v595 = vadd.f32 0.0, %v594
    %v596 = vpop.f32.mrb[0].mxu0
    %v597 = vadd.f32 0.0, %v596
    %598 = vmatprep.mubr.f32.mxu0 0.0
    %599 = vmatmul.mubr.f32.gmra.mrb[0].mxu0 %v467
    %v600 = vpop.f32.mrb[0].mxu0
    %v601 = vadd.f32 0.0, %v600
    %v602 = vpop.f32.mrb[0].mxu0
    %v603 = vadd.f32 0.0, %v602
    %604 = vdwg.mxu0
    %605 = vmatprep.subr.mxu0 %v94
    %606 = vmatpush1.msra.mxu0 %v93
    %607 = vmatprep.subr.mxu0 %v96
    %608 = vmatpush1.msra.mxu0 %v95
    %609 = vmatprep.subr.mxu0 %v98
    %610 = vmatpush1.msra.mxu0 %v97
    %611 = vmatprep.subr.mxu0 %v100
    %612 = vmatpush1.msra.mxu0 %v99
    %613 = vmatprep.subr.mxu0 %v102
    %614 = vmatpush1.msra.mxu0 %v101
    %615 = vmatprep.subr.mxu0 %v104
    %616 = vmatpush1.msra.mxu0 %v103
    %617 = vmatprep.subr.mxu0 %v106
    %618 = vmatpush1.msra.mxu0 %v105
    %619 = vmatprep.subr.mxu0 %v108
    %620 = vmatpush1.msra.mxu0 %v107
    %621 = vmatprep.subr.mxu0 %v110
    %622 = vmatpush1.msra.mxu0 %v109
    %623 = vmatprep.subr.mxu0 %v112
    %624 = vmatpush1.msra.mxu0 %v111
    %625 = vmatprep.subr.mxu0 %v114
    %626 = vmatpush1.msra.mxu0 %v113
    %627 = vmatprep.subr.mxu0 %v116
    %628 = vmatpush1.msra.mxu0 %v115
    %629 = vmatprep.subr.mxu0 %v118
    %630 = vmatpush1.msra.mxu0 %v117
    %631 = vmatprep.subr.mxu0 %v120
    %632 = vmatpush1.msra.mxu0 %v119
    %633 = vmatprep.subr.mxu0 %v122
    %634 = vmatpush1.msra.mxu0 %v121
    %635 = vmatprep.subr.mxu0 %v124
    %636 = vmatpush1.msra.mxu0 %v123
    %637 = vmatprep.subr.mxu0 0.0
    %638 = vmatpush1.msra.mxu0 0.0
    %639 = vmatprep.subr.mxu0 0.0
    %640 = vmatpush1.msra.mxu0 0.0
    %641 = vmatprep.subr.mxu0 0.0
    %642 = vmatpush1.msra.mxu0 0.0
    %643 = vmatprep.subr.mxu0 0.0
    %644 = vmatpush1.msra.mxu0 0.0
    %645 = vmatprep.subr.mxu0 0.0
    %646 = vmatpush1.msra.mxu0 0.0
    %647 = vmatprep.subr.mxu0 0.0
    %648 = vmatpush1.msra.mxu0 0.0
    %649 = vmatprep.subr.mxu0 0.0
    %650 = vmatpush1.msra.mxu0 0.0
    %651 = vmatprep.subr.mxu0 0.0
    %652 = vmatpush1.msra.mxu0 0.0
    %653 = vmatprep.subr.mxu0 0.0
    %654 = vmatpush1.msra.mxu0 0.0
    %655 = vmatprep.subr.mxu0 0.0
    %656 = vmatpush1.msra.mxu0 0.0
    %657 = vmatprep.subr.mxu0 0.0
    %658 = vmatpush1.msra.mxu0 0.0
    %659 = vmatprep.subr.mxu0 0.0
    %660 = vmatpush1.msra.mxu0 0.0
    %661 = vmatprep.subr.mxu0 0.0
    %662 = vmatpush1.msra.mxu0 0.0
    %663 = vmatprep.subr.mxu0 0.0
    %664 = vmatpush1.msra.mxu0 0.0
    %665 = vmatprep.subr.mxu0 0.0
    %666 = vmatpush1.msra.mxu0 0.0
    %667 = vmatprep.subr.mxu0 0.0
    %668 = vmatpush1.msra.mxu0 0.0
    %669 = vmatprep.mubr.f32.mxu0 0.0
    %670 = vmatmul.mubr.f32.gmra.mrb[0].mxu0 %v137
    %v671 = vpop.f32.mrb[0].mxu0
    %v672 = vadd.f32 %v535, %v671
    %v673 = vpop.f32.mrb[0].mxu0
    %v674 = vadd.f32 %v537, %v673
    %675 = vmatprep.mubr.f32.mxu0 0.0
    %676 = vmatmul.mubr.f32.gmra.mrb[0].mxu0 %v138
    %v677 = vpop.f32.mrb[0].mxu0
    %v678 = vadd.f32 %v541, %v677
    %v679 = vpop.f32.mrb[0].mxu0
    %v680 = vadd.f32 %v543, %v679
    %681 = vmatprep.mubr.f32.mxu0 0.0
    %682 = vmatmul.mubr.f32.gmra.mrb[0].mxu0 %v139
    %v683 = vpop.f32.mrb[0].mxu0
    %v684 = vadd.f32 %v547, %v683
    %v685 = vpop.f32.mrb[0].mxu0
    %v686 = vadd.f32 %v549, %v685
    %687 = vmatprep.mubr.f32.mxu0 0.0
    %688 = vmatmul.mubr.f32.gmra.mrb[0].mxu0 %v140
    %v689 = vpop.f32.mrb[0].mxu0
    %v690 = vadd.f32 %v553, %v689
    %v691 = vpop.f32.mrb[0].mxu0
    %v692 = vadd.f32 %v555, %v691
    %693 = vmatprep.mubr.f32.mxu0 0.0
    %694 = vmatmul.mubr.f32.gmra.mrb[0].mxu0 %v141
    %v695 = vpop.f32.mrb[0].mxu0
    %v696 = vadd.f32 %v559, %v695
    %v697 = vpop.f32.mrb[0].mxu0
    %v698 = vadd.f32 %v561, %v697
    %699 = vmatprep.mubr.f32.mxu0 0.0
    %700 = vmatmul.mubr.f32.gmra.mrb[0].mxu0 %v142
    %v701 = vpop.f32.mrb[0].mxu0
    %v702 = vadd.f32 %v565, %v701
    %v703 = vpop.f32.mrb[0].mxu0
    %v704 = vadd.f32 %v567, %v703
    %705 = vmatprep.mubr.f32.mxu0 0.0
    %706 = vmatmul.mubr.f32.gmra.mrb[0].mxu0 %v143
    %v707 = vpop.f32.mrb[0].mxu0
    %v708 = vadd.f32 %v571, %v707
    %v709 = vpop.f32.mrb[0].mxu0
    %v710 = vadd.f32 %v573, %v709
    %711 = vmatprep.mubr.f32.mxu0 0.0
    %712 = vmatmul.mubr.f32.gmra.mrb[0].mxu0 %v144
    %v713 = vpop.f32.mrb[0].mxu0
    %v714 = vadd.f32 %v577, %v713
    %v715 = vpop.f32.mrb[0].mxu0
    %v716 = vadd.f32 %v579, %v715
    %717 = vmatprep.mubr.f32.mxu0 0.0
    %718 = vmatmul.mubr.f32.gmra.mrb[0].mxu0 %v145
    %v719 = vpop.f32.mrb[0].mxu0
    %v720 = vadd.f32 %v583, %v719
    %v721 = vpop.f32.mrb[0].mxu0
    %v722 = vadd.f32 %v585, %v721
    %723 = vmatprep.mubr.f32.mxu0 0.0
    %724 = vmatmul.mubr.f32.gmra.mrb[0].mxu0 %v146
    %v725 = vpop.f32.mrb[0].mxu0
    %v726 = vadd.f32 %v589, %v725
    %v727 = vpop.f32.mrb[0].mxu0
    %v728 = vadd.f32 %v591, %v727
    %729 = vmatprep.mubr.f32.mxu0 0.0
    %730 = vmatmul.mubr.f32.gmra.mrb[0].mxu0 %v147
    %v731 = vpop.f32.mrb[0].mxu0
    %v732 = vadd.f32 %v595, %v731
    %v733 = vpop.f32.mrb[0].mxu0
    %v734 = vadd.f32 %v597, %v733
    %735 = vmatprep.mubr.f32.mxu0 0.0
    %736 = vmatmul.mubr.f32.gmra.mrb[0].mxu0 %v148
    %v737 = vpop.f32.mrb[0].mxu0
    %v738 = vadd.f32 %v601, %v737
    %v739 = vpop.f32.mrb[0].mxu0
    %v740 = vadd.f32 %v603, %v739
    %741 = vdwg.mxu0
    %s742 = scalar_lea.vmem %s1, 512
    %v743 = vld [vmem:[%s742] sm:$0xff]
    %v744 = vld [vmem:[%s742 + $0x8] sm:$0xff]
    %v745 = vld [vmem:[%s742 + $0x10] sm:$0xff]
    %v746 = vld [vmem:[%s742 + $0x18] sm:$0xff]
    %v747 = vld [vmem:[%s742 + $0x20] sm:$0xff]
    %v748 = vld [vmem:[%s742 + $0x28] sm:$0xff]
    %v749 = vld [vmem:[%s742 + $0x30] sm:$0xff]
    %v750 = vld [vmem:[%s742 + $0x38] sm:$0xff]
    %v751 = vld [vmem:[%s742 + $0x40] sm:$0xff]
    %v752 = vld [vmem:[%s742 + $0x48] sm:$0xff]
    %v753 = vld [vmem:[%s742 + $0x50] sm:$0xff]
    %v754 = vld [vmem:[%s742 + $0x58] sm:$0xff]
    %v755 = vld [vmem:[%s742 + $0x60] sm:$0xff]
    %v756 = vld [vmem:[%s742 + $0x68] sm:$0xff]
    %v757 = vld [vmem:[%s742 + $0x70] sm:$0xff]
    %v758 = vld [vmem:[%s742 + $0x78] sm:$0xff]
    %v759 = vld [vmem:[%s742 + $0x80] sm:$0xff]
    %v760 = vld [vmem:[%s742 + $0x88] sm:$0xff]
    %v761 = vld [vmem:[%s742 + $0x90] sm:$0xff]
    %v762 = vld [vmem:[%s742 + $0x98] sm:$0xff]
    %v763 = vld [vmem:[%s742 + $0xa0] sm:$0xff]
    %v764 = vld [vmem:[%s742 + $0xa8] sm:$0xff]
    %v765 = vld [vmem:[%s742 + $0xb0] sm:$0xff]
    %v766 = vld [vmem:[%s742 + $0xb8] sm:$0xff]
    %v767 = vld [vmem:[%s742 + $0xc0] sm:$0xff]
    %v768 = vld [vmem:[%s742 + $0xc8] sm:$0xff]
    %v769 = vld [vmem:[%s742 + $0xd0] sm:$0xff]
    %v770 = vld [vmem:[%s742 + $0xd8] sm:$0xff]
    %v771 = vld [vmem:[%s742 + $0xe0] sm:$0xff]
    %v772 = vld [vmem:[%s742 + $0xe8] sm:$0xff]
    %v773 = vld [vmem:[%s742 + $0xf0] sm:$0xff]
    %v774 = vld [vmem:[%s742 + $0xf8] sm:$0xff]
    %775 = vmatprep.subr.mxu0 %v744
    %776 = vmatpush1.msra.mxu0 %v743
    %777 = vmatprep.subr.mxu0 %v746
    %778 = vmatpush1.msra.mxu0 %v745
    %779 = vmatprep.subr.mxu0 %v748
    %780 = vmatpush1.msra.mxu0 %v747
    %781 = vmatprep.subr.mxu0 %v750
    %782 = vmatpush1.msra.mxu0 %v749
    %783 = vmatprep.subr.mxu0 %v752
    %784 = vmatpush1.msra.mxu0 %v751
    %785 = vmatprep.subr.mxu0 %v754
    %786 = vmatpush1.msra.mxu0 %v753
    %787 = vmatprep.subr.mxu0 %v756
    %788 = vmatpush1.msra.mxu0 %v755
    %789 = vmatprep.subr.mxu0 %v758
    %790 = vmatpush1.msra.mxu0 %v757
    %791 = vmatprep.subr.mxu0 %v760
    %792 = vmatpush1.msra.mxu0 %v759
    %793 = vmatprep.subr.mxu0 %v762
    %794 = vmatpush1.msra.mxu0 %v761
    %795 = vmatprep.subr.mxu0 %v764
    %796 = vmatpush1.msra.mxu0 %v763
    %797 = vmatprep.subr.mxu0 %v766
    %798 = vmatpush1.msra.mxu0 %v765
    %799 = vmatprep.subr.mxu0 %v768
    %800 = vmatpush1.msra.mxu0 %v767
    %801 = vmatprep.subr.mxu0 %v770
    %802 = vmatpush1.msra.mxu0 %v769
    %803 = vmatprep.subr.mxu0 %v772
    %804 = vmatpush1.msra.mxu0 %v771
    %805 = vmatprep.subr.mxu0 %v774
    %806 = vmatpush1.msra.mxu0 %v773
    %807 = vmatprep.subr.mxu0 0.0
    %808 = vmatpush1.msra.mxu0 0.0
    %809 = vmatprep.subr.mxu0 0.0
    %810 = vmatpush1.msra.mxu0 0.0
    %811 = vmatprep.subr.mxu0 0.0
    %812 = vmatpush1.msra.mxu0 0.0
    %813 = vmatprep.subr.mxu0 0.0
    %814 = vmatpush1.msra.mxu0 0.0
    %815 = vmatprep.subr.mxu0 0.0
    %816 = vmatpush1.msra.mxu0 0.0
    %817 = vmatprep.subr.mxu0 0.0
    %818 = vmatpush1.msra.mxu0 0.0
    %819 = vmatprep.subr.mxu0 0.0
    %820 = vmatpush1.msra.mxu0 0.0
    %821 = vmatprep.subr.mxu0 0.0
    %822 = vmatpush1.msra.mxu0 0.0
    %823 = vmatprep.subr.mxu0 0.0
    %824 = vmatpush1.msra.mxu0 0.0
    %825 = vmatprep.subr.mxu0 0.0
    %826 = vmatpush1.msra.mxu0 0.0
    %827 = vmatprep.subr.mxu0 0.0
    %828 = vmatpush1.msra.mxu0 0.0
    %829 = vmatprep.subr.mxu0 0.0
    %830 = vmatpush1.msra.mxu0 0.0
    %831 = vmatprep.subr.mxu0 0.0
    %832 = vmatpush1.msra.mxu0 0.0
    %833 = vmatprep.subr.mxu0 0.0
    %834 = vmatpush1.msra.mxu0 0.0
    %835 = vmatprep.subr.mxu0 0.0
    %836 = vmatpush1.msra.mxu0 0.0
    %837 = vmatprep.subr.mxu0 0.0
    %838 = vmatpush1.msra.mxu0 0.0
    %839 = vmatprep.mubr.f32.mxu0 0.0
    %840 = vmatmul.mubr.f32.gmra.mrb[0].mxu0 %v456
    %v841 = vpop.f32.mrb[0].mxu0
    %v842 = vadd.f32 0.0, %v841
    %v843 = vpop.f32.mrb[0].mxu0
    %v844 = vadd.f32 0.0, %v843
    %845 = vmatprep.mubr.f32.mxu0 0.0
    %846 = vmatmul.mubr.f32.gmra.mrb[0].mxu0 %v457
    %v847 = vpop.f32.mrb[0].mxu0
    %v848 = vadd.f32 0.0, %v847
    %v849 = vpop.f32.mrb[0].mxu0
    %v850 = vadd.f32 0.0, %v849
    %851 = vmatprep.mubr.f32.mxu0 0.0
    %852 = vmatmul.mubr.f32.gmra.mrb[0].mxu0 %v458
    %v853 = vpop.f32.mrb[0].mxu0
    %v854 = vadd.f32 0.0, %v853
    %v855 = vpop.f32.mrb[0].mxu0
    %v856 = vadd.f32 0.0, %v855
    %857 = vmatprep.mubr.f32.mxu0 0.0
    %858 = vmatmul.mubr.f32.gmra.mrb[0].mxu0 %v459
    %v859 = vpop.f32.mrb[0].mxu0
    %v860 = vadd.f32 0.0, %v859
    %v861 = vpop.f32.mrb[0].mxu0
    %v862 = vadd.f32 0.0, %v861
    %863 = vmatprep.mubr.f32.mxu0 0.0
    %864 = vmatmul.mubr.f32.gmra.mrb[0].mxu0 %v460
    %v865 = vpop.f32.mrb[0].mxu0
    %v866 = vadd.f32 0.0, %v865
    %v867 = vpop.f32.mrb[0].mxu0
    %v868 = vadd.f32 0.0, %v867
    %869 = vmatprep.mubr.f32.mxu0 0.0
    %870 = vmatmul.mubr.f32.gmra.mrb[0].mxu0 %v461
    %v871 = vpop.f32.mrb[0].mxu0
    %v872 = vadd.f32 0.0, %v871
    %v873 = vpop.f32.mrb[0].mxu0
    %v874 = vadd.f32 0.0, %v873
    %875 = vmatprep.mubr.f32.mxu0 0.0
    %876 = vmatmul.mubr.f32.gmra.mrb[0].mxu0 %v462
    %v877 = vpop.f32.mrb[0].mxu0
    %v878 = vadd.f32 0.0, %v877
    %v879 = vpop.f32.mrb[0].mxu0
    %v880 = vadd.f32 0.0, %v879
    %881 = vmatprep.mubr.f32.mxu0 0.0
    %882 = vmatmul.mubr.f32.gmra.mrb[0].mxu0 %v463
    %v883 = vpop.f32.mrb[0].mxu0
    %v884 = vadd.f32 0.0, %v883
    %v885 = vpop.f32.mrb[0].mxu0
    %v886 = vadd.f32 0.0, %v885
    %887 = vmatprep.mubr.f32.mxu0 0.0
    %888 = vmatmul.mubr.f32.gmra.mrb[0].mxu0 %v464
    %v889 = vpop.f32.mrb[0].mxu0
    %v890 = vadd.f32 0.0, %v889
    %v891 = vpop.f32.mrb[0].mxu0
    %v892 = vadd.f32 0.0, %v891
    %893 = vmatprep.mubr.f32.mxu0 0.0
    %894 = vmatmul.mubr.f32.gmra.mrb[0].mxu0 %v465
    %v895 = vpop.f32.mrb[0].mxu0
    %v896 = vadd.f32 0.0, %v895
    %v897 = vpop.f32.mrb[0].mxu0
    %v898 = vadd.f32 0.0, %v897
    %899 = vmatprep.mubr.f32.mxu0 0.0
    %900 = vmatmul.mubr.f32.gmra.mrb[0].mxu0 %v466
    %v901 = vpop.f32.mrb[0].mxu0
    %v902 = vadd.f32 0.0, %v901
    %v903 = vpop.f32.mrb[0].mxu0
    %v904 = vadd.f32 0.0, %v903
    %905 = vmatprep.mubr.f32.mxu0 0.0
    %906 = vmatmul.mubr.f32.gmra.mrb[0].mxu0 %v467
    %v907 = vpop.f32.mrb[0].mxu0
    %v908 = vadd.f32 0.0, %v907
    %v909 = vpop.f32.mrb[0].mxu0
    %v910 = vadd.f32 0.0, %v909
    %911 = vdwg.mxu0
    %v912 = vadd.f32 %v386, %v842
    %v913 = vadd.f32 %v388, %v844
    %v914 = vadd.f32 %v392, %v848
    %v915 = vadd.f32 %v394, %v850
    %v916 = vadd.f32 %v398, %v854
    %v917 = vadd.f32 %v400, %v856
    %v918 = vadd.f32 %v404, %v860
    %v919 = vadd.f32 %v406, %v862
    %v920 = vadd.f32 %v410, %v866
    %v921 = vadd.f32 %v412, %v868
    %v922 = vadd.f32 %v416, %v872
    %v923 = vadd.f32 %v418, %v874
    %v924 = vadd.f32 %v422, %v878
    %v925 = vadd.f32 %v424, %v880
    %v926 = vadd.f32 %v428, %v884
    %v927 = vadd.f32 %v430, %v886
    %v928 = vadd.f32 %v434, %v890
    %v929 = vadd.f32 %v436, %v892
    %v930 = vadd.f32 %v440, %v896
    %v931 = vadd.f32 %v442, %v898
    %v932 = vadd.f32 %v446, %v902
    %v933 = vadd.f32 %v448, %v904
    %v934 = vadd.f32 %v452, %v908
    %v935 = vadd.f32 %v454, %v910
    %v936 = vld [vmem:[%s0 + $0x78] sm:$0xff]
    %v937 = vld [vmem:[%s0 + $0x80] sm:$0xff]
    %v938 = vld [vmem:[%s0 + $0x88] sm:$0xff]
    %v939 = vld [vmem:[%s0 + $0x90] sm:$0xff]
    %v940 = vld [vmem:[%s0 + $0x98] sm:$0xff]
    %v941 = vld [vmem:[%s0 + $0xa0] sm:$0xff]
    %v942 = vld [vmem:[%s0 + $0xa8] sm:$0xff]
    %v943 = vld [vmem:[%s0 + $0xb0] sm:$0xff]
    %v944 = vld [vmem:[%s0 + $0xb8] sm:$0xff]
    %v945 = vld [vmem:[%s0 + $0xc0] sm:$0xff]
    %v946 = vld [vmem:[%s0 + $0xc8] sm:$0xff]
    %v947 = vld [vmem:[%s0 + $0xd0] sm:$0xff]
    %948 = vmatprep.subr.mxu0 %v744
    %949 = vmatpush1.msra.mxu0 %v743
    %950 = vmatprep.subr.mxu0 %v746
    %951 = vmatpush1.msra.mxu0 %v745
    %952 = vmatprep.subr.mxu0 %v748
    %953 = vmatpush1.msra.mxu0 %v747
    %954 = vmatprep.subr.mxu0 %v750
    %955 = vmatpush1.msra.mxu0 %v749
    %956 = vmatprep.subr.mxu0 %v752
    %957 = vmatpush1.msra.mxu0 %v751
    %958 = vmatprep.subr.mxu0 %v754
    %959 = vmatpush1.msra.mxu0 %v753
    %960 = vmatprep.subr.mxu0 %v756
    %961 = vmatpush1.msra.mxu0 %v755
    %962 = vmatprep.subr.mxu0 %v758
    %963 = vmatpush1.msra.mxu0 %v757
    %964 = vmatprep.subr.mxu0 %v760
    %965 = vmatpush1.msra.mxu0 %v759
    %966 = vmatprep.subr.mxu0 %v762
    %967 = vmatpush1.msra.mxu0 %v761
    %968 = vmatprep.subr.mxu0 %v764
    %969 = vmatpush1.msra.mxu0 %v763
    %970 = vmatprep.subr.mxu0 %v766
    %971 = vmatpush1.msra.mxu0 %v765
    %972 = vmatprep.subr.mxu0 %v768
    %973 = vmatpush1.msra.mxu0 %v767
    %974 = vmatprep.subr.mxu0 %v770
    %975 = vmatpush1.msra.mxu0 %v769
    %976 = vmatprep.subr.mxu0 %v772
    %977 = vmatpush1.msra.mxu0 %v771
    %978 = vmatprep.subr.mxu0 %v774
    %979 = vmatpush1.msra.mxu0 %v773
    %980 = vmatprep.subr.mxu0 0.0
    %981 = vmatpush1.msra.mxu0 0.0
    %982 = vmatprep.subr.mxu0 0.0
    %983 = vmatpush1.msra.mxu0 0.0
    %984 = vmatprep.subr.mxu0 0.0
    %985 = vmatpush1.msra.mxu0 0.0
    %986 = vmatprep.subr.mxu0 0.0
    %987 = vmatpush1.msra.mxu0 0.0
    %988 = vmatprep.subr.mxu0 0.0
    %989 = vmatpush1.msra.mxu0 0.0
    %990 = vmatprep.subr.mxu0 0.0
    %991 = vmatpush1.msra.mxu0 0.0
    %992 = vmatprep.subr.mxu0 0.0
    %993 = vmatpush1.msra.mxu0 0.0
    %994 = vmatprep.subr.mxu0 0.0
    %995 = vmatpush1.msra.mxu0 0.0
    %996 = vmatprep.subr.mxu0 0.0
    %997 = vmatpush1.msra.mxu0 0.0
    %998 = vmatprep.subr.mxu0 0.0
    %999 = vmatpush1.msra.mxu0 0.0
    %1000 = vmatprep.subr.mxu0 0.0
    %1001 = vmatpush1.msra.mxu0 0.0
    %1002 = vmatprep.subr.mxu0 0.0
    %1003 = vmatpush1.msra.mxu0 0.0
    %1004 = vmatprep.subr.mxu0 0.0
    %1005 = vmatpush1.msra.mxu0 0.0
    %1006 = vmatprep.subr.mxu0 0.0
    %1007 = vmatpush1.msra.mxu0 0.0
    %1008 = vmatprep.subr.mxu0 0.0
    %1009 = vmatpush1.msra.mxu0 0.0
    %1010 = vmatprep.subr.mxu0 0.0
    %1011 = vmatpush1.msra.mxu0 0.0
    %1012 = vmatprep.mubr.f32.mxu0 0.0
    %1013 = vmatmul.mubr.f32.gmra.mrb[0].mxu0 %v936
    %v1014 = vpop.f32.mrb[0].mxu0
    %v1015 = vadd.f32 0.0, %v1014
    %v1016 = vpop.f32.mrb[0].mxu0
    %v1017 = vadd.f32 0.0, %v1016
    %1018 = vmatprep.mubr.f32.mxu0 0.0
    %1019 = vmatmul.mubr.f32.gmra.mrb[0].mxu0 %v937
    %v1020 = vpop.f32.mrb[0].mxu0
    %v1021 = vadd.f32 0.0, %v1020
    %v1022 = vpop.f32.mrb[0].mxu0
    %v1023 = vadd.f32 0.0, %v1022
    %1024 = vmatprep.mubr.f32.mxu0 0.0
    %1025 = vmatmul.mubr.f32.gmra.mrb[0].mxu0 %v938
    %v1026 = vpop.f32.mrb[0].mxu0
    %v1027 = vadd.f32 0.0, %v1026
    %v1028 = vpop.f32.mrb[0].mxu0
    %v1029 = vadd.f32 0.0, %v1028
    %1030 = vmatprep.mubr.f32.mxu0 0.0
    %1031 = vmatmul.mubr.f32.gmra.mrb[0].mxu0 %v939
    %v1032 = vpop.f32.mrb[0].mxu0
    %v1033 = vadd.f32 0.0, %v1032
    %v1034 = vpop.f32.mrb[0].mxu0
    %v1035 = vadd.f32 0.0, %v1034
    %1036 = vmatprep.mubr.f32.mxu0 0.0
    %1037 = vmatmul.mubr.f32.gmra.mrb[0].mxu0 %v940
    %v1038 = vpop.f32.mrb[0].mxu0
    %v1039 = vadd.f32 0.0, %v1038
    %v1040 = vpop.f32.mrb[0].mxu0
    %v1041 = vadd.f32 0.0, %v1040
    %1042 = vmatprep.mubr.f32.mxu0 0.0
    %1043 = vmatmul.mubr.f32.gmra.mrb[0].mxu0 %v941
    %v1044 = vpop.f32.mrb[0].mxu0
    %v1045 = vadd.f32 0.0, %v1044
    %v1046 = vpop.f32.mrb[0].mxu0
    %v1047 = vadd.f32 0.0, %v1046
    %1048 = vmatprep.mubr.f32.mxu0 0.0
    %1049 = vmatmul.mubr.f32.gmra.mrb[0].mxu0 %v942
    %v1050 = vpop.f32.mrb[0].mxu0
    %v1051 = vadd.f32 0.0, %v1050
    %v1052 = vpop.f32.mrb[0].mxu0
    %v1053 = vadd.f32 0.0, %v1052
    %1054 = vmatprep.mubr.f32.mxu0 0.0
    %1055 = vmatmul.mubr.f32.gmra.mrb[0].mxu0 %v943
    %v1056 = vpop.f32.mrb[0].mxu0
    %v1057 = vadd.f32 0.0, %v1056
    %v1058 = vpop.f32.mrb[0].mxu0
    %v1059 = vadd.f32 0.0, %v1058
    %1060 = vmatprep.mubr.f32.mxu0 0.0
    %1061 = vmatmul.mubr.f32.gmra.mrb[0].mxu0 %v944
    %v1062 = vpop.f32.mrb[0].mxu0
    %v1063 = vadd.f32 0.0, %v1062
    %v1064 = vpop.f32.mrb[0].mxu0
    %v1065 = vadd.f32 0.0, %v1064
    %1066 = vmatprep.mubr.f32.mxu0 0.0
    %1067 = vmatmul.mubr.f32.gmra.mrb[0].mxu0 %v945
    %v1068 = vpop.f32.mrb[0].mxu0
    %v1069 = vadd.f32 0.0, %v1068
    %v1070 = vpop.f32.mrb[0].mxu0
    %v1071 = vadd.f32 0.0, %v1070
    %1072 = vmatprep.mubr.f32.mxu0 0.0
    %1073 = vmatmul.mubr.f32.gmra.mrb[0].mxu0 %v946
    %v1074 = vpop.f32.mrb[0].mxu0
    %v1075 = vadd.f32 0.0, %v1074
    %v1076 = vpop.f32.mrb[0].mxu0
    %v1077 = vadd.f32 0.0, %v1076
    %1078 = vmatprep.mubr.f32.mxu0 0.0
    %1079 = vmatmul.mubr.f32.gmra.mrb[0].mxu0 %v947
    %v1080 = vpop.f32.mrb[0].mxu0
    %v1081 = vadd.f32 0.0, %v1080
    %v1082 = vpop.f32.mrb[0].mxu0
    %v1083 = vadd.f32 0.0, %v1082
    %1084 = vdwg.mxu0
    %v1085 = vadd.f32 %v672, %v1015
    %v1086 = vadd.f32 %v674, %v1017
    %v1087 = vadd.f32 %v678, %v1021
    %v1088 = vadd.f32 %v680, %v1023
    %v1089 = vadd.f32 %v684, %v1027
    %v1090 = vadd.f32 %v686, %v1029
    %v1091 = vadd.f32 %v690, %v1033
    %v1092 = vadd.f32 %v692, %v1035
    %v1093 = vadd.f32 %v696, %v1039
    %v1094 = vadd.f32 %v698, %v1041
    %v1095 = vadd.f32 %v702, %v1045
    %v1096 = vadd.f32 %v704, %v1047
    %v1097 = vadd.f32 %v708, %v1051
    %v1098 = vadd.f32 %v710, %v1053
    %v1099 = vadd.f32 %v714, %v1057
    %v1100 = vadd.f32 %v716, %v1059
    %v1101 = vadd.f32 %v720, %v1063
    %v1102 = vadd.f32 %v722, %v1065
    %v1103 = vadd.f32 %v726, %v1069
    %v1104 = vadd.f32 %v728, %v1071
    %v1105 = vadd.f32 %v732, %v1075
    %v1106 = vadd.f32 %v734, %v1077
    %v1107 = vadd.f32 %v738, %v1081
    %v1108 = vadd.f32 %v740, %v1083
    %s1109 = scalar_lea.vmem %s1, 768
    %v1110 = vld [vmem:[%s1109] sm:$0xff]
    %v1111 = vld [vmem:[%s1109 + $0x8] sm:$0xff]
    %v1112 = vld [vmem:[%s1109 + $0x10] sm:$0xff]
    %v1113 = vld [vmem:[%s1109 + $0x18] sm:$0xff]
    %v1114 = vld [vmem:[%s1109 + $0x20] sm:$0xff]
    %v1115 = vld [vmem:[%s1109 + $0x28] sm:$0xff]
    %v1116 = vld [vmem:[%s1109 + $0x30] sm:$0xff]
    %v1117 = vld [vmem:[%s1109 + $0x38] sm:$0xff]
    %v1118 = vld [vmem:[%s1109 + $0x40] sm:$0xff]
    %v1119 = vld [vmem:[%s1109 + $0x48] sm:$0xff]
    %v1120 = vld [vmem:[%s1109 + $0x50] sm:$0xff]
    %v1121 = vld [vmem:[%s1109 + $0x58] sm:$0xff]
    %v1122 = vld [vmem:[%s1109 + $0x60] sm:$0xff]
    %v1123 = vld [vmem:[%s1109 + $0x68] sm:$0xff]
    %v1124 = vld [vmem:[%s1109 + $0x70] sm:$0xff]
    %v1125 = vld [vmem:[%s1109 + $0x78] sm:$0xff]
    %v1126 = vld [vmem:[%s1109 + $0x80] sm:$0xff]
    %v1127 = vld [vmem:[%s1109 + $0x88] sm:$0xff]
    %v1128 = vld [vmem:[%s1109 + $0x90] sm:$0xff]
    %v1129 = vld [vmem:[%s1109 + $0x98] sm:$0xff]
    %v1130 = vld [vmem:[%s1109 + $0xa0] sm:$0xff]
    %v1131 = vld [vmem:[%s1109 + $0xa8] sm:$0xff]
    %v1132 = vld [vmem:[%s1109 + $0xb0] sm:$0xff]
    %v1133 = vld [vmem:[%s1109 + $0xb8] sm:$0xff]
    %v1134 = vld [vmem:[%s1109 + $0xc0] sm:$0xff]
    %v1135 = vld [vmem:[%s1109 + $0xc8] sm:$0xff]
    %v1136 = vld [vmem:[%s1109 + $0xd0] sm:$0xff]
    %v1137 = vld [vmem:[%s1109 + $0xd8] sm:$0xff]
    %v1138 = vld [vmem:[%s1109 + $0xe0] sm:$0xff]
    %v1139 = vld [vmem:[%s1109 + $0xe8] sm:$0xff]
    %v1140 = vld [vmem:[%s1109 + $0xf0] sm:$0xff]
    %v1141 = vld [vmem:[%s1109 + $0xf8] sm:$0xff]
    %1142 = vmatprep.subr.mxu0 %v1111
    %1143 = vmatpush1.msra.mxu0 %v1110
    %1144 = vmatprep.subr.mxu0 %v1113
    %1145 = vmatpush1.msra.mxu0 %v1112
    %1146 = vmatprep.subr.mxu0 %v1115
    %1147 = vmatpush1.msra.mxu0 %v1114
    %1148 = vmatprep.subr.mxu0 %v1117
    %1149 = vmatpush1.msra.mxu0 %v1116
    %1150 = vmatprep.subr.mxu0 %v1119
    %1151 = vmatpush1.msra.mxu0 %v1118
    %1152 = vmatprep.subr.mxu0 %v1121
    %1153 = vmatpush1.msra.mxu0 %v1120
    %1154 = vmatprep.subr.mxu0 %v1123
    %1155 = vmatpush1.msra.mxu0 %v1122
    %1156 = vmatprep.subr.mxu0 %v1125
    %1157 = vmatpush1.msra.mxu0 %v1124
    %1158 = vmatprep.subr.mxu0 %v1127
    %1159 = vmatpush1.msra.mxu0 %v1126
    %1160 = vmatprep.subr.mxu0 %v1129
    %1161 = vmatpush1.msra.mxu0 %v1128
    %1162 = vmatprep.subr.mxu0 %v1131
    %1163 = vmatpush1.msra.mxu0 %v1130
    %1164 = vmatprep.subr.mxu0 %v1133
    %1165 = vmatpush1.msra.mxu0 %v1132
    %1166 = vmatprep.subr.mxu0 %v1135
    %1167 = vmatpush1.msra.mxu0 %v1134
    %1168 = vmatprep.subr.mxu0 %v1137
    %1169 = vmatpush1.msra.mxu0 %v1136
    %1170 = vmatprep.subr.mxu0 %v1139
    %1171 = vmatpush1.msra.mxu0 %v1138
    %1172 = vmatprep.subr.mxu0 %v1141
    %1173 = vmatpush1.msra.mxu0 %v1140
    %1174 = vmatprep.subr.mxu0 0.0
    %1175 = vmatpush1.msra.mxu0 0.0
    %1176 = vmatprep.subr.mxu0 0.0
    %1177 = vmatpush1.msra.mxu0 0.0
    %1178 = vmatprep.subr.mxu0 0.0
    %1179 = vmatpush1.msra.mxu0 0.0
    %1180 = vmatprep.subr.mxu0 0.0
    %1181 = vmatpush1.msra.mxu0 0.0
    %1182 = vmatprep.subr.mxu0 0.0
    %1183 = vmatpush1.msra.mxu0 0.0
    %1184 = vmatprep.subr.mxu0 0.0
    %1185 = vmatpush1.msra.mxu0 0.0
    %1186 = vmatprep.subr.mxu0 0.0
    %1187 = vmatpush1.msra.mxu0 0.0
    %1188 = vmatprep.subr.mxu0 0.0
    %1189 = vmatpush1.msra.mxu0 0.0
    %1190 = vmatprep.subr.mxu0 0.0
    %1191 = vmatpush1.msra.mxu0 0.0
    %1192 = vmatprep.subr.mxu0 0.0
    %1193 = vmatpush1.msra.mxu0 0.0
    %1194 = vmatprep.subr.mxu0 0.0
    %1195 = vmatpush1.msra.mxu0 0.0
    %1196 = vmatprep.subr.mxu0 0.0
    %1197 = vmatpush1.msra.mxu0 0.0
    %1198 = vmatprep.subr.mxu0 0.0
    %1199 = vmatpush1.msra.mxu0 0.0
    %1200 = vmatprep.subr.mxu0 0.0
    %1201 = vmatpush1.msra.mxu0 0.0
    %1202 = vmatprep.subr.mxu0 0.0
    %1203 = vmatpush1.msra.mxu0 0.0
    %1204 = vmatprep.subr.mxu0 0.0
    %1205 = vmatpush1.msra.mxu0 0.0
    %1206 = vmatprep.mubr.f32.mxu0 0.0
    %1207 = vmatmul.mubr.f32.gmra.mrb[0].mxu0 %v936
    %v1208 = vpop.f32.mrb[0].mxu0
    %v1209 = vadd.f32 0.0, %v1208
    %v1210 = vpop.f32.mrb[0].mxu0
    %v1211 = vadd.f32 0.0, %v1210
    %1212 = vmatprep.mubr.f32.mxu0 0.0
    %1213 = vmatmul.mubr.f32.gmra.mrb[0].mxu0 %v937
    %v1214 = vpop.f32.mrb[0].mxu0
    %v1215 = vadd.f32 0.0, %v1214
    %v1216 = vpop.f32.mrb[0].mxu0
    %v1217 = vadd.f32 0.0, %v1216
    %1218 = vmatprep.mubr.f32.mxu0 0.0
    %1219 = vmatmul.mubr.f32.gmra.mrb[0].mxu0 %v938
    %v1220 = vpop.f32.mrb[0].mxu0
    %v1221 = vadd.f32 0.0, %v1220
    %v1222 = vpop.f32.mrb[0].mxu0
    %v1223 = vadd.f32 0.0, %v1222
    %1224 = vmatprep.mubr.f32.mxu0 0.0
    %1225 = vmatmul.mubr.f32.gmra.mrb[0].mxu0 %v939
    %v1226 = vpop.f32.mrb[0].mxu0
    %v1227 = vadd.f32 0.0, %v1226
    %v1228 = vpop.f32.mrb[0].mxu0
    %v1229 = vadd.f32 0.0, %v1228
    %1230 = vmatprep.mubr.f32.mxu0 0.0
    %1231 = vmatmul.mubr.f32.gmra.mrb[0].mxu0 %v940
    %v1232 = vpop.f32.mrb[0].mxu0
    %v1233 = vadd.f32 0.0, %v1232
    %v1234 = vpop.f32.mrb[0].mxu0
    %v1235 = vadd.f32 0.0, %v1234
    %1236 = vmatprep.mubr.f32.mxu0 0.0
    %1237 = vmatmul.mubr.f32.gmra.mrb[0].mxu0 %v941
    %v1238 = vpop.f32.mrb[0].mxu0
    %v1239 = vadd.f32 0.0, %v1238
    %v1240 = vpop.f32.mrb[0].mxu0
    %v1241 = vadd.f32 0.0, %v1240
    %1242 = vmatprep.mubr.f32.mxu0 0.0
    %1243 = vmatmul.mubr.f32.gmra.mrb[0].mxu0 %v942
    %v1244 = vpop.f32.mrb[0].mxu0
    %v1245 = vadd.f32 0.0, %v1244
    %v1246 = vpop.f32.mrb[0].mxu0
    %v1247 = vadd.f32 0.0, %v1246
    %1248 = vmatprep.mubr.f32.mxu0 0.0
    %1249 = vmatmul.mubr.f32.gmra.mrb[0].mxu0 %v943
    %v1250 = vpop.f32.mrb[0].mxu0
    %v1251 = vadd.f32 0.0, %v1250
    %v1252 = vpop.f32.mrb[0].mxu0
    %v1253 = vadd.f32 0.0, %v1252
    %1254 = vmatprep.mubr.f32.mxu0 0.0
    %1255 = vmatmul.mubr.f32.gmra.mrb[0].mxu0 %v944
    %v1256 = vpop.f32.mrb[0].mxu0
    %v1257 = vadd.f32 0.0, %v1256
    %v1258 = vpop.f32.mrb[0].mxu0
    %v1259 = vadd.f32 0.0, %v1258
    %1260 = vmatprep.mubr.f32.mxu0 0.0
    %1261 = vmatmul.mubr.f32.gmra.mrb[0].mxu0 %v945
    %v1262 = vpop.f32.mrb[0].mxu0
    %v1263 = vadd.f32 0.0, %v1262
    %v1264 = vpop.f32.mrb[0].mxu0
    %v1265 = vadd.f32 0.0, %v1264
    %1266 = vmatprep.mubr.f32.mxu0 0.0
    %1267 = vmatmul.mubr.f32.gmra.mrb[0].mxu0 %v946
    %v1268 = vpop.f32.mrb[0].mxu0
    %v1269 = vadd.f32 0.0, %v1268
    %v1270 = vpop.f32.mrb[0].mxu0
    %v1271 = vadd.f32 0.0, %v1270
    %1272 = vmatprep.mubr.f32.mxu0 0.0
    %1273 = vmatmul.mubr.f32.gmra.mrb[0].mxu0 %v947
    %v1274 = vpop.f32.mrb[0].mxu0
    %v1275 = vadd.f32 0.0, %v1274
    %v1276 = vpop.f32.mrb[0].mxu0
    %v1277 = vadd.f32 0.0, %v1276
    %1278 = vdwg.mxu0
    %v1279 = vadd.f32 %v912, %v1209
    %v1280 = vadd.f32 %v913, %v1211
    %v1281 = vadd.f32 %v914, %v1215
    %v1282 = vadd.f32 %v915, %v1217
    %v1283 = vadd.f32 %v916, %v1221
    %v1284 = vadd.f32 %v917, %v1223
    %v1285 = vadd.f32 %v918, %v1227
    %v1286 = vadd.f32 %v919, %v1229
    %v1287 = vadd.f32 %v920, %v1233
    %v1288 = vadd.f32 %v921, %v1235
    %v1289 = vadd.f32 %v922, %v1239
    %v1290 = vadd.f32 %v923, %v1241
    %v1291 = vadd.f32 %v924, %v1245
    %v1292 = vadd.f32 %v925, %v1247
    %v1293 = vadd.f32 %v926, %v1251
    %v1294 = vadd.f32 %v927, %v1253
    %v1295 = vadd.f32 %v928, %v1257
    %v1296 = vadd.f32 %v929, %v1259
    %v1297 = vadd.f32 %v930, %v1263
    %v1298 = vadd.f32 %v931, %v1265
    %v1299 = vadd.f32 %v932, %v1269
    %v1300 = vadd.f32 %v933, %v1271
    %v1301 = vadd.f32 %v934, %v1275
    %v1302 = vadd.f32 %v935, %v1277
    %v1303 = vld [vmem:[%s0 + $0x10] sm:$0xff]
    %v1304 = vld [vmem:[%s0 + $0x18] sm:$0xff]
    %v1305 = vld [vmem:[%s0 + $0x20] sm:$0xff]
    %v1306 = vld [vmem:[%s0 + $0x28] sm:$0xff]
    %v1307 = vld [vmem:[%s0 + $0x30] sm:$0xff]
    %v1308 = vld [vmem:[%s0 + $0x38] sm:$0xff]
    %v1309 = vld [vmem:[%s0 + $0x40] sm:$0xff]
    %v1310 = vld [vmem:[%s0 + $0x48] sm:$0xff]
    %v1311 = vld [vmem:[%s0 + $0x50] sm:$0xff]
    %v1312 = vld [vmem:[%s0 + $0x58] sm:$0xff]
    %v1313 = vld [vmem:[%s0 + $0x60] sm:$0xff]
    %v1314 = vld [vmem:[%s0 + $0x68] sm:$0xff]
    %1315 = vmatprep.subr.mxu0 %v1111
    %1316 = vmatpush1.msra.mxu0 %v1110
    %1317 = vmatprep.subr.mxu0 %v1113
    %1318 = vmatpush1.msra.mxu0 %v1112
    %1319 = vmatprep.subr.mxu0 %v1115
    %1320 = vmatpush1.msra.mxu0 %v1114
    %1321 = vmatprep.subr.mxu0 %v1117
    %1322 = vmatpush1.msra.mxu0 %v1116
    %1323 = vmatprep.subr.mxu0 %v1119
    %1324 = vmatpush1.msra.mxu0 %v1118
    %1325 = vmatprep.subr.mxu0 %v1121
    %1326 = vmatpush1.msra.mxu0 %v1120
    %1327 = vmatprep.subr.mxu0 %v1123
    %1328 = vmatpush1.msra.mxu0 %v1122
    %1329 = vmatprep.subr.mxu0 %v1125
    %1330 = vmatpush1.msra.mxu0 %v1124
    %1331 = vmatprep.subr.mxu0 %v1127
    %1332 = vmatpush1.msra.mxu0 %v1126
    %1333 = vmatprep.subr.mxu0 %v1129
    %1334 = vmatpush1.msra.mxu0 %v1128
    %1335 = vmatprep.subr.mxu0 %v1131
    %1336 = vmatpush1.msra.mxu0 %v1130
    %1337 = vmatprep.subr.mxu0 %v1133
    %1338 = vmatpush1.msra.mxu0 %v1132
    %1339 = vmatprep.subr.mxu0 %v1135
    %1340 = vmatpush1.msra.mxu0 %v1134
    %1341 = vmatprep.subr.mxu0 %v1137
    %1342 = vmatpush1.msra.mxu0 %v1136
    %1343 = vmatprep.subr.mxu0 %v1139
    %1344 = vmatpush1.msra.mxu0 %v1138
    %1345 = vmatprep.subr.mxu0 %v1141
    %1346 = vmatpush1.msra.mxu0 %v1140
    %1347 = vmatprep.subr.mxu0 0.0
    %1348 = vmatpush1.msra.mxu0 0.0
    %1349 = vmatprep.subr.mxu0 0.0
    %1350 = vmatpush1.msra.mxu0 0.0
    %1351 = vmatprep.subr.mxu0 0.0
    %1352 = vmatpush1.msra.mxu0 0.0
    %1353 = vmatprep.subr.mxu0 0.0
    %1354 = vmatpush1.msra.mxu0 0.0
    %1355 = vmatprep.subr.mxu0 0.0
    %1356 = vmatpush1.msra.mxu0 0.0
    %1357 = vmatprep.subr.mxu0 0.0
    %1358 = vmatpush1.msra.mxu0 0.0
    %1359 = vmatprep.subr.mxu0 0.0
    %1360 = vmatpush1.msra.mxu0 0.0
    %1361 = vmatprep.subr.mxu0 0.0
    %1362 = vmatpush1.msra.mxu0 0.0
    %1363 = vmatprep.subr.mxu0 0.0
    %1364 = vmatpush1.msra.mxu0 0.0
    %1365 = vmatprep.subr.mxu0 0.0
    %1366 = vmatpush1.msra.mxu0 0.0
    %1367 = vmatprep.subr.mxu0 0.0
    %1368 = vmatpush1.msra.mxu0 0.0
    %1369 = vmatprep.subr.mxu0 0.0
    %1370 = vmatpush1.msra.mxu0 0.0
    %1371 = vmatprep.subr.mxu0 0.0
    %1372 = vmatpush1.msra.mxu0 0.0
    %1373 = vmatprep.subr.mxu0 0.0
    %1374 = vmatpush1.msra.mxu0 0.0
    %1375 = vmatprep.subr.mxu0 0.0
    %1376 = vmatpush1.msra.mxu0 0.0
    %1377 = vmatprep.subr.mxu0 0.0
    %1378 = vmatpush1.msra.mxu0 0.0
    %1379 = vmatprep.mubr.f32.mxu0 0.0
    %1380 = vmatmul.mubr.f32.gmra.mrb[0].mxu0 %v1303
    %v1381 = vpop.f32.mrb[0].mxu0
    %v1382 = vadd.f32 0.0, %v1381
    %v1383 = vpop.f32.mrb[0].mxu0
    %v1384 = vadd.f32 0.0, %v1383
    %1385 = vmatprep.mubr.f32.mxu0 0.0
    %1386 = vmatmul.mubr.f32.gmra.mrb[0].mxu0 %v1304
    %v1387 = vpop.f32.mrb[0].mxu0
    %v1388 = vadd.f32 0.0, %v1387
    %v1389 = vpop.f32.mrb[0].mxu0
    %v1390 = vadd.f32 0.0, %v1389
    %1391 = vmatprep.mubr.f32.mxu0 0.0
    %1392 = vmatmul.mubr.f32.gmra.mrb[0].mxu0 %v1305
    %v1393 = vpop.f32.mrb[0].mxu0
    %v1394 = vadd.f32 0.0, %v1393
    %v1395 = vpop.f32.mrb[0].mxu0
    %v1396 = vadd.f32 0.0, %v1395
    %1397 = vmatprep.mubr.f32.mxu0 0.0
    %1398 = vmatmul.mubr.f32.gmra.mrb[0].mxu0 %v1306
    %v1399 = vpop.f32.mrb[0].mxu0
    %v1400 = vadd.f32 0.0, %v1399
    %v1401 = vpop.f32.mrb[0].mxu0
    %v1402 = vadd.f32 0.0, %v1401
    %1403 = vmatprep.mubr.f32.mxu0 0.0
    %1404 = vmatmul.mubr.f32.gmra.mrb[0].mxu0 %v1307
    %v1405 = vpop.f32.mrb[0].mxu0
    %v1406 = vadd.f32 0.0, %v1405
    %v1407 = vpop.f32.mrb[0].mxu0
    %v1408 = vadd.f32 0.0, %v1407
    %1409 = vmatprep.mubr.f32.mxu0 0.0
    %1410 = vmatmul.mubr.f32.gmra.mrb[0].mxu0 %v1308
    %v1411 = vpop.f32.mrb[0].mxu0
    %v1412 = vadd.f32 0.0, %v1411
    %v1413 = vpop.f32.mrb[0].mxu0
    %v1414 = vadd.f32 0.0, %v1413
    %1415 = vmatprep.mubr.f32.mxu0 0.0
    %1416 = vmatmul.mubr.f32.gmra.mrb[0].mxu0 %v1309
    %v1417 = vpop.f32.mrb[0].mxu0
    %v1418 = vadd.f32 0.0, %v1417
    %v1419 = vpop.f32.mrb[0].mxu0
    %v1420 = vadd.f32 0.0, %v1419
    %1421 = vmatprep.mubr.f32.mxu0 0.0
    %1422 = vmatmul.mubr.f32.gmra.mrb[0].mxu0 %v1310
    %v1423 = vpop.f32.mrb[0].mxu0
    %v1424 = vadd.f32 0.0, %v1423
    %v1425 = vpop.f32.mrb[0].mxu0
    %v1426 = vadd.f32 0.0, %v1425
    %1427 = vmatprep.mubr.f32.mxu0 0.0
    %1428 = vmatmul.mubr.f32.gmra.mrb[0].mxu0 %v1311
    %v1429 = vpop.f32.mrb[0].mxu0
    %v1430 = vadd.f32 0.0, %v1429
    %v1431 = vpop.f32.mrb[0].mxu0
    %v1432 = vadd.f32 0.0, %v1431
    %1433 = vmatprep.mubr.f32.mxu0 0.0
    %1434 = vmatmul.mubr.f32.gmra.mrb[0].mxu0 %v1312
    %v1435 = vpop.f32.mrb[0].mxu0
    %v1436 = vadd.f32 0.0, %v1435
    %v1437 = vpop.f32.mrb[0].mxu0
    %v1438 = vadd.f32 0.0, %v1437
    %1439 = vmatprep.mubr.f32.mxu0 0.0
    %1440 = vmatmul.mubr.f32.gmra.mrb[0].mxu0 %v1313
    %v1441 = vpop.f32.mrb[0].mxu0
    %v1442 = vadd.f32 0.0, %v1441
    %v1443 = vpop.f32.mrb[0].mxu0
    %v1444 = vadd.f32 0.0, %v1443
    %1445 = vmatprep.mubr.f32.mxu0 0.0
    %1446 = vmatmul.mubr.f32.gmra.mrb[0].mxu0 %v1314
    %v1447 = vpop.f32.mrb[0].mxu0
    %v1448 = vadd.f32 0.0, %v1447
    %v1449 = vpop.f32.mrb[0].mxu0
    %v1450 = vadd.f32 0.0, %v1449
    %1451 = vdwg.mxu0
    %v1452 = vadd.f32 %v1085, %v1382
    %v1453 = vadd.f32 %v1086, %v1384
    %v1454 = vadd.f32 %v1087, %v1388
    %v1455 = vadd.f32 %v1088, %v1390
    %v1456 = vadd.f32 %v1089, %v1394
    %v1457 = vadd.f32 %v1090, %v1396
    %v1458 = vadd.f32 %v1091, %v1400
    %v1459 = vadd.f32 %v1092, %v1402
    %v1460 = vadd.f32 %v1093, %v1406
    %v1461 = vadd.f32 %v1094, %v1408
    %v1462 = vadd.f32 %v1095, %v1412
    %v1463 = vadd.f32 %v1096, %v1414
    %v1464 = vadd.f32 %v1097, %v1418
    %v1465 = vadd.f32 %v1098, %v1420
    %v1466 = vadd.f32 %v1099, %v1424
    %v1467 = vadd.f32 %v1100, %v1426
    %v1468 = vadd.f32 %v1101, %v1430
    %v1469 = vadd.f32 %v1102, %v1432
    %v1470 = vadd.f32 %v1103, %v1436
    %v1471 = vadd.f32 %v1104, %v1438
    %v1472 = vadd.f32 %v1105, %v1442
    %v1473 = vadd.f32 %v1106, %v1444
    %v1474 = vadd.f32 %v1107, %v1448
    %v1475 = vadd.f32 %v1108, %v1450
    %s1476 = scalar_lea.vmem %s1, 1024
    %v1477 = vld [vmem:[%s1476] sm:$0xff]
    %v1478 = vld [vmem:[%s1476 + $0x8] sm:$0xff]
    %v1479 = vld [vmem:[%s1476 + $0x10] sm:$0xff]
    %v1480 = vld [vmem:[%s1476 + $0x18] sm:$0xff]
    %v1481 = vld [vmem:[%s1476 + $0x20] sm:$0xff]
    %v1482 = vld [vmem:[%s1476 + $0x28] sm:$0xff]
    %v1483 = vld [vmem:[%s1476 + $0x30] sm:$0xff]
    %v1484 = vld [vmem:[%s1476 + $0x38] sm:$0xff]
    %v1485 = vld [vmem:[%s1476 + $0x40] sm:$0xff]
    %v1486 = vld [vmem:[%s1476 + $0x48] sm:$0xff]
    %v1487 = vld [vmem:[%s1476 + $0x50] sm:$0xff]
    %v1488 = vld [vmem:[%s1476 + $0x58] sm:$0xff]
    %v1489 = vld [vmem:[%s1476 + $0x60] sm:$0xff]
    %v1490 = vld [vmem:[%s1476 + $0x68] sm:$0xff]
    %v1491 = vld [vmem:[%s1476 + $0x70] sm:$0xff]
    %v1492 = vld [vmem:[%s1476 + $0x78] sm:$0xff]
    %v1493 = vld [vmem:[%s1476 + $0x80] sm:$0xff]
    %v1494 = vld [vmem:[%s1476 + $0x88] sm:$0xff]
    %v1495 = vld [vmem:[%s1476 + $0x90] sm:$0xff]
    %v1496 = vld [vmem:[%s1476 + $0x98] sm:$0xff]
    %v1497 = vld [vmem:[%s1476 + $0xa0] sm:$0xff]
    %v1498 = vld [vmem:[%s1476 + $0xa8] sm:$0xff]
    %v1499 = vld [vmem:[%s1476 + $0xb0] sm:$0xff]
    %v1500 = vld [vmem:[%s1476 + $0xb8] sm:$0xff]
    %v1501 = vld [vmem:[%s1476 + $0xc0] sm:$0xff]
    %v1502 = vld [vmem:[%s1476 + $0xc8] sm:$0xff]
    %v1503 = vld [vmem:[%s1476 + $0xd0] sm:$0xff]
    %v1504 = vld [vmem:[%s1476 + $0xd8] sm:$0xff]
    %v1505 = vld [vmem:[%s1476 + $0xe0] sm:$0xff]
    %v1506 = vld [vmem:[%s1476 + $0xe8] sm:$0xff]
    %v1507 = vld [vmem:[%s1476 + $0xf0] sm:$0xff]
    %v1508 = vld [vmem:[%s1476 + $0xf8] sm:$0xff]
    %1509 = vmatprep.subr.mxu0 %v1478
    %1510 = vmatpush1.msra.mxu0 %v1477
    %1511 = vmatprep.subr.mxu0 %v1480
    %1512 = vmatpush1.msra.mxu0 %v1479
    %1513 = vmatprep.subr.mxu0 %v1482
    %1514 = vmatpush1.msra.mxu0 %v1481
    %1515 = vmatprep.subr.mxu0 %v1484
    %1516 = vmatpush1.msra.mxu0 %v1483
    %1517 = vmatprep.subr.mxu0 %v1486
    %1518 = vmatpush1.msra.mxu0 %v1485
    %1519 = vmatprep.subr.mxu0 %v1488
    %1520 = vmatpush1.msra.mxu0 %v1487
    %1521 = vmatprep.subr.mxu0 %v1490
    %1522 = vmatpush1.msra.mxu0 %v1489
    %1523 = vmatprep.subr.mxu0 %v1492
    %1524 = vmatpush1.msra.mxu0 %v1491
    %1525 = vmatprep.subr.mxu0 %v1494
    %1526 = vmatpush1.msra.mxu0 %v1493
    %1527 = vmatprep.subr.mxu0 %v1496
    %1528 = vmatpush1.msra.mxu0 %v1495
    %1529 = vmatprep.subr.mxu0 %v1498
    %1530 = vmatpush1.msra.mxu0 %v1497
    %1531 = vmatprep.subr.mxu0 %v1500
    %1532 = vmatpush1.msra.mxu0 %v1499
    %1533 = vmatprep.subr.mxu0 %v1502
    %1534 = vmatpush1.msra.mxu0 %v1501
    %1535 = vmatprep.subr.mxu0 %v1504
    %1536 = vmatpush1.msra.mxu0 %v1503
    %1537 = vmatprep.subr.mxu0 %v1506
    %1538 = vmatpush1.msra.mxu0 %v1505
    %1539 = vmatprep.subr.mxu0 %v1508
    %1540 = vmatpush1.msra.mxu0 %v1507
    %1541 = vmatprep.subr.mxu0 0.0
    %1542 = vmatpush1.msra.mxu0 0.0
    %1543 = vmatprep.subr.mxu0 0.0
    %1544 = vmatpush1.msra.mxu0 0.0
    %1545 = vmatprep.subr.mxu0 0.0
    %1546 = vmatpush1.msra.mxu0 0.0
    %1547 = vmatprep.subr.mxu0 0.0
    %1548 = vmatpush1.msra.mxu0 0.0
    %1549 = vmatprep.subr.mxu0 0.0
    %1550 = vmatpush1.msra.mxu0 0.0
    %1551 = vmatprep.subr.mxu0 0.0
    %1552 = vmatpush1.msra.mxu0 0.0
    %1553 = vmatprep.subr.mxu0 0.0
    %1554 = vmatpush1.msra.mxu0 0.0
    %1555 = vmatprep.subr.mxu0 0.0
    %1556 = vmatpush1.msra.mxu0 0.0
    %1557 = vmatprep.subr.mxu0 0.0
    %1558 = vmatpush1.msra.mxu0 0.0
    %1559 = vmatprep.subr.mxu0 0.0
    %1560 = vmatpush1.msra.mxu0 0.0
    %1561 = vmatprep.subr.mxu0 0.0
    %1562 = vmatpush1.msra.mxu0 0.0
    %1563 = vmatprep.subr.mxu0 0.0
    %1564 = vmatpush1.msra.mxu0 0.0
    %1565 = vmatprep.subr.mxu0 0.0
    %1566 = vmatpush1.msra.mxu0 0.0
    %1567 = vmatprep.subr.mxu0 0.0
    %1568 = vmatpush1.msra.mxu0 0.0
    %1569 = vmatprep.subr.mxu0 0.0
    %1570 = vmatpush1.msra.mxu0 0.0
    %1571 = vmatprep.subr.mxu0 0.0
    %1572 = vmatpush1.msra.mxu0 0.0
    %1573 = vmatprep.mubr.f32.mxu0 0.0
    %1574 = vmatmul.mubr.f32.gmra.mrb[0].mxu0 %v1303
    %v1575 = vpop.f32.mrb[0].mxu0
    %v1576 = vadd.f32 0.0, %v1575
    %v1577 = vpop.f32.mrb[0].mxu0
    %v1578 = vadd.f32 0.0, %v1577
    %1579 = vmatprep.mubr.f32.mxu0 0.0
    %1580 = vmatmul.mubr.f32.gmra.mrb[0].mxu0 %v1304
    %v1581 = vpop.f32.mrb[0].mxu0
    %v1582 = vadd.f32 0.0, %v1581
    %v1583 = vpop.f32.mrb[0].mxu0
    %v1584 = vadd.f32 0.0, %v1583
    %1585 = vmatprep.mubr.f32.mxu0 0.0
    %1586 = vmatmul.mubr.f32.gmra.mrb[0].mxu0 %v1305
    %v1587 = vpop.f32.mrb[0].mxu0
    %v1588 = vadd.f32 0.0, %v1587
    %v1589 = vpop.f32.mrb[0].mxu0
    %v1590 = vadd.f32 0.0, %v1589
    %1591 = vmatprep.mubr.f32.mxu0 0.0
    %1592 = vmatmul.mubr.f32.gmra.mrb[0].mxu0 %v1306
    %v1593 = vpop.f32.mrb[0].mxu0
    %v1594 = vadd.f32 0.0, %v1593
    %v1595 = vpop.f32.mrb[0].mxu0
    %v1596 = vadd.f32 0.0, %v1595
    %1597 = vmatprep.mubr.f32.mxu0 0.0
    %1598 = vmatmul.mubr.f32.gmra.mrb[0].mxu0 %v1307
    %v1599 = vpop.f32.mrb[0].mxu0
    %v1600 = vadd.f32 0.0, %v1599
    %v1601 = vpop.f32.mrb[0].mxu0
    %v1602 = vadd.f32 0.0, %v1601
    %1603 = vmatprep.mubr.f32.mxu0 0.0
    %1604 = vmatmul.mubr.f32.gmra.mrb[0].mxu0 %v1308
    %v1605 = vpop.f32.mrb[0].mxu0
    %v1606 = vadd.f32 0.0, %v1605
    %v1607 = vpop.f32.mrb[0].mxu0
    %v1608 = vadd.f32 0.0, %v1607
    %1609 = vmatprep.mubr.f32.mxu0 0.0
    %1610 = vmatmul.mubr.f32.gmra.mrb[0].mxu0 %v1309
    %v1611 = vpop.f32.mrb[0].mxu0
    %v1612 = vadd.f32 0.0, %v1611
    %v1613 = vpop.f32.mrb[0].mxu0
    %v1614 = vadd.f32 0.0, %v1613
    %1615 = vmatprep.mubr.f32.mxu0 0.0
    %1616 = vmatmul.mubr.f32.gmra.mrb[0].mxu0 %v1310
    %v1617 = vpop.f32.mrb[0].mxu0
    %v1618 = vadd.f32 0.0, %v1617
    %v1619 = vpop.f32.mrb[0].mxu0
    %v1620 = vadd.f32 0.0, %v1619
    %1621 = vmatprep.mubr.f32.mxu0 0.0
    %1622 = vmatmul.mubr.f32.gmra.mrb[0].mxu0 %v1311
    %v1623 = vpop.f32.mrb[0].mxu0
    %v1624 = vadd.f32 0.0, %v1623
    %v1625 = vpop.f32.mrb[0].mxu0
    %v1626 = vadd.f32 0.0, %v1625
    %1627 = vmatprep.mubr.f32.mxu0 0.0
    %1628 = vmatmul.mubr.f32.gmra.mrb[0].mxu0 %v1312
    %v1629 = vpop.f32.mrb[0].mxu0
    %v1630 = vadd.f32 0.0, %v1629
    %v1631 = vpop.f32.mrb[0].mxu0
    %v1632 = vadd.f32 0.0, %v1631
    %1633 = vmatprep.mubr.f32.mxu0 0.0
    %1634 = vmatmul.mubr.f32.gmra.mrb[0].mxu0 %v1313
    %v1635 = vpop.f32.mrb[0].mxu0
    %v1636 = vadd.f32 0.0, %v1635
    %v1637 = vpop.f32.mrb[0].mxu0
    %v1638 = vadd.f32 0.0, %v1637
    %1639 = vmatprep.mubr.f32.mxu0 0.0
    %1640 = vmatmul.mubr.f32.gmra.mrb[0].mxu0 %v1314
    %v1641 = vpop.f32.mrb[0].mxu0
    %v1642 = vadd.f32 0.0, %v1641
    %v1643 = vpop.f32.mrb[0].mxu0
    %v1644 = vadd.f32 0.0, %v1643
    %1645 = vdwg.mxu0
    %v1646 = vadd.f32 %v1279, %v1576
    %v1647 = vadd.f32 %v1280, %v1578
    %v1648 = vadd.f32 %v1281, %v1582
    %v1649 = vadd.f32 %v1282, %v1584
    %v1650 = vadd.f32 %v1283, %v1588
    %v1651 = vadd.f32 %v1284, %v1590
    %v1652 = vadd.f32 %v1285, %v1594
    %v1653 = vadd.f32 %v1286, %v1596
    %v1654 = vadd.f32 %v1287, %v1600
    %v1655 = vadd.f32 %v1288, %v1602
    %v1656 = vadd.f32 %v1289, %v1606
    %v1657 = vadd.f32 %v1290, %v1608
    %v1658 = vadd.f32 %v1291, %v1612
    %v1659 = vadd.f32 %v1292, %v1614
    %v1660 = vadd.f32 %v1293, %v1618
    %v1661 = vadd.f32 %v1294, %v1620
    %v1662 = vadd.f32 %v1295, %v1624
    %v1663 = vadd.f32 %v1296, %v1626
    %v1664 = vadd.f32 %v1297, %v1630
    %v1665 = vadd.f32 %v1298, %v1632
    %v1666 = vadd.f32 %v1299, %v1636
    %v1667 = vadd.f32 %v1300, %v1638
    %v1668 = vadd.f32 %v1301, %v1642
    %v1669 = vadd.f32 %v1302, %v1644
    %v1670 = vld [vmem:[%s0 + $0x80] sm:$0xff]
    %v1671 = vld [vmem:[%s0 + $0x88] sm:$0xff]
    %v1672 = vld [vmem:[%s0 + $0x90] sm:$0xff]
    %v1673 = vld [vmem:[%s0 + $0x98] sm:$0xff]
    %v1674 = vld [vmem:[%s0 + $0xa0] sm:$0xff]
    %v1675 = vld [vmem:[%s0 + $0xa8] sm:$0xff]
    %v1676 = vld [vmem:[%s0 + $0xb0] sm:$0xff]
    %v1677 = vld [vmem:[%s0 + $0xb8] sm:$0xff]
    %v1678 = vld [vmem:[%s0 + $0xc0] sm:$0xff]
    %v1679 = vld [vmem:[%s0 + $0xc8] sm:$0xff]
    %v1680 = vld [vmem:[%s0 + $0xd0] sm:$0xff]
    %v1681 = vld [vmem:[%s0 + $0xd8] sm:$0xff]
    %1682 = vmatprep.subr.mxu0 %v1478
    %1683 = vmatpush1.msra.mxu0 %v1477
    %1684 = vmatprep.subr.mxu0 %v1480
    %1685 = vmatpush1.msra.mxu0 %v1479
    %1686 = vmatprep.subr.mxu0 %v1482
    %1687 = vmatpush1.msra.mxu0 %v1481
    %1688 = vmatprep.subr.mxu0 %v1484
    %1689 = vmatpush1.msra.mxu0 %v1483
    %1690 = vmatprep.subr.mxu0 %v1486
    %1691 = vmatpush1.msra.mxu0 %v1485
    %1692 = vmatprep.subr.mxu0 %v1488
    %1693 = vmatpush1.msra.mxu0 %v1487
    %1694 = vmatprep.subr.mxu0 %v1490
    %1695 = vmatpush1.msra.mxu0 %v1489
    %1696 = vmatprep.subr.mxu0 %v1492
    %1697 = vmatpush1.msra.mxu0 %v1491
    %1698 = vmatprep.subr.mxu0 %v1494
    %1699 = vmatpush1.msra.mxu0 %v1493
    %1700 = vmatprep.subr.mxu0 %v1496
    %1701 = vmatpush1.msra.mxu0 %v1495
    %1702 = vmatprep.subr.mxu0 %v1498
    %1703 = vmatpush1.msra.mxu0 %v1497
    %1704 = vmatprep.subr.mxu0 %v1500
    %1705 = vmatpush1.msra.mxu0 %v1499
    %1706 = vmatprep.subr.mxu0 %v1502
    %1707 = vmatpush1.msra.mxu0 %v1501
    %1708 = vmatprep.subr.mxu0 %v1504
    %1709 = vmatpush1.msra.mxu0 %v1503
    %1710 = vmatprep.subr.mxu0 %v1506
    %1711 = vmatpush1.msra.mxu0 %v1505
    %1712 = vmatprep.subr.mxu0 %v1508
    %1713 = vmatpush1.msra.mxu0 %v1507
    %1714 = vmatprep.subr.mxu0 0.0
    %1715 = vmatpush1.msra.mxu0 0.0
    %1716 = vmatprep.subr.mxu0 0.0
    %1717 = vmatpush1.msra.mxu0 0.0
    %1718 = vmatprep.subr.mxu0 0.0
    %1719 = vmatpush1.msra.mxu0 0.0
    %1720 = vmatprep.subr.mxu0 0.0
    %1721 = vmatpush1.msra.mxu0 0.0
    %1722 = vmatprep.subr.mxu0 0.0
    %1723 = vmatpush1.msra.mxu0 0.0
    %1724 = vmatprep.subr.mxu0 0.0
    %1725 = vmatpush1.msra.mxu0 0.0
    %1726 = vmatprep.subr.mxu0 0.0
    %1727 = vmatpush1.msra.mxu0 0.0
    %1728 = vmatprep.subr.mxu0 0.0
    %1729 = vmatpush1.msra.mxu0 0.0
    %1730 = vmatprep.subr.mxu0 0.0
    %1731 = vmatpush1.msra.mxu0 0.0
    %1732 = vmatprep.subr.mxu0 0.0
    %1733 = vmatpush1.msra.mxu0 0.0
    %1734 = vmatprep.subr.mxu0 0.0
    %1735 = vmatpush1.msra.mxu0 0.0
    %1736 = vmatprep.subr.mxu0 0.0
    %1737 = vmatpush1.msra.mxu0 0.0
    %1738 = vmatprep.subr.mxu0 0.0
    %1739 = vmatpush1.msra.mxu0 0.0
    %1740 = vmatprep.subr.mxu0 0.0
    %1741 = vmatpush1.msra.mxu0 0.0
    %1742 = vmatprep.subr.mxu0 0.0
    %1743 = vmatpush1.msra.mxu0 0.0
    %1744 = vmatprep.subr.mxu0 0.0
    %1745 = vmatpush1.msra.mxu0 0.0
    %1746 = vmatprep.mubr.f32.mxu0 0.0
    %1747 = vmatmul.mubr.f32.gmra.mrb[0].mxu0 %v1670
    %v1748 = vpop.f32.mrb[0].mxu0
    %v1749 = vadd.f32 0.0, %v1748
    %v1750 = vpop.f32.mrb[0].mxu0
    %v1751 = vadd.f32 0.0, %v1750
    %1752 = vmatprep.mubr.f32.mxu0 0.0
    %1753 = vmatmul.mubr.f32.gmra.mrb[0].mxu0 %v1671
    %v1754 = vpop.f32.mrb[0].mxu0
    %v1755 = vadd.f32 0.0, %v1754
    %v1756 = vpop.f32.mrb[0].mxu0
    %v1757 = vadd.f32 0.0, %v1756
    %1758 = vmatprep.mubr.f32.mxu0 0.0
    %1759 = vmatmul.mubr.f32.gmra.mrb[0].mxu0 %v1672
    %v1760 = vpop.f32.mrb[0].mxu0
    %v1761 = vadd.f32 0.0, %v1760
    %v1762 = vpop.f32.mrb[0].mxu0
    %v1763 = vadd.f32 0.0, %v1762
    %1764 = vmatprep.mubr.f32.mxu0 0.0
    %1765 = vmatmul.mubr.f32.gmra.mrb[0].mxu0 %v1673
    %v1766 = vpop.f32.mrb[0].mxu0
    %v1767 = vadd.f32 0.0, %v1766
    %v1768 = vpop.f32.mrb[0].mxu0
    %v1769 = vadd.f32 0.0, %v1768
    %1770 = vmatprep.mubr.f32.mxu0 0.0
    %1771 = vmatmul.mubr.f32.gmra.mrb[0].mxu0 %v1674
    %v1772 = vpop.f32.mrb[0].mxu0
    %v1773 = vadd.f32 0.0, %v1772
    %v1774 = vpop.f32.mrb[0].mxu0
    %v1775 = vadd.f32 0.0, %v1774
    %1776 = vmatprep.mubr.f32.mxu0 0.0
    %1777 = vmatmul.mubr.f32.gmra.mrb[0].mxu0 %v1675
    %v1778 = vpop.f32.mrb[0].mxu0
    %v1779 = vadd.f32 0.0, %v1778
    %v1780 = vpop.f32.mrb[0].mxu0
    %v1781 = vadd.f32 0.0, %v1780
    %1782 = vmatprep.mubr.f32.mxu0 0.0
    %1783 = vmatmul.mubr.f32.gmra.mrb[0].mxu0 %v1676
    %v1784 = vpop.f32.mrb[0].mxu0
    %v1785 = vadd.f32 0.0, %v1784
    %v1786 = vpop.f32.mrb[0].mxu0
    %v1787 = vadd.f32 0.0, %v1786
    %1788 = vmatprep.mubr.f32.mxu0 0.0
    %1789 = vmatmul.mubr.f32.gmra.mrb[0].mxu0 %v1677
    %v1790 = vpop.f32.mrb[0].mxu0
    %v1791 = vadd.f32 0.0, %v1790
    %v1792 = vpop.f32.mrb[0].mxu0
    %v1793 = vadd.f32 0.0, %v1792
    %1794 = vmatprep.mubr.f32.mxu0 0.0
    %1795 = vmatmul.mubr.f32.gmra.mrb[0].mxu0 %v1678
    %v1796 = vpop.f32.mrb[0].mxu0
    %v1797 = vadd.f32 0.0, %v1796
    %v1798 = vpop.f32.mrb[0].mxu0
    %v1799 = vadd.f32 0.0, %v1798
    %1800 = vmatprep.mubr.f32.mxu0 0.0
    %1801 = vmatmul.mubr.f32.gmra.mrb[0].mxu0 %v1679
    %v1802 = vpop.f32.mrb[0].mxu0
    %v1803 = vadd.f32 0.0, %v1802
    %v1804 = vpop.f32.mrb[0].mxu0
    %v1805 = vadd.f32 0.0, %v1804
    %1806 = vmatprep.mubr.f32.mxu0 0.0
    %1807 = vmatmul.mubr.f32.gmra.mrb[0].mxu0 %v1680
    %v1808 = vpop.f32.mrb[0].mxu0
    %v1809 = vadd.f32 0.0, %v1808
    %v1810 = vpop.f32.mrb[0].mxu0
    %v1811 = vadd.f32 0.0, %v1810
    %1812 = vmatprep.mubr.f32.mxu0 0.0
    %1813 = vmatmul.mubr.f32.gmra.mrb[0].mxu0 %v1681
    %v1814 = vpop.f32.mrb[0].mxu0
    %v1815 = vadd.f32 0.0, %v1814
    %v1816 = vpop.f32.mrb[0].mxu0
    %v1817 = vadd.f32 0.0, %v1816
    %1818 = vdwg.mxu0
    %v1819 = vadd.f32 %v1452, %v1749
    %v1820 = vadd.f32 %v1453, %v1751
    %v1821 = vadd.f32 %v1454, %v1755
    %v1822 = vadd.f32 %v1455, %v1757
    %v1823 = vadd.f32 %v1456, %v1761
    %v1824 = vadd.f32 %v1457, %v1763
    %v1825 = vadd.f32 %v1458, %v1767
    %v1826 = vadd.f32 %v1459, %v1769
    %v1827 = vadd.f32 %v1460, %v1773
    %v1828 = vadd.f32 %v1461, %v1775
    %v1829 = vadd.f32 %v1462, %v1779
    %v1830 = vadd.f32 %v1463, %v1781
    %v1831 = vadd.f32 %v1464, %v1785
    %v1832 = vadd.f32 %v1465, %v1787
    %v1833 = vadd.f32 %v1466, %v1791
    %v1834 = vadd.f32 %v1467, %v1793
    %v1835 = vadd.f32 %v1468, %v1797
    %v1836 = vadd.f32 %v1469, %v1799
    %v1837 = vadd.f32 %v1470, %v1803
    %v1838 = vadd.f32 %v1471, %v1805
    %v1839 = vadd.f32 %v1472, %v1809
    %v1840 = vadd.f32 %v1473, %v1811
    %v1841 = vadd.f32 %v1474, %v1815
    %v1842 = vadd.f32 %v1475, %v1817
    %v1843 = vmax.f32 %v1646, %v1647
    %v1844 = vmax.f32 %v1648, %v1649
    %v1845 = vmax.f32 %v1650, %v1651
    %v1846 = vmax.f32 %v1652, %v1653
    %v1847 = vmax.f32 %v1654, %v1655
    %v1848 = vmax.f32 %v1656, %v1657
    %v1849 = vmax.f32 %v1658, %v1659
    %v1850 = vmax.f32 %v1660, %v1661
    %v1851 = vmax.f32 %v1662, %v1663
    %v1852 = vmax.f32 %v1664, %v1665
    %v1853 = vmax.f32 %v1666, %v1667
    %v1854 = vmax.f32 %v1668, %v1669
    %v1855 = vmax.f32 %v1819, %v1820
    %v1856 = vmax.f32 %v1821, %v1822
    %v1857 = vmax.f32 %v1823, %v1824
    %v1858 = vmax.f32 %v1825, %v1826
    %v1859 = vmax.f32 %v1827, %v1828
    %v1860 = vmax.f32 %v1829, %v1830
    %v1861 = vmax.f32 %v1831, %v1832
    %v1862 = vmax.f32 %v1833, %v1834
    %v1863 = vmax.f32 %v1835, %v1836
    %v1864 = vmax.f32 %v1837, %v1838
    %v1865 = vmax.f32 %v1839, %v1840
    %v1866 = vmax.f32 %v1841, %v1842
    %v1867 = vmax.f32 %v1843, %v1855
    %v1868 = vmax.f32 %v1844, %v1856
    %v1869 = vmax.f32 %v1845, %v1857
    %v1870 = vmax.f32 %v1846, %v1858
    %v1871 = vmax.f32 %v1847, %v1859
    %v1872 = vmax.f32 %v1848, %v1860
    %v1873 = vmax.f32 %v1849, %v1861
    %v1874 = vmax.f32 %v1850, %v1862
    %v1875 = vmax.f32 %v1851, %v1863
    %v1876 = vmax.f32 %v1852, %v1864
    %v1877 = vmax.f32 %v1853, %v1865
    %v1878 = vmax.f32 %v1854, %v1866
    %v1879 = vld [vmem:[%s2] sm:$0x1]
    %v1881 = vlaneseq
    %v1882 = vshrl.u32 %v1881, 7
    %v1883 = vsub.s32 0, %v1882
    %v1884 = vrot.slane %v1879, %v1883
    %v1886 = vadd.f32 %v1867, %v1884
    %v1887 = vadd.f32 %v1868, %v1884
    %v1888 = vadd.f32 %v1869, %v1884
    %v1889 = vadd.f32 %v1870, %v1884
    %v1890 = vadd.f32 %v1871, %v1884
    %v1891 = vadd.f32 %v1872, %v1884
    %v1892 = vadd.f32 %v1873, %v1884
    %v1893 = vadd.f32 %v1874, %v1884
    %v1894 = vadd.f32 %v1875, %v1884
    %v1895 = vadd.f32 %v1876, %v1884
    %v1896 = vadd.f32 %v1877, %v1884
    %v1897 = vadd.f32 %v1878, %v1884
    %v1898 = vmax.f32 %v1886, 0.0
    %v1899 = vmax.f32 %v1887, 0.0
    %v1900 = vmax.f32 %v1888, 0.0
    %v1901 = vmax.f32 %v1889, 0.0
    %v1902 = vmax.f32 %v1890, 0.0
    %v1903 = vmax.f32 %v1891, 0.0
    %v1904 = vmax.f32 %v1892, 0.0
    %v1905 = vmax.f32 %v1893, 0.0
    %v1906 = vmax.f32 %v1894, 0.0
    %v1907 = vmax.f32 %v1895, 0.0
    %v1908 = vmax.f32 %v1896, 0.0
    %v1909 = vmax.f32 %v1897, 0.0
    %v1910 = vld [vmem:[#allocation2] sm:$0xff]
    %v1911 = vld [vmem:[#allocation2 + $0x8] sm:$0xff]
    %v1912 = vld [vmem:[#allocation2 + $0x10] sm:$0xff]
    %v1913 = vld [vmem:[#allocation2 + $0x18] sm:$0xff]
    %v1914 = vld [vmem:[#allocation2 + $0x20] sm:$0xff]
    %v1915 = vld [vmem:[#allocation2 + $0x28] sm:$0xff]
    %v1916 = vld [vmem:[#allocation2 + $0x30] sm:$0xff]
    %v1917 = vld [vmem:[#allocation2 + $0x38] sm:$0xff]
    %v1918 = vld [vmem:[#allocation2 + $0x40] sm:$0xff]
    %v1919 = vld [vmem:[#allocation2 + $0x48] sm:$0xff]
    %v1920 = vld [vmem:[#allocation2 + $0x50] sm:$0xff]
    %v1921 = vld [vmem:[#allocation2 + $0x58] sm:$0xff]
    %v1922 = vld [vmem:[#allocation2 + $0x60] sm:$0xff]
    %v1923 = vld [vmem:[#allocation2 + $0x68] sm:$0xff]
    %v1924 = vld [vmem:[#allocation2 + $0x70] sm:$0xff]
    %v1925 = vld [vmem:[#allocation2 + $0x78] sm:$0xff]
    %v1926 = vld [vmem:[#allocation2 + $0x80] sm:$0xff]
    %v1927 = vld [vmem:[#allocation2 + $0x88] sm:$0xff]
    %v1928 = vld [vmem:[#allocation2 + $0x90] sm:$0xff]
    %v1929 = vld [vmem:[#allocation2 + $0x98] sm:$0xff]
    %v1930 = vld [vmem:[#allocation2 + $0xa0] sm:$0xff]
    %v1931 = vld [vmem:[#allocation2 + $0xa8] sm:$0xff]
    %v1932 = vld [vmem:[#allocation2 + $0xb0] sm:$0xff]
    %v1933 = vld [vmem:[#allocation2 + $0xb8] sm:$0xff]
    %v1934 = vld [vmem:[#allocation2 + $0xc0] sm:$0xff]
    %v1935 = vld [vmem:[#allocation2 + $0xc8] sm:$0xff]
    %v1936 = vld [vmem:[#allocation2 + $0xd0] sm:$0xff]
    %v1937 = vld [vmem:[#allocation2 + $0xd8] sm:$0xff]
    %v1938 = vld [vmem:[#allocation2 + $0xe0] sm:$0xff]
    %v1939 = vld [vmem:[#allocation2 + $0xe8] sm:$0xff]
    %v1940 = vld [vmem:[#allocation2 + $0xf0] sm:$0xff]
    %v1941 = vld [vmem:[#allocation2 + $0xf8] sm:$0xff]
    %s1942 = scalar_lea.vmem [#allocation2], 256
    %v1943 = vld [vmem:[%s1942] sm:$0xff]
    %v1944 = vld [vmem:[%s1942 + $0x8] sm:$0xff]
    %v1945 = vld [vmem:[%s1942 + $0x10] sm:$0xff]
    %v1946 = vld [vmem:[%s1942 + $0x18] sm:$0xff]
    %v1947 = vld [vmem:[%s1942 + $0x20] sm:$0xff]
    %v1948 = vld [vmem:[%s1942 + $0x28] sm:$0xff]
    %v1949 = vld [vmem:[%s1942 + $0x30] sm:$0xff]
    %v1950 = vld [vmem:[%s1942 + $0x38] sm:$0xff]
    %v1951 = vld [vmem:[%s1942 + $0x40] sm:$0xff]
    %v1952 = vld [vmem:[%s1942 + $0x48] sm:$0xff]
    %v1953 = vld [vmem:[%s1942 + $0x50] sm:$0xff]
    %v1954 = vld [vmem:[%s1942 + $0x58] sm:$0xff]
    %v1955 = vld [vmem:[%s1942 + $0x60] sm:$0xff]
    %v1956 = vld [vmem:[%s1942 + $0x68] sm:$0xff]
    %v1957 = vld [vmem:[%s1942 + $0x70] sm:$0xff]
    %v1958 = vld [vmem:[%s1942 + $0x78] sm:$0xff]
    %v1959 = vld [vmem:[%s1942 + $0x80] sm:$0xff]
    %v1960 = vld [vmem:[%s1942 + $0x88] sm:$0xff]
    %v1961 = vld [vmem:[%s1942 + $0x90] sm:$0xff]
    %v1962 = vld [vmem:[%s1942 + $0x98] sm:$0xff]
    %v1963 = vld [vmem:[%s1942 + $0xa0] sm:$0xff]
    %v1964 = vld [vmem:[%s1942 + $0xa8] sm:$0xff]
    %v1965 = vld [vmem:[%s1942 + $0xb0] sm:$0xff]
    %v1966 = vld [vmem:[%s1942 + $0xb8] sm:$0xff]
    %v1967 = vld [vmem:[%s1942 + $0xc0] sm:$0xff]
    %v1968 = vld [vmem:[%s1942 + $0xc8] sm:$0xff]
    %v1969 = vld [vmem:[%s1942 + $0xd0] sm:$0xff]
    %v1970 = vld [vmem:[%s1942 + $0xd8] sm:$0xff]
    %v1971 = vld [vmem:[%s1942 + $0xe0] sm:$0xff]
    %v1972 = vld [vmem:[%s1942 + $0xe8] sm:$0xff]
    %v1973 = vld [vmem:[%s1942 + $0xf0] sm:$0xff]
    %v1974 = vld [vmem:[%s1942 + $0xf8] sm:$0xff]
    %1975 = vmatprep.subr.mxu0 %v1944
    %1976 = vmatpush1.msra.mxu0 %v1943
    %1977 = vmatprep.subr.mxu0 %v1946
    %1978 = vmatpush1.msra.mxu0 %v1945
    %1979 = vmatprep.subr.mxu0 %v1948
    %1980 = vmatpush1.msra.mxu0 %v1947
    %1981 = vmatprep.subr.mxu0 %v1950
    %1982 = vmatpush1.msra.mxu0 %v1949
    %1983 = vmatprep.subr.mxu0 %v1952
    %1984 = vmatpush1.msra.mxu0 %v1951
    %1985 = vmatprep.subr.mxu0 %v1954
    %1986 = vmatpush1.msra.mxu0 %v1953
    %1987 = vmatprep.subr.mxu0 %v1956
    %1988 = vmatpush1.msra.mxu0 %v1955
    %1989 = vmatprep.subr.mxu0 %v1958
    %1990 = vmatpush1.msra.mxu0 %v1957
    %1991 = vmatprep.subr.mxu0 %v1960
    %1992 = vmatpush1.msra.mxu0 %v1959
    %1993 = vmatprep.subr.mxu0 %v1962
    %1994 = vmatpush1.msra.mxu0 %v1961
    %1995 = vmatprep.subr.mxu0 %v1964
    %1996 = vmatpush1.msra.mxu0 %v1963
    %1997 = vmatprep.subr.mxu0 %v1966
    %1998 = vmatpush1.msra.mxu0 %v1965
    %1999 = vmatprep.subr.mxu0 %v1968
    %2000 = vmatpush1.msra.mxu0 %v1967
    %2001 = vmatprep.subr.mxu0 %v1970
    %2002 = vmatpush1.msra.mxu0 %v1969
    %2003 = vmatprep.subr.mxu0 %v1972
    %2004 = vmatpush1.msra.mxu0 %v1971
    %2005 = vmatprep.subr.mxu0 %v1974
    %2006 = vmatpush1.msra.mxu0 %v1973
    %2007 = vmatprep.subr.mxu0 0.0
    %2008 = vmatpush1.msra.mxu0 0.0
    %2009 = vmatprep.subr.mxu0 0.0
    %2010 = vmatpush1.msra.mxu0 0.0
    %2011 = vmatprep.subr.mxu0 0.0
    %2012 = vmatpush1.msra.mxu0 0.0
    %2013 = vmatprep.subr.mxu0 0.0
    %2014 = vmatpush1.msra.mxu0 0.0
    %2015 = vmatprep.subr.mxu0 0.0
    %2016 = vmatpush1.msra.mxu0 0.0
    %2017 = vmatprep.subr.mxu0 0.0
    %2018 = vmatpush1.msra.mxu0 0.0
    %2019 = vmatprep.subr.mxu0 0.0
    %2020 = vmatpush1.msra.mxu0 0.0
    %2021 = vmatprep.subr.mxu0 0.0
    %2022 = vmatpush1.msra.mxu0 0.0
    %2023 = vmatprep.subr.mxu0 0.0
    %2024 = vmatpush1.msra.mxu0 0.0
    %2025 = vmatprep.subr.mxu0 0.0
    %2026 = vmatpush1.msra.mxu0 0.0
    %2027 = vmatprep.subr.mxu0 0.0
    %2028 = vmatpush1.msra.mxu0 0.0
    %2029 = vmatprep.subr.mxu0 0.0
    %2030 = vmatpush1.msra.mxu0 0.0
    %2031 = vmatprep.subr.mxu0 0.0
    %2032 = vmatpush1.msra.mxu0 0.0
    %2033 = vmatprep.subr.mxu0 0.0
    %2034 = vmatpush1.msra.mxu0 0.0
    %2035 = vmatprep.subr.mxu0 0.0
    %2036 = vmatpush1.msra.mxu0 0.0
    %2037 = vmatprep.subr.mxu0 0.0
    %2038 = vmatpush1.msra.mxu0 0.0
    %2039 = vmatprep.mubr.f32.mxu0 0.0
    %2040 = vmatmul.mubr.f32.gmra.mrb[0].mxu0 %v1899
    %v2041 = vpop.f32.mrb[0].mxu0
    %v2042 = vadd.f32 0.0, %v2041
    %v2043 = vpop.f32.mrb[0].mxu0
    %v2044 = vadd.f32 0.0, %v2043
    %2045 = vmatprep.mubr.f32.mxu0 0.0
    %2046 = vmatmul.mubr.f32.gmra.mrb[0].mxu0 %v1901
    %v2047 = vpop.f32.mrb[0].mxu0
    %v2048 = vadd.f32 0.0, %v2047
    %v2049 = vpop.f32.mrb[0].mxu0
    %v2050 = vadd.f32 0.0, %v2049
    %2051 = vmatprep.mubr.f32.mxu0 0.0
    %2052 = vmatmul.mubr.f32.gmra.mrb[0].mxu0 %v1903
    %v2053 = vpop.f32.mrb[0].mxu0
    %v2054 = vadd.f32 0.0, %v2053
    %v2055 = vpop.f32.mrb[0].mxu0
    %v2056 = vadd.f32 0.0, %v2055
    %2057 = vmatprep.mubr.f32.mxu0 0.0
    %2058 = vmatmul.mubr.f32.gmra.mrb[0].mxu0 %v1905
    %v2059 = vpop.f32.mrb[0].mxu0
    %v2060 = vadd.f32 0.0, %v2059
    %v2061 = vpop.f32.mrb[0].mxu0
    %v2062 = vadd.f32 0.0, %v2061
    %2063 = vdwg.mxu0
    %2064 = vmatprep.subr.mxu0 %v1911
    %2065 = vmatpush1.msra.mxu0 %v1910
    %2066 = vmatprep.subr.mxu0 %v1913
    %2067 = vmatpush1.msra.mxu0 %v1912
    %2068 = vmatprep.subr.mxu0 %v1915
    %2069 = vmatpush1.msra.mxu0 %v1914
    %2070 = vmatprep.subr.mxu0 %v1917
    %2071 = vmatpush1.msra.mxu0 %v1916
    %2072 = vmatprep.subr.mxu0 %v1919
    %2073 = vmatpush1.msra.mxu0 %v1918
    %2074 = vmatprep.subr.mxu0 %v1921
    %2075 = vmatpush1.msra.mxu0 %v1920
    %2076 = vmatprep.subr.mxu0 %v1923
    %2077 = vmatpush1.msra.mxu0 %v1922
    %2078 = vmatprep.subr.mxu0 %v1925
    %2079 = vmatpush1.msra.mxu0 %v1924
    %2080 = vmatprep.subr.mxu0 %v1927
    %2081 = vmatpush1.msra.mxu0 %v1926
    %2082 = vmatprep.subr.mxu0 %v1929
    %2083 = vmatpush1.msra.mxu0 %v1928
    %2084 = vmatprep.subr.mxu0 %v1931
    %2085 = vmatpush1.msra.mxu0 %v1930
    %2086 = vmatprep.subr.mxu0 %v1933
    %2087 = vmatpush1.msra.mxu0 %v1932
    %2088 = vmatprep.subr.mxu0 %v1935
    %2089 = vmatpush1.msra.mxu0 %v1934
    %2090 = vmatprep.subr.mxu0 %v1937
    %2091 = vmatpush1.msra.mxu0 %v1936
    %2092 = vmatprep.subr.mxu0 %v1939
    %2093 = vmatpush1.msra.mxu0 %v1938
    %2094 = vmatprep.subr.mxu0 %v1941
    %2095 = vmatpush1.msra.mxu0 %v1940
    %2096 = vmatprep.subr.mxu0 0.0
    %2097 = vmatpush1.msra.mxu0 0.0
    %2098 = vmatprep.subr.mxu0 0.0
    %2099 = vmatpush1.msra.mxu0 0.0
    %2100 = vmatprep.subr.mxu0 0.0
    %2101 = vmatpush1.msra.mxu0 0.0
    %2102 = vmatprep.subr.mxu0 0.0
    %2103 = vmatpush1.msra.mxu0 0.0
    %2104 = vmatprep.subr.mxu0 0.0
    %2105 = vmatpush1.msra.mxu0 0.0
    %2106 = vmatprep.subr.mxu0 0.0
    %2107 = vmatpush1.msra.mxu0 0.0
    %2108 = vmatprep.subr.mxu0 0.0
    %2109 = vmatpush1.msra.mxu0 0.0
    %2110 = vmatprep.subr.mxu0 0.0
    %2111 = vmatpush1.msra.mxu0 0.0
    %2112 = vmatprep.subr.mxu0 0.0
    %2113 = vmatpush1.msra.mxu0 0.0
    %2114 = vmatprep.subr.mxu0 0.0
    %2115 = vmatpush1.msra.mxu0 0.0
    %2116 = vmatprep.subr.mxu0 0.0
    %2117 = vmatpush1.msra.mxu0 0.0
    %2118 = vmatprep.subr.mxu0 0.0
    %2119 = vmatpush1.msra.mxu0 0.0
    %2120 = vmatprep.subr.mxu0 0.0
    %2121 = vmatpush1.msra.mxu0 0.0
    %2122 = vmatprep.subr.mxu0 0.0
    %2123 = vmatpush1.msra.mxu0 0.0
    %2124 = vmatprep.subr.mxu0 0.0
    %2125 = vmatpush1.msra.mxu0 0.0
    %2126 = vmatprep.subr.mxu0 0.0
    %2127 = vmatpush1.msra.mxu0 0.0
    %2128 = vmatprep.mubr.f32.mxu0 0.0
    %2129 = vmatmul.mubr.f32.gmra.mrb[0].mxu0 %v1898
    %v2130 = vpop.f32.mrb[0].mxu0
    %v2131 = vadd.f32 %v2042, %v2130
    %v2132 = vpop.f32.mrb[0].mxu0
    %v2133 = vadd.f32 %v2044, %v2132
    %2134 = vmatprep.mubr.f32.mxu0 0.0
    %2135 = vmatmul.mubr.f32.gmra.mrb[0].mxu0 %v1900
    %v2136 = vpop.f32.mrb[0].mxu0
    %v2137 = vadd.f32 %v2048, %v2136
    %v2138 = vpop.f32.mrb[0].mxu0
    %v2139 = vadd.f32 %v2050, %v2138
    %2140 = vmatprep.mubr.f32.mxu0 0.0
    %2141 = vmatmul.mubr.f32.gmra.mrb[0].mxu0 %v1902
    %v2142 = vpop.f32.mrb[0].mxu0
    %v2143 = vadd.f32 %v2054, %v2142
    %v2144 = vpop.f32.mrb[0].mxu0
    %v2145 = vadd.f32 %v2056, %v2144
    %2146 = vmatprep.mubr.f32.mxu0 0.0
    %2147 = vmatmul.mubr.f32.gmra.mrb[0].mxu0 %v1904
    %v2148 = vpop.f32.mrb[0].mxu0
    %v2149 = vadd.f32 %v2060, %v2148
    %v2150 = vpop.f32.mrb[0].mxu0
    %v2151 = vadd.f32 %v2062, %v2150
    %2152 = vdwg.mxu0
    %2153 = vmatprep.subr.mxu0 %v1944
    %2154 = vmatpush1.msra.mxu0 %v1943
    %2155 = vmatprep.subr.mxu0 %v1946
    %2156 = vmatpush1.msra.mxu0 %v1945
    %2157 = vmatprep.subr.mxu0 %v1948
    %2158 = vmatpush1.msra.mxu0 %v1947
    %2159 = vmatprep.subr.mxu0 %v1950
    %2160 = vmatpush1.msra.mxu0 %v1949
    %2161 = vmatprep.subr.mxu0 %v1952
    %2162 = vmatpush1.msra.mxu0 %v1951
    %2163 = vmatprep.subr.mxu0 %v1954
    %2164 = vmatpush1.msra.mxu0 %v1953
    %2165 = vmatprep.subr.mxu0 %v1956
    %2166 = vmatpush1.msra.mxu0 %v1955
    %2167 = vmatprep.subr.mxu0 %v1958
    %2168 = vmatpush1.msra.mxu0 %v1957
    %2169 = vmatprep.subr.mxu0 %v1960
    %2170 = vmatpush1.msra.mxu0 %v1959
    %2171 = vmatprep.subr.mxu0 %v1962
    %2172 = vmatpush1.msra.mxu0 %v1961
    %2173 = vmatprep.subr.mxu0 %v1964
    %2174 = vmatpush1.msra.mxu0 %v1963
    %2175 = vmatprep.subr.mxu0 %v1966
    %2176 = vmatpush1.msra.mxu0 %v1965
    %2177 = vmatprep.subr.mxu0 %v1968
    %2178 = vmatpush1.msra.mxu0 %v1967
    %2179 = vmatprep.subr.mxu0 %v1970
    %2180 = vmatpush1.msra.mxu0 %v1969
    %2181 = vmatprep.subr.mxu0 %v1972
    %2182 = vmatpush1.msra.mxu0 %v1971
    %2183 = vmatprep.subr.mxu0 %v1974
    %2184 = vmatpush1.msra.mxu0 %v1973
    %2185 = vmatprep.subr.mxu0 0.0
    %2186 = vmatpush1.msra.mxu0 0.0
    %2187 = vmatprep.subr.mxu0 0.0
    %2188 = vmatpush1.msra.mxu0 0.0
    %2189 = vmatprep.subr.mxu0 0.0
    %2190 = vmatpush1.msra.mxu0 0.0
    %2191 = vmatprep.subr.mxu0 0.0
    %2192 = vmatpush1.msra.mxu0 0.0
    %2193 = vmatprep.subr.mxu0 0.0
    %2194 = vmatpush1.msra.mxu0 0.0
    %2195 = vmatprep.subr.mxu0 0.0
    %2196 = vmatpush1.msra.mxu0 0.0
    %2197 = vmatprep.subr.mxu0 0.0
    %2198 = vmatpush1.msra.mxu0 0.0
    %2199 = vmatprep.subr.mxu0 0.0
    %2200 = vmatpush1.msra.mxu0 0.0
    %2201 = vmatprep.subr.mxu0 0.0
    %2202 = vmatpush1.msra.mxu0 0.0
    %2203 = vmatprep.subr.mxu0 0.0
    %2204 = vmatpush1.msra.mxu0 0.0
    %2205 = vmatprep.subr.mxu0 0.0
    %2206 = vmatpush1.msra.mxu0 0.0
    %2207 = vmatprep.subr.mxu0 0.0
    %2208 = vmatpush1.msra.mxu0 0.0
    %2209 = vmatprep.subr.mxu0 0.0
    %2210 = vmatpush1.msra.mxu0 0.0
    %2211 = vmatprep.subr.mxu0 0.0
    %2212 = vmatpush1.msra.mxu0 0.0
    %2213 = vmatprep.subr.mxu0 0.0
    %2214 = vmatpush1.msra.mxu0 0.0
    %2215 = vmatprep.subr.mxu0 0.0
    %2216 = vmatpush1.msra.mxu0 0.0
    %2217 = vmatprep.mubr.f32.mxu0 0.0
    %2218 = vmatmul.mubr.f32.gmra.mrb[0].mxu0 %v1900
    %v2219 = vpop.f32.mrb[0].mxu0
    %v2220 = vadd.f32 0.0, %v2219
    %v2221 = vpop.f32.mrb[0].mxu0
    %v2222 = vadd.f32 0.0, %v2221
    %2223 = vmatprep.mubr.f32.mxu0 0.0
    %2224 = vmatmul.mubr.f32.gmra.mrb[0].mxu0 %v1902
    %v2225 = vpop.f32.mrb[0].mxu0
    %v2226 = vadd.f32 0.0, %v2225
    %v2227 = vpop.f32.mrb[0].mxu0
    %v2228 = vadd.f32 0.0, %v2227
    %2229 = vmatprep.mubr.f32.mxu0 0.0
    %2230 = vmatmul.mubr.f32.gmra.mrb[0].mxu0 %v1904
    %v2231 = vpop.f32.mrb[0].mxu0
    %v2232 = vadd.f32 0.0, %v2231
    %v2233 = vpop.f32.mrb[0].mxu0
    %v2234 = vadd.f32 0.0, %v2233
    %2235 = vmatprep.mubr.f32.mxu0 0.0
    %2236 = vmatmul.mubr.f32.gmra.mrb[0].mxu0 %v1906
    %v2237 = vpop.f32.mrb[0].mxu0
    %v2238 = vadd.f32 0.0, %v2237
    %v2239 = vpop.f32.mrb[0].mxu0
    %v2240 = vadd.f32 0.0, %v2239
    %2241 = vdwg.mxu0
    %2242 = vmatprep.subr.mxu0 %v1911
    %2243 = vmatpush1.msra.mxu0 %v1910
    %2244 = vmatprep.subr.mxu0 %v1913
    %2245 = vmatpush1.msra.mxu0 %v1912
    %2246 = vmatprep.subr.mxu0 %v1915
    %2247 = vmatpush1.msra.mxu0 %v1914
    %2248 = vmatprep.subr.mxu0 %v1917
    %2249 = vmatpush1.msra.mxu0 %v1916
    %2250 = vmatprep.subr.mxu0 %v1919
    %2251 = vmatpush1.msra.mxu0 %v1918
    %2252 = vmatprep.subr.mxu0 %v1921
    %2253 = vmatpush1.msra.mxu0 %v1920
    %2254 = vmatprep.subr.mxu0 %v1923
    %2255 = vmatpush1.msra.mxu0 %v1922
    %2256 = vmatprep.subr.mxu0 %v1925
    %2257 = vmatpush1.msra.mxu0 %v1924
    %2258 = vmatprep.subr.mxu0 %v1927
    %2259 = vmatpush1.msra.mxu0 %v1926
    %2260 = vmatprep.subr.mxu0 %v1929
    %2261 = vmatpush1.msra.mxu0 %v1928
    %2262 = vmatprep.subr.mxu0 %v1931
    %2263 = vmatpush1.msra.mxu0 %v1930
    %2264 = vmatprep.subr.mxu0 %v1933
    %2265 = vmatpush1.msra.mxu0 %v1932
    %2266 = vmatprep.subr.mxu0 %v1935
    %2267 = vmatpush1.msra.mxu0 %v1934
    %2268 = vmatprep.subr.mxu0 %v1937
    %2269 = vmatpush1.msra.mxu0 %v1936
    %2270 = vmatprep.subr.mxu0 %v1939
    %2271 = vmatpush1.msra.mxu0 %v1938
    %2272 = vmatprep.subr.mxu0 %v1941
    %2273 = vmatpush1.msra.mxu0 %v1940
    %2274 = vmatprep.subr.mxu0 0.0
    %2275 = vmatpush1.msra.mxu0 0.0
    %2276 = vmatprep.subr.mxu0 0.0
    %2277 = vmatpush1.msra.mxu0 0.0
    %2278 = vmatprep.subr.mxu0 0.0
    %2279 = vmatpush1.msra.mxu0 0.0
    %2280 = vmatprep.subr.mxu0 0.0
    %2281 = vmatpush1.msra.mxu0 0.0
    %2282 = vmatprep.subr.mxu0 0.0
    %2283 = vmatpush1.msra.mxu0 0.0
    %2284 = vmatprep.subr.mxu0 0.0
    %2285 = vmatpush1.msra.mxu0 0.0
    %2286 = vmatprep.subr.mxu0 0.0
    %2287 = vmatpush1.msra.mxu0 0.0
    %2288 = vmatprep.subr.mxu0 0.0
    %2289 = vmatpush1.msra.mxu0 0.0
    %2290 = vmatprep.subr.mxu0 0.0
    %2291 = vmatpush1.msra.mxu0 0.0
    %2292 = vmatprep.subr.mxu0 0.0
    %2293 = vmatpush1.msra.mxu0 0.0
    %2294 = vmatprep.subr.mxu0 0.0
    %2295 = vmatpush1.msra.mxu0 0.0
    %2296 = vmatprep.subr.mxu0 0.0
    %2297 = vmatpush1.msra.mxu0 0.0
    %2298 = vmatprep.subr.mxu0 0.0
    %2299 = vmatpush1.msra.mxu0 0.0
    %2300 = vmatprep.subr.mxu0 0.0
    %2301 = vmatpush1.msra.mxu0 0.0
    %2302 = vmatprep.subr.mxu0 0.0
    %2303 = vmatpush1.msra.mxu0 0.0
    %2304 = vmatprep.subr.mxu0 0.0
    %2305 = vmatpush1.msra.mxu0 0.0
    %2306 = vmatprep.mubr.f32.mxu0 0.0
    %2307 = vmatmul.mubr.f32.gmra.mrb[0].mxu0 %v1899
    %v2308 = vpop.f32.mrb[0].mxu0
    %v2309 = vadd.f32 %v2220, %v2308
    %v2310 = vpop.f32.mrb[0].mxu0
    %v2311 = vadd.f32 %v2222, %v2310
    %2312 = vmatprep.mubr.f32.mxu0 0.0
    %2313 = vmatmul.mubr.f32.gmra.mrb[0].mxu0 %v1901
    %v2314 = vpop.f32.mrb[0].mxu0
    %v2315 = vadd.f32 %v2226, %v2314
    %v2316 = vpop.f32.mrb[0].mxu0
    %v2317 = vadd.f32 %v2228, %v2316
    %2318 = vmatprep.mubr.f32.mxu0 0.0
    %2319 = vmatmul.mubr.f32.gmra.mrb[0].mxu0 %v1903
    %v2320 = vpop.f32.mrb[0].mxu0
    %v2321 = vadd.f32 %v2232, %v2320
    %v2322 = vpop.f32.mrb[0].mxu0
    %v2323 = vadd.f32 %v2234, %v2322
    %2324 = vmatprep.mubr.f32.mxu0 0.0
    %2325 = vmatmul.mubr.f32.gmra.mrb[0].mxu0 %v1905
    %v2326 = vpop.f32.mrb[0].mxu0
    %v2327 = vadd.f32 %v2238, %v2326
    %v2328 = vpop.f32.mrb[0].mxu0
    %v2329 = vadd.f32 %v2240, %v2328
    %2330 = vdwg.mxu0
    %s2331 = scalar_lea.vmem [#allocation2], 512
    %v2332 = vld [vmem:[%s2331] sm:$0xff]
    %v2333 = vld [vmem:[%s2331 + $0x8] sm:$0xff]
    %v2334 = vld [vmem:[%s2331 + $0x10] sm:$0xff]
    %v2335 = vld [vmem:[%s2331 + $0x18] sm:$0xff]
    %v2336 = vld [vmem:[%s2331 + $0x20] sm:$0xff]
    %v2337 = vld [vmem:[%s2331 + $0x28] sm:$0xff]
    %v2338 = vld [vmem:[%s2331 + $0x30] sm:$0xff]
    %v2339 = vld [vmem:[%s2331 + $0x38] sm:$0xff]
    %v2340 = vld [vmem:[%s2331 + $0x40] sm:$0xff]
    %v2341 = vld [vmem:[%s2331 + $0x48] sm:$0xff]
    %v2342 = vld [vmem:[%s2331 + $0x50] sm:$0xff]
    %v2343 = vld [vmem:[%s2331 + $0x58] sm:$0xff]
    %v2344 = vld [vmem:[%s2331 + $0x60] sm:$0xff]
    %v2345 = vld [vmem:[%s2331 + $0x68] sm:$0xff]
    %v2346 = vld [vmem:[%s2331 + $0x70] sm:$0xff]
    %v2347 = vld [vmem:[%s2331 + $0x78] sm:$0xff]
    %v2348 = vld [vmem:[%s2331 + $0x80] sm:$0xff]
    %v2349 = vld [vmem:[%s2331 + $0x88] sm:$0xff]
    %v2350 = vld [vmem:[%s2331 + $0x90] sm:$0xff]
    %v2351 = vld [vmem:[%s2331 + $0x98] sm:$0xff]
    %v2352 = vld [vmem:[%s2331 + $0xa0] sm:$0xff]
    %v2353 = vld [vmem:[%s2331 + $0xa8] sm:$0xff]
    %v2354 = vld [vmem:[%s2331 + $0xb0] sm:$0xff]
    %v2355 = vld [vmem:[%s2331 + $0xb8] sm:$0xff]
    %v2356 = vld [vmem:[%s2331 + $0xc0] sm:$0xff]
    %v2357 = vld [vmem:[%s2331 + $0xc8] sm:$0xff]
    %v2358 = vld [vmem:[%s2331 + $0xd0] sm:$0xff]
    %v2359 = vld [vmem:[%s2331 + $0xd8] sm:$0xff]
    %v2360 = vld [vmem:[%s2331 + $0xe0] sm:$0xff]
    %v2361 = vld [vmem:[%s2331 + $0xe8] sm:$0xff]
    %v2362 = vld [vmem:[%s2331 + $0xf0] sm:$0xff]
    %v2363 = vld [vmem:[%s2331 + $0xf8] sm:$0xff]
    %2364 = vmatprep.subr.mxu0 %v2333
    %2365 = vmatpush1.msra.mxu0 %v2332
    %2366 = vmatprep.subr.mxu0 %v2335
    %2367 = vmatpush1.msra.mxu0 %v2334
    %2368 = vmatprep.subr.mxu0 %v2337
    %2369 = vmatpush1.msra.mxu0 %v2336
    %2370 = vmatprep.subr.mxu0 %v2339
    %2371 = vmatpush1.msra.mxu0 %v2338
    %2372 = vmatprep.subr.mxu0 %v2341
    %2373 = vmatpush1.msra.mxu0 %v2340
    %2374 = vmatprep.subr.mxu0 %v2343
    %2375 = vmatpush1.msra.mxu0 %v2342
    %2376 = vmatprep.subr.mxu0 %v2345
    %2377 = vmatpush1.msra.mxu0 %v2344
    %2378 = vmatprep.subr.mxu0 %v2347
    %2379 = vmatpush1.msra.mxu0 %v2346
    %2380 = vmatprep.subr.mxu0 %v2349
    %2381 = vmatpush1.msra.mxu0 %v2348
    %2382 = vmatprep.subr.mxu0 %v2351
    %2383 = vmatpush1.msra.mxu0 %v2350
    %2384 = vmatprep.subr.mxu0 %v2353
    %2385 = vmatpush1.msra.mxu0 %v2352
    %2386 = vmatprep.subr.mxu0 %v2355
    %2387 = vmatpush1.msra.mxu0 %v2354
    %2388 = vmatprep.subr.mxu0 %v2357
    %2389 = vmatpush1.msra.mxu0 %v2356
    %2390 = vmatprep.subr.mxu0 %v2359
    %2391 = vmatpush1.msra.mxu0 %v2358
    %2392 = vmatprep.subr.mxu0 %v2361
    %2393 = vmatpush1.msra.mxu0 %v2360
    %2394 = vmatprep.subr.mxu0 %v2363
    %2395 = vmatpush1.msra.mxu0 %v2362
    %2396 = vmatprep.subr.mxu0 0.0
    %2397 = vmatpush1.msra.mxu0 0.0
    %2398 = vmatprep.subr.mxu0 0.0
    %2399 = vmatpush1.msra.mxu0 0.0
    %2400 = vmatprep.subr.mxu0 0.0
    %2401 = vmatpush1.msra.mxu0 0.0
    %2402 = vmatprep.subr.mxu0 0.0
    %2403 = vmatpush1.msra.mxu0 0.0
    %2404 = vmatprep.subr.mxu0 0.0
    %2405 = vmatpush1.msra.mxu0 0.0
    %2406 = vmatprep.subr.mxu0 0.0
    %2407 = vmatpush1.msra.mxu0 0.0
    %2408 = vmatprep.subr.mxu0 0.0
    %2409 = vmatpush1.msra.mxu0 0.0
    %2410 = vmatprep.subr.mxu0 0.0
    %2411 = vmatpush1.msra.mxu0 0.0
    %2412 = vmatprep.subr.mxu0 0.0
    %2413 = vmatpush1.msra.mxu0 0.0
    %2414 = vmatprep.subr.mxu0 0.0
    %2415 = vmatpush1.msra.mxu0 0.0
    %2416 = vmatprep.subr.mxu0 0.0
    %2417 = vmatpush1.msra.mxu0 0.0
    %2418 = vmatprep.subr.mxu0 0.0
    %2419 = vmatpush1.msra.mxu0 0.0
    %2420 = vmatprep.subr.mxu0 0.0
    %2421 = vmatpush1.msra.mxu0 0.0
    %2422 = vmatprep.subr.mxu0 0.0
    %2423 = vmatpush1.msra.mxu0 0.0
    %2424 = vmatprep.subr.mxu0 0.0
    %2425 = vmatpush1.msra.mxu0 0.0
    %2426 = vmatprep.subr.mxu0 0.0
    %2427 = vmatpush1.msra.mxu0 0.0
    %2428 = vmatprep.mubr.f32.mxu0 0.0
    %2429 = vmatmul.mubr.f32.gmra.mrb[0].mxu0 %v1900
    %v2430 = vpop.f32.mrb[0].mxu0
    %v2431 = vadd.f32 0.0, %v2430
    %v2432 = vpop.f32.mrb[0].mxu0
    %v2433 = vadd.f32 0.0, %v2432
    %2434 = vmatprep.mubr.f32.mxu0 0.0
    %2435 = vmatmul.mubr.f32.gmra.mrb[0].mxu0 %v1902
    %v2436 = vpop.f32.mrb[0].mxu0
    %v2437 = vadd.f32 0.0, %v2436
    %v2438 = vpop.f32.mrb[0].mxu0
    %v2439 = vadd.f32 0.0, %v2438
    %2440 = vmatprep.mubr.f32.mxu0 0.0
    %2441 = vmatmul.mubr.f32.gmra.mrb[0].mxu0 %v1904
    %v2442 = vpop.f32.mrb[0].mxu0
    %v2443 = vadd.f32 0.0, %v2442
    %v2444 = vpop.f32.mrb[0].mxu0
    %v2445 = vadd.f32 0.0, %v2444
    %2446 = vmatprep.mubr.f32.mxu0 0.0
    %2447 = vmatmul.mubr.f32.gmra.mrb[0].mxu0 %v1906
    %v2448 = vpop.f32.mrb[0].mxu0
    %v2449 = vadd.f32 0.0, %v2448
    %v2450 = vpop.f32.mrb[0].mxu0
    %v2451 = vadd.f32 0.0, %v2450
    %2452 = vdwg.mxu0
    %v2453 = vadd.f32 %v2131, %v2431
    %v2454 = vadd.f32 %v2133, %v2433
    %v2455 = vadd.f32 %v2137, %v2437
    %v2456 = vadd.f32 %v2139, %v2439
    %v2457 = vadd.f32 %v2143, %v2443
    %v2458 = vadd.f32 %v2145, %v2445
    %v2459 = vadd.f32 %v2149, %v2449
    %v2460 = vadd.f32 %v2151, %v2451
    %2461 = vmatprep.subr.mxu0 %v2333
    %2462 = vmatpush1.msra.mxu0 %v2332
    %2463 = vmatprep.subr.mxu0 %v2335
    %2464 = vmatpush1.msra.mxu0 %v2334
    %2465 = vmatprep.subr.mxu0 %v2337
    %2466 = vmatpush1.msra.mxu0 %v2336
    %2467 = vmatprep.subr.mxu0 %v2339
    %2468 = vmatpush1.msra.mxu0 %v2338
    %2469 = vmatprep.subr.mxu0 %v2341
    %2470 = vmatpush1.msra.mxu0 %v2340
    %2471 = vmatprep.subr.mxu0 %v2343
    %2472 = vmatpush1.msra.mxu0 %v2342
    %2473 = vmatprep.subr.mxu0 %v2345
    %2474 = vmatpush1.msra.mxu0 %v2344
    %2475 = vmatprep.subr.mxu0 %v2347
    %2476 = vmatpush1.msra.mxu0 %v2346
    %2477 = vmatprep.subr.mxu0 %v2349
    %2478 = vmatpush1.msra.mxu0 %v2348
    %2479 = vmatprep.subr.mxu0 %v2351
    %2480 = vmatpush1.msra.mxu0 %v2350
    %2481 = vmatprep.subr.mxu0 %v2353
    %2482 = vmatpush1.msra.mxu0 %v2352
    %2483 = vmatprep.subr.mxu0 %v2355
    %2484 = vmatpush1.msra.mxu0 %v2354
    %2485 = vmatprep.subr.mxu0 %v2357
    %2486 = vmatpush1.msra.mxu0 %v2356
    %2487 = vmatprep.subr.mxu0 %v2359
    %2488 = vmatpush1.msra.mxu0 %v2358
    %2489 = vmatprep.subr.mxu0 %v2361
    %2490 = vmatpush1.msra.mxu0 %v2360
    %2491 = vmatprep.subr.mxu0 %v2363
    %2492 = vmatpush1.msra.mxu0 %v2362
    %2493 = vmatprep.subr.mxu0 0.0
    %2494 = vmatpush1.msra.mxu0 0.0
    %2495 = vmatprep.subr.mxu0 0.0
    %2496 = vmatpush1.msra.mxu0 0.0
    %2497 = vmatprep.subr.mxu0 0.0
    %2498 = vmatpush1.msra.mxu0 0.0
    %2499 = vmatprep.subr.mxu0 0.0
    %2500 = vmatpush1.msra.mxu0 0.0
    %2501 = vmatprep.subr.mxu0 0.0
    %2502 = vmatpush1.msra.mxu0 0.0
    %2503 = vmatprep.subr.mxu0 0.0
    %2504 = vmatpush1.msra.mxu0 0.0
    %2505 = vmatprep.subr.mxu0 0.0
    %2506 = vmatpush1.msra.mxu0 0.0
    %2507 = vmatprep.subr.mxu0 0.0
    %2508 = vmatpush1.msra.mxu0 0.0
    %2509 = vmatprep.subr.mxu0 0.0
    %2510 = vmatpush1.msra.mxu0 0.0
    %2511 = vmatprep.subr.mxu0 0.0
    %2512 = vmatpush1.msra.mxu0 0.0
    %2513 = vmatprep.subr.mxu0 0.0
    %2514 = vmatpush1.msra.mxu0 0.0
    %2515 = vmatprep.subr.mxu0 0.0
    %2516 = vmatpush1.msra.mxu0 0.0
    %2517 = vmatprep.subr.mxu0 0.0
    %2518 = vmatpush1.msra.mxu0 0.0
    %2519 = vmatprep.subr.mxu0 0.0
    %2520 = vmatpush1.msra.mxu0 0.0
    %2521 = vmatprep.subr.mxu0 0.0
    %2522 = vmatpush1.msra.mxu0 0.0
    %2523 = vmatprep.subr.mxu0 0.0
    %2524 = vmatpush1.msra.mxu0 0.0
    %2525 = vmatprep.mubr.f32.mxu0 0.0
    %2526 = vmatmul.mubr.f32.gmra.mrb[0].mxu0 %v1901
    %v2527 = vpop.f32.mrb[0].mxu0
    %v2528 = vadd.f32 0.0, %v2527
    %v2529 = vpop.f32.mrb[0].mxu0
    %v2530 = vadd.f32 0.0, %v2529
    %2531 = vmatprep.mubr.f32.mxu0 0.0
    %2532 = vmatmul.mubr.f32.gmra.mrb[0].mxu0 %v1903
    %v2533 = vpop.f32.mrb[0].mxu0
    %v2534 = vadd.f32 0.0, %v2533
    %v2535 = vpop.f32.mrb[0].mxu0
    %v2536 = vadd.f32 0.0, %v2535
    %2537 = vmatprep.mubr.f32.mxu0 0.0
    %2538 = vmatmul.mubr.f32.gmra.mrb[0].mxu0 %v1905
    %v2539 = vpop.f32.mrb[0].mxu0
    %v2540 = vadd.f32 0.0, %v2539
    %v2541 = vpop.f32.mrb[0].mxu0
    %v2542 = vadd.f32 0.0, %v2541
    %2543 = vmatprep.mubr.f32.mxu0 0.0
    %2544 = vmatmul.mubr.f32.gmra.mrb[0].mxu0 %v1907
    %v2545 = vpop.f32.mrb[0].mxu0
    %v2546 = vadd.f32 0.0, %v2545
    %v2547 = vpop.f32.mrb[0].mxu0
    %v2548 = vadd.f32 0.0, %v2547
    %2549 = vdwg.mxu0
    %v2550 = vadd.f32 %v2309, %v2528
    %v2551 = vadd.f32 %v2311, %v2530
    %v2552 = vadd.f32 %v2315, %v2534
    %v2553 = vadd.f32 %v2317, %v2536
    %v2554 = vadd.f32 %v2321, %v2540
    %v2555 = vadd.f32 %v2323, %v2542
    %v2556 = vadd.f32 %v2327, %v2546
    %v2557 = vadd.f32 %v2329, %v2548
    %s2558 = scalar_lea.vmem [#allocation2], 768
    %v2559 = vld [vmem:[%s2558] sm:$0xff]
    %v2560 = vld [vmem:[%s2558 + $0x8] sm:$0xff]
    %v2561 = vld [vmem:[%s2558 + $0x10] sm:$0xff]
    %v2562 = vld [vmem:[%s2558 + $0x18] sm:$0xff]
    %v2563 = vld [vmem:[%s2558 + $0x20] sm:$0xff]
    %v2564 = vld [vmem:[%s2558 + $0x28] sm:$0xff]
    %v2565 = vld [vmem:[%s2558 + $0x30] sm:$0xff]
    %v2566 = vld [vmem:[%s2558 + $0x38] sm:$0xff]
    %v2567 = vld [vmem:[%s2558 + $0x40] sm:$0xff]
    %v2568 = vld [vmem:[%s2558 + $0x48] sm:$0xff]
    %v2569 = vld [vmem:[%s2558 + $0x50] sm:$0xff]
    %v2570 = vld [vmem:[%s2558 + $0x58] sm:$0xff]
    %v2571 = vld [vmem:[%s2558 + $0x60] sm:$0xff]
    %v2572 = vld [vmem:[%s2558 + $0x68] sm:$0xff]
    %v2573 = vld [vmem:[%s2558 + $0x70] sm:$0xff]
    %v2574 = vld [vmem:[%s2558 + $0x78] sm:$0xff]
    %v2575 = vld [vmem:[%s2558 + $0x80] sm:$0xff]
    %v2576 = vld [vmem:[%s2558 + $0x88] sm:$0xff]
    %v2577 = vld [vmem:[%s2558 + $0x90] sm:$0xff]
    %v2578 = vld [vmem:[%s2558 + $0x98] sm:$0xff]
    %v2579 = vld [vmem:[%s2558 + $0xa0] sm:$0xff]
    %v2580 = vld [vmem:[%s2558 + $0xa8] sm:$0xff]
    %v2581 = vld [vmem:[%s2558 + $0xb0] sm:$0xff]
    %v2582 = vld [vmem:[%s2558 + $0xb8] sm:$0xff]
    %v2583 = vld [vmem:[%s2558 + $0xc0] sm:$0xff]
    %v2584 = vld [vmem:[%s2558 + $0xc8] sm:$0xff]
    %v2585 = vld [vmem:[%s2558 + $0xd0] sm:$0xff]
    %v2586 = vld [vmem:[%s2558 + $0xd8] sm:$0xff]
    %v2587 = vld [vmem:[%s2558 + $0xe0] sm:$0xff]
    %v2588 = vld [vmem:[%s2558 + $0xe8] sm:$0xff]
    %v2589 = vld [vmem:[%s2558 + $0xf0] sm:$0xff]
    %v2590 = vld [vmem:[%s2558 + $0xf8] sm:$0xff]
    %2591 = vmatprep.subr.mxu0 %v2560
    %2592 = vmatpush1.msra.mxu0 %v2559
    %2593 = vmatprep.subr.mxu0 %v2562
    %2594 = vmatpush1.msra.mxu0 %v2561
    %2595 = vmatprep.subr.mxu0 %v2564
    %2596 = vmatpush1.msra.mxu0 %v2563
    %2597 = vmatprep.subr.mxu0 %v2566
    %2598 = vmatpush1.msra.mxu0 %v2565
    %2599 = vmatprep.subr.mxu0 %v2568
    %2600 = vmatpush1.msra.mxu0 %v2567
    %2601 = vmatprep.subr.mxu0 %v2570
    %2602 = vmatpush1.msra.mxu0 %v2569
    %2603 = vmatprep.subr.mxu0 %v2572
    %2604 = vmatpush1.msra.mxu0 %v2571
    %2605 = vmatprep.subr.mxu0 %v2574
    %2606 = vmatpush1.msra.mxu0 %v2573
    %2607 = vmatprep.subr.mxu0 %v2576
    %2608 = vmatpush1.msra.mxu0 %v2575
    %2609 = vmatprep.subr.mxu0 %v2578
    %2610 = vmatpush1.msra.mxu0 %v2577
    %2611 = vmatprep.subr.mxu0 %v2580
    %2612 = vmatpush1.msra.mxu0 %v2579
    %2613 = vmatprep.subr.mxu0 %v2582
    %2614 = vmatpush1.msra.mxu0 %v2581
    %2615 = vmatprep.subr.mxu0 %v2584
    %2616 = vmatpush1.msra.mxu0 %v2583
    %2617 = vmatprep.subr.mxu0 %v2586
    %2618 = vmatpush1.msra.mxu0 %v2585
    %2619 = vmatprep.subr.mxu0 %v2588
    %2620 = vmatpush1.msra.mxu0 %v2587
    %2621 = vmatprep.subr.mxu0 %v2590
    %2622 = vmatpush1.msra.mxu0 %v2589
    %2623 = vmatprep.subr.mxu0 0.0
    %2624 = vmatpush1.msra.mxu0 0.0
    %2625 = vmatprep.subr.mxu0 0.0
    %2626 = vmatpush1.msra.mxu0 0.0
    %2627 = vmatprep.subr.mxu0 0.0
    %2628 = vmatpush1.msra.mxu0 0.0
    %2629 = vmatprep.subr.mxu0 0.0
    %2630 = vmatpush1.msra.mxu0 0.0
    %2631 = vmatprep.subr.mxu0 0.0
    %2632 = vmatpush1.msra.mxu0 0.0
    %2633 = vmatprep.subr.mxu0 0.0
    %2634 = vmatpush1.msra.mxu0 0.0
    %2635 = vmatprep.subr.mxu0 0.0
    %2636 = vmatpush1.msra.mxu0 0.0
    %2637 = vmatprep.subr.mxu0 0.0
    %2638 = vmatpush1.msra.mxu0 0.0
    %2639 = vmatprep.subr.mxu0 0.0
    %2640 = vmatpush1.msra.mxu0 0.0
    %2641 = vmatprep.subr.mxu0 0.0
    %2642 = vmatpush1.msra.mxu0 0.0
    %2643 = vmatprep.subr.mxu0 0.0
    %2644 = vmatpush1.msra.mxu0 0.0
    %2645 = vmatprep.subr.mxu0 0.0
    %2646 = vmatpush1.msra.mxu0 0.0
    %2647 = vmatprep.subr.mxu0 0.0
    %2648 = vmatpush1.msra.mxu0 0.0
    %2649 = vmatprep.subr.mxu0 0.0
    %2650 = vmatpush1.msra.mxu0 0.0
    %2651 = vmatprep.subr.mxu0 0.0
    %2652 = vmatpush1.msra.mxu0 0.0
    %2653 = vmatprep.subr.mxu0 0.0
    %2654 = vmatpush1.msra.mxu0 0.0
    %2655 = vmatprep.mubr.f32.mxu0 0.0
    %2656 = vmatmul.mubr.f32.gmra.mrb[0].mxu0 %v1901
    %v2657 = vpop.f32.mrb[0].mxu0
    %v2658 = vadd.f32 0.0, %v2657
    %v2659 = vpop.f32.mrb[0].mxu0
    %v2660 = vadd.f32 0.0, %v2659
    %2661 = vmatprep.mubr.f32.mxu0 0.0
    %2662 = vmatmul.mubr.f32.gmra.mrb[0].mxu0 %v1903
    %v2663 = vpop.f32.mrb[0].mxu0
    %v2664 = vadd.f32 0.0, %v2663
    %v2665 = vpop.f32.mrb[0].mxu0
    %v2666 = vadd.f32 0.0, %v2665
    %2667 = vmatprep.mubr.f32.mxu0 0.0
    %2668 = vmatmul.mubr.f32.gmra.mrb[0].mxu0 %v1905
    %v2669 = vpop.f32.mrb[0].mxu0
    %v2670 = vadd.f32 0.0, %v2669
    %v2671 = vpop.f32.mrb[0].mxu0
    %v2672 = vadd.f32 0.0, %v2671
    %2673 = vmatprep.mubr.f32.mxu0 0.0
    %2674 = vmatmul.mubr.f32.gmra.mrb[0].mxu0 %v1907
    %v2675 = vpop.f32.mrb[0].mxu0
    %v2676 = vadd.f32 0.0, %v2675
    %v2677 = vpop.f32.mrb[0].mxu0
    %v2678 = vadd.f32 0.0, %v2677
    %2679 = vdwg.mxu0
    %v2680 = vadd.f32 %v2453, %v2658
    %v2681 = vadd.f32 %v2454, %v2660
    %v2682 = vadd.f32 %v2455, %v2664
    %v2683 = vadd.f32 %v2456, %v2666
    %v2684 = vadd.f32 %v2457, %v2670
    %v2685 = vadd.f32 %v2458, %v2672
    %v2686 = vadd.f32 %v2459, %v2676
    %v2687 = vadd.f32 %v2460, %v2678
    %2688 = vmatprep.subr.mxu0 %v2560
    %2689 = vmatpush1.msra.mxu0 %v2559
    %2690 = vmatprep.subr.mxu0 %v2562
    %2691 = vmatpush1.msra.mxu0 %v2561
    %2692 = vmatprep.subr.mxu0 %v2564
    %2693 = vmatpush1.msra.mxu0 %v2563
    %2694 = vmatprep.subr.mxu0 %v2566
    %2695 = vmatpush1.msra.mxu0 %v2565
    %2696 = vmatprep.subr.mxu0 %v2568
    %2697 = vmatpush1.msra.mxu0 %v2567
    %2698 = vmatprep.subr.mxu0 %v2570
    %2699 = vmatpush1.msra.mxu0 %v2569
    %2700 = vmatprep.subr.mxu0 %v2572
    %2701 = vmatpush1.msra.mxu0 %v2571
    %2702 = vmatprep.subr.mxu0 %v2574
    %2703 = vmatpush1.msra.mxu0 %v2573
    %2704 = vmatprep.subr.mxu0 %v2576
    %2705 = vmatpush1.msra.mxu0 %v2575
    %2706 = vmatprep.subr.mxu0 %v2578
    %2707 = vmatpush1.msra.mxu0 %v2577
    %2708 = vmatprep.subr.mxu0 %v2580
    %2709 = vmatpush1.msra.mxu0 %v2579
    %2710 = vmatprep.subr.mxu0 %v2582
    %2711 = vmatpush1.msra.mxu0 %v2581
    %2712 = vmatprep.subr.mxu0 %v2584
    %2713 = vmatpush1.msra.mxu0 %v2583
    %2714 = vmatprep.subr.mxu0 %v2586
    %2715 = vmatpush1.msra.mxu0 %v2585
    %2716 = vmatprep.subr.mxu0 %v2588
    %2717 = vmatpush1.msra.mxu0 %v2587
    %2718 = vmatprep.subr.mxu0 %v2590
    %2719 = vmatpush1.msra.mxu0 %v2589
    %2720 = vmatprep.subr.mxu0 0.0
    %2721 = vmatpush1.msra.mxu0 0.0
    %2722 = vmatprep.subr.mxu0 0.0
    %2723 = vmatpush1.msra.mxu0 0.0
    %2724 = vmatprep.subr.mxu0 0.0
    %2725 = vmatpush1.msra.mxu0 0.0
    %2726 = vmatprep.subr.mxu0 0.0
    %2727 = vmatpush1.msra.mxu0 0.0
    %2728 = vmatprep.subr.mxu0 0.0
    %2729 = vmatpush1.msra.mxu0 0.0
    %2730 = vmatprep.subr.mxu0 0.0
    %2731 = vmatpush1.msra.mxu0 0.0
    %2732 = vmatprep.subr.mxu0 0.0
    %2733 = vmatpush1.msra.mxu0 0.0
    %2734 = vmatprep.subr.mxu0 0.0
    %2735 = vmatpush1.msra.mxu0 0.0
    %2736 = vmatprep.subr.mxu0 0.0
    %2737 = vmatpush1.msra.mxu0 0.0
    %2738 = vmatprep.subr.mxu0 0.0
    %2739 = vmatpush1.msra.mxu0 0.0
    %2740 = vmatprep.subr.mxu0 0.0
    %2741 = vmatpush1.msra.mxu0 0.0
    %2742 = vmatprep.subr.mxu0 0.0
    %2743 = vmatpush1.msra.mxu0 0.0
    %2744 = vmatprep.subr.mxu0 0.0
    %2745 = vmatpush1.msra.mxu0 0.0
    %2746 = vmatprep.subr.mxu0 0.0
    %2747 = vmatpush1.msra.mxu0 0.0
    %2748 = vmatprep.subr.mxu0 0.0
    %2749 = vmatpush1.msra.mxu0 0.0
    %2750 = vmatprep.subr.mxu0 0.0
    %2751 = vmatpush1.msra.mxu0 0.0
    %2752 = vmatprep.mubr.f32.mxu0 0.0
    %2753 = vmatmul.mubr.f32.gmra.mrb[0].mxu0 %v1902
    %v2754 = vpop.f32.mrb[0].mxu0
    %v2755 = vadd.f32 0.0, %v2754
    %v2756 = vpop.f32.mrb[0].mxu0
    %v2757 = vadd.f32 0.0, %v2756
    %2758 = vmatprep.mubr.f32.mxu0 0.0
    %2759 = vmatmul.mubr.f32.gmra.mrb[0].mxu0 %v1904
    %v2760 = vpop.f32.mrb[0].mxu0
    %v2761 = vadd.f32 0.0, %v2760
    %v2762 = vpop.f32.mrb[0].mxu0
    %v2763 = vadd.f32 0.0, %v2762
    %2764 = vmatprep.mubr.f32.mxu0 0.0
    %2765 = vmatmul.mubr.f32.gmra.mrb[0].mxu0 %v1906
    %v2766 = vpop.f32.mrb[0].mxu0
    %v2767 = vadd.f32 0.0, %v2766
    %v2768 = vpop.f32.mrb[0].mxu0
    %v2769 = vadd.f32 0.0, %v2768
    %2770 = vmatprep.mubr.f32.mxu0 0.0
    %2771 = vmatmul.mubr.f32.gmra.mrb[0].mxu0 %v1908
    %v2772 = vpop.f32.mrb[0].mxu0
    %v2773 = vadd.f32 0.0, %v2772
    %v2774 = vpop.f32.mrb[0].mxu0
    %v2775 = vadd.f32 0.0, %v2774
    %2776 = vdwg.mxu0
    %v2777 = vadd.f32 %v2550, %v2755
    %v2778 = vadd.f32 %v2551, %v2757
    %v2779 = vadd.f32 %v2552, %v2761
    %v2780 = vadd.f32 %v2553, %v2763
    %v2781 = vadd.f32 %v2554, %v2767
    %v2782 = vadd.f32 %v2555, %v2769
    %v2783 = vadd.f32 %v2556, %v2773
    %v2784 = vadd.f32 %v2557, %v2775
    %s2785 = scalar_lea.vmem [#allocation2], 1024
    %v2786 = vld [vmem:[%s2785] sm:$0xff]
    %v2787 = vld [vmem:[%s2785 + $0x8] sm:$0xff]
    %v2788 = vld [vmem:[%s2785 + $0x10] sm:$0xff]
    %v2789 = vld [vmem:[%s2785 + $0x18] sm:$0xff]
    %v2790 = vld [vmem:[%s2785 + $0x20] sm:$0xff]
    %v2791 = vld [vmem:[%s2785 + $0x28] sm:$0xff]
    %v2792 = vld [vmem:[%s2785 + $0x30] sm:$0xff]
    %v2793 = vld [vmem:[%s2785 + $0x38] sm:$0xff]
    %v2794 = vld [vmem:[%s2785 + $0x40] sm:$0xff]
    %v2795 = vld [vmem:[%s2785 + $0x48] sm:$0xff]
    %v2796 = vld [vmem:[%s2785 + $0x50] sm:$0xff]
    %v2797 = vld [vmem:[%s2785 + $0x58] sm:$0xff]
    %v2798 = vld [vmem:[%s2785 + $0x60] sm:$0xff]
    %v2799 = vld [vmem:[%s2785 + $0x68] sm:$0xff]
    %v2800 = vld [vmem:[%s2785 + $0x70] sm:$0xff]
    %v2801 = vld [vmem:[%s2785 + $0x78] sm:$0xff]
    %v2802 = vld [vmem:[%s2785 + $0x80] sm:$0xff]
    %v2803 = vld [vmem:[%s2785 + $0x88] sm:$0xff]
    %v2804 = vld [vmem:[%s2785 + $0x90] sm:$0xff]
    %v2805 = vld [vmem:[%s2785 + $0x98] sm:$0xff]
    %v2806 = vld [vmem:[%s2785 + $0xa0] sm:$0xff]
    %v2807 = vld [vmem:[%s2785 + $0xa8] sm:$0xff]
    %v2808 = vld [vmem:[%s2785 + $0xb0] sm:$0xff]
    %v2809 = vld [vmem:[%s2785 + $0xb8] sm:$0xff]
    %v2810 = vld [vmem:[%s2785 + $0xc0] sm:$0xff]
    %v2811 = vld [vmem:[%s2785 + $0xc8] sm:$0xff]
    %v2812 = vld [vmem:[%s2785 + $0xd0] sm:$0xff]
    %v2813 = vld [vmem:[%s2785 + $0xd8] sm:$0xff]
    %v2814 = vld [vmem:[%s2785 + $0xe0] sm:$0xff]
    %v2815 = vld [vmem:[%s2785 + $0xe8] sm:$0xff]
    %v2816 = vld [vmem:[%s2785 + $0xf0] sm:$0xff]
    %v2817 = vld [vmem:[%s2785 + $0xf8] sm:$0xff]
    %2818 = vmatprep.subr.mxu0 %v2787
    %2819 = vmatpush1.msra.mxu0 %v2786
    %2820 = vmatprep.subr.mxu0 %v2789
    %2821 = vmatpush1.msra.mxu0 %v2788
    %2822 = vmatprep.subr.mxu0 %v2791
    %2823 = vmatpush1.msra.mxu0 %v2790
    %2824 = vmatprep.subr.mxu0 %v2793
    %2825 = vmatpush1.msra.mxu0 %v2792
    %2826 = vmatprep.subr.mxu0 %v2795
    %2827 = vmatpush1.msra.mxu0 %v2794
    %2828 = vmatprep.subr.mxu0 %v2797
    %2829 = vmatpush1.msra.mxu0 %v2796
    %2830 = vmatprep.subr.mxu0 %v2799
    %2831 = vmatpush1.msra.mxu0 %v2798
    %2832 = vmatprep.subr.mxu0 %v2801
    %2833 = vmatpush1.msra.mxu0 %v2800
    %2834 = vmatprep.subr.mxu0 %v2803
    %2835 = vmatpush1.msra.mxu0 %v2802
    %2836 = vmatprep.subr.mxu0 %v2805
    %2837 = vmatpush1.msra.mxu0 %v2804
    %2838 = vmatprep.subr.mxu0 %v2807
    %2839 = vmatpush1.msra.mxu0 %v2806
    %2840 = vmatprep.subr.mxu0 %v2809
    %2841 = vmatpush1.msra.mxu0 %v2808
    %2842 = vmatprep.subr.mxu0 %v2811
    %2843 = vmatpush1.msra.mxu0 %v2810
    %2844 = vmatprep.subr.mxu0 %v2813
    %2845 = vmatpush1.msra.mxu0 %v2812
    %2846 = vmatprep.subr.mxu0 %v2815
    %2847 = vmatpush1.msra.mxu0 %v2814
    %2848 = vmatprep.subr.mxu0 %v2817
    %2849 = vmatpush1.msra.mxu0 %v2816
    %2850 = vmatprep.subr.mxu0 0.0
    %2851 = vmatpush1.msra.mxu0 0.0
    %2852 = vmatprep.subr.mxu0 0.0
    %2853 = vmatpush1.msra.mxu0 0.0
    %2854 = vmatprep.subr.mxu0 0.0
    %2855 = vmatpush1.msra.mxu0 0.0
    %2856 = vmatprep.subr.mxu0 0.0
    %2857 = vmatpush1.msra.mxu0 0.0
    %2858 = vmatprep.subr.mxu0 0.0
    %2859 = vmatpush1.msra.mxu0 0.0
    %2860 = vmatprep.subr.mxu0 0.0
    %2861 = vmatpush1.msra.mxu0 0.0
    %2862 = vmatprep.subr.mxu0 0.0
    %2863 = vmatpush1.msra.mxu0 0.0
    %2864 = vmatprep.subr.mxu0 0.0
    %2865 = vmatpush1.msra.mxu0 0.0
    %2866 = vmatprep.subr.mxu0 0.0
    %2867 = vmatpush1.msra.mxu0 0.0
    %2868 = vmatprep.subr.mxu0 0.0
    %2869 = vmatpush1.msra.mxu0 0.0
    %2870 = vmatprep.subr.mxu0 0.0
    %2871 = vmatpush1.msra.mxu0 0.0
    %2872 = vmatprep.subr.mxu0 0.0
    %2873 = vmatpush1.msra.mxu0 0.0
    %2874 = vmatprep.subr.mxu0 0.0
    %2875 = vmatpush1.msra.mxu0 0.0
    %2876 = vmatprep.subr.mxu0 0.0
    %2877 = vmatpush1.msra.mxu0 0.0
    %2878 = vmatprep.subr.mxu0 0.0
    %2879 = vmatpush1.msra.mxu0 0.0
    %2880 = vmatprep.subr.mxu0 0.0
    %2881 = vmatpush1.msra.mxu0 0.0
    %2882 = vmatprep.mubr.f32.mxu0 0.0
    %2883 = vmatmul.mubr.f32.gmra.mrb[0].mxu0 %v1902
    %v2884 = vpop.f32.mrb[0].mxu0
    %v2885 = vadd.f32 0.0, %v2884
    %v2886 = vpop.f32.mrb[0].mxu0
    %v2887 = vadd.f32 0.0, %v2886
    %2888 = vmatprep.mubr.f32.mxu0 0.0
    %2889 = vmatmul.mubr.f32.gmra.mrb[0].mxu0 %v1904
    %v2890 = vpop.f32.mrb[0].mxu0
    %v2891 = vadd.f32 0.0, %v2890
    %v2892 = vpop.f32.mrb[0].mxu0
    %v2893 = vadd.f32 0.0, %v2892
    %2894 = vmatprep.mubr.f32.mxu0 0.0
    %2895 = vmatmul.mubr.f32.gmra.mrb[0].mxu0 %v1906
    %v2896 = vpop.f32.mrb[0].mxu0
    %v2897 = vadd.f32 0.0, %v2896
    %v2898 = vpop.f32.mrb[0].mxu0
    %v2899 = vadd.f32 0.0, %v2898
    %2900 = vmatprep.mubr.f32.mxu0 0.0
    %2901 = vmatmul.mubr.f32.gmra.mrb[0].mxu0 %v1908
    %v2902 = vpop.f32.mrb[0].mxu0
    %v2903 = vadd.f32 0.0, %v2902
    %v2904 = vpop.f32.mrb[0].mxu0
    %v2905 = vadd.f32 0.0, %v2904
    %2906 = vdwg.mxu0
    %v2907 = vadd.f32 %v2680, %v2885
    %v2908 = vadd.f32 %v2681, %v2887
    %v2909 = vadd.f32 %v2682, %v2891
    %v2910 = vadd.f32 %v2683, %v2893
    %v2911 = vadd.f32 %v2684, %v2897
    %v2912 = vadd.f32 %v2685, %v2899
    %v2913 = vadd.f32 %v2686, %v2903
    %v2914 = vadd.f32 %v2687, %v2905
    %2915 = vmatprep.subr.mxu0 %v2787
    %2916 = vmatpush1.msra.mxu0 %v2786
    %2917 = vmatprep.subr.mxu0 %v2789
    %2918 = vmatpush1.msra.mxu0 %v2788
    %2919 = vmatprep.subr.mxu0 %v2791
    %2920 = vmatpush1.msra.mxu0 %v2790
    %2921 = vmatprep.subr.mxu0 %v2793
    %2922 = vmatpush1.msra.mxu0 %v2792
    %2923 = vmatprep.subr.mxu0 %v2795
    %2924 = vmatpush1.msra.mxu0 %v2794
    %2925 = vmatprep.subr.mxu0 %v2797
    %2926 = vmatpush1.msra.mxu0 %v2796
    %2927 = vmatprep.subr.mxu0 %v2799
    %2928 = vmatpush1.msra.mxu0 %v2798
    %2929 = vmatprep.subr.mxu0 %v2801
    %2930 = vmatpush1.msra.mxu0 %v2800
    %2931 = vmatprep.subr.mxu0 %v2803
    %2932 = vmatpush1.msra.mxu0 %v2802
    %2933 = vmatprep.subr.mxu0 %v2805
    %2934 = vmatpush1.msra.mxu0 %v2804
    %2935 = vmatprep.subr.mxu0 %v2807
    %2936 = vmatpush1.msra.mxu0 %v2806
    %2937 = vmatprep.subr.mxu0 %v2809
    %2938 = vmatpush1.msra.mxu0 %v2808
    %2939 = vmatprep.subr.mxu0 %v2811
    %2940 = vmatpush1.msra.mxu0 %v2810
    %2941 = vmatprep.subr.mxu0 %v2813
    %2942 = vmatpush1.msra.mxu0 %v2812
    %2943 = vmatprep.subr.mxu0 %v2815
    %2944 = vmatpush1.msra.mxu0 %v2814
    %2945 = vmatprep.subr.mxu0 %v2817
    %2946 = vmatpush1.msra.mxu0 %v2816
    %2947 = vmatprep.subr.mxu0 0.0
    %2948 = vmatpush1.msra.mxu0 0.0
    %2949 = vmatprep.subr.mxu0 0.0
    %2950 = vmatpush1.msra.mxu0 0.0
    %2951 = vmatprep.subr.mxu0 0.0
    %2952 = vmatpush1.msra.mxu0 0.0
    %2953 = vmatprep.subr.mxu0 0.0
    %2954 = vmatpush1.msra.mxu0 0.0
    %2955 = vmatprep.subr.mxu0 0.0
    %2956 = vmatpush1.msra.mxu0 0.0
    %2957 = vmatprep.subr.mxu0 0.0
    %2958 = vmatpush1.msra.mxu0 0.0
    %2959 = vmatprep.subr.mxu0 0.0
    %2960 = vmatpush1.msra.mxu0 0.0
    %2961 = vmatprep.subr.mxu0 0.0
    %2962 = vmatpush1.msra.mxu0 0.0
    %2963 = vmatprep.subr.mxu0 0.0
    %2964 = vmatpush1.msra.mxu0 0.0
    %2965 = vmatprep.subr.mxu0 0.0
    %2966 = vmatpush1.msra.mxu0 0.0
    %2967 = vmatprep.subr.mxu0 0.0
    %2968 = vmatpush1.msra.mxu0 0.0
    %2969 = vmatprep.subr.mxu0 0.0
    %2970 = vmatpush1.msra.mxu0 0.0
    %2971 = vmatprep.subr.mxu0 0.0
    %2972 = vmatpush1.msra.mxu0 0.0
    %2973 = vmatprep.subr.mxu0 0.0
    %2974 = vmatpush1.msra.mxu0 0.0
    %2975 = vmatprep.subr.mxu0 0.0
    %2976 = vmatpush1.msra.mxu0 0.0
    %2977 = vmatprep.subr.mxu0 0.0
    %2978 = vmatpush1.msra.mxu0 0.0
    %2979 = vmatprep.mubr.f32.mxu0 0.0
    %2980 = vmatmul.mubr.f32.gmra.mrb[0].mxu0 %v1903
    %v2981 = vpop.f32.mrb[0].mxu0
    %v2982 = vadd.f32 0.0, %v2981
    %v2983 = vpop.f32.mrb[0].mxu0
    %v2984 = vadd.f32 0.0, %v2983
    %2985 = vmatprep.mubr.f32.mxu0 0.0
    %2986 = vmatmul.mubr.f32.gmra.mrb[0].mxu0 %v1905
    %v2987 = vpop.f32.mrb[0].mxu0
    %v2988 = vadd.f32 0.0, %v2987
    %v2989 = vpop.f32.mrb[0].mxu0
    %v2990 = vadd.f32 0.0, %v2989
    %2991 = vmatprep.mubr.f32.mxu0 0.0
    %2992 = vmatmul.mubr.f32.gmra.mrb[0].mxu0 %v1907
    %v2993 = vpop.f32.mrb[0].mxu0
    %v2994 = vadd.f32 0.0, %v2993
    %v2995 = vpop.f32.mrb[0].mxu0
    %v2996 = vadd.f32 0.0, %v2995
    %2997 = vmatprep.mubr.f32.mxu0 0.0
    %2998 = vmatmul.mubr.f32.gmra.mrb[0].mxu0 %v1909
    %v2999 = vpop.f32.mrb[0].mxu0
    %v3000 = vadd.f32 0.0, %v2999
    %v3001 = vpop.f32.mrb[0].mxu0
    %v3002 = vadd.f32 0.0, %v3001
    %3003 = vdwg.mxu0
    %v3004 = vadd.f32 %v2777, %v2982
    %v3005 = vadd.f32 %v2778, %v2984
    %v3006 = vadd.f32 %v2779, %v2988
    %v3007 = vadd.f32 %v2780, %v2990
    %v3008 = vadd.f32 %v2781, %v2994
    %v3009 = vadd.f32 %v2782, %v2996
    %v3010 = vadd.f32 %v2783, %v3000
    %v3011 = vadd.f32 %v2784, %v3002
    %v3012 = vmax.f32 %v2907, %v2908
    %v3013 = vmax.f32 %v2909, %v2910
    %v3014 = vmax.f32 %v2911, %v2912
    %v3015 = vmax.f32 %v2913, %v2914
    %v3016 = vmax.f32 %v3004, %v3005
    %v3017 = vmax.f32 %v3006, %v3007
    %v3018 = vmax.f32 %v3008, %v3009
    %v3019 = vmax.f32 %v3010, %v3011
    %v3020 = vmax.f32 %v3012, %v3016
    %v3021 = vmax.f32 %v3013, %v3017
    %v3022 = vmax.f32 %v3014, %v3018
    %v3023 = vmax.f32 %v3015, %v3019
    %v3024 = vld [vmem:[%s4] sm:$0x1]
    %v3026 = vlaneseq
    %v3027 = vshrl.u32 %v3026, 7
    %v3028 = vsub.s32 0, %v3027
    %v3029 = vrot.slane %v3024, %v3028
    %v3031 = vadd.f32 %v3020, %v3029
    %v3032 = vadd.f32 %v3021, %v3029
    %v3033 = vadd.f32 %v3022, %v3029
    %v3034 = vadd.f32 %v3023, %v3029
    %v3035 = vmax.f32 %v3031, 0.0
    %v3036 = vmax.f32 %v3032, 0.0
    %v3037 = vmax.f32 %v3033, 0.0
    %v3038 = vmax.f32 %v3034, 0.0
    %v3039 = vld [vmem:[#allocation4] sm:$0xff]
    %v3040 = vld [vmem:[#allocation4 + $0x8] sm:$0xff]
    %v3041 = vld [vmem:[#allocation4 + $0x10] sm:$0xff]
    %v3042 = vld [vmem:[#allocation4 + $0x18] sm:$0xff]
    %v3043 = vld [vmem:[#allocation4 + $0x20] sm:$0xff]
    %v3044 = vld [vmem:[#allocation4 + $0x28] sm:$0xff]
    %v3045 = vld [vmem:[#allocation4 + $0x30] sm:$0xff]
    %v3046 = vld [vmem:[#allocation4 + $0x38] sm:$0xff]
    %v3047 = vld [vmem:[#allocation4 + $0x40] sm:$0xff]
    %v3048 = vld [vmem:[#allocation4 + $0x48] sm:$0xff]
    %v3049 = vld [vmem:[#allocation4 + $0x50] sm:$0xff]
    %v3050 = vld [vmem:[#allocation4 + $0x58] sm:$0xff]
    %v3051 = vld [vmem:[#allocation4 + $0x60] sm:$0xff]
    %v3052 = vld [vmem:[#allocation4 + $0x68] sm:$0xff]
    %v3053 = vld [vmem:[#allocation4 + $0x70] sm:$0xff]
    %v3054 = vld [vmem:[#allocation4 + $0x78] sm:$0xff]
    %s3055 = scalar_lea.vmem [#allocation4], 128
    %v3056 = vld [vmem:[%s3055] sm:$0xff]
    %v3057 = vld [vmem:[%s3055 + $0x8] sm:$0xff]
    %v3058 = vld [vmem:[%s3055 + $0x10] sm:$0xff]
    %v3059 = vld [vmem:[%s3055 + $0x18] sm:$0xff]
    %v3060 = vld [vmem:[%s3055 + $0x20] sm:$0xff]
    %v3061 = vld [vmem:[%s3055 + $0x28] sm:$0xff]
    %v3062 = vld [vmem:[%s3055 + $0x30] sm:$0xff]
    %v3063 = vld [vmem:[%s3055 + $0x38] sm:$0xff]
    %v3064 = vld [vmem:[%s3055 + $0x40] sm:$0xff]
    %v3065 = vld [vmem:[%s3055 + $0x48] sm:$0xff]
    %v3066 = vld [vmem:[%s3055 + $0x50] sm:$0xff]
    %v3067 = vld [vmem:[%s3055 + $0x58] sm:$0xff]
    %v3068 = vld [vmem:[%s3055 + $0x60] sm:$0xff]
    %v3069 = vld [vmem:[%s3055 + $0x68] sm:$0xff]
    %v3070 = vld [vmem:[%s3055 + $0x70] sm:$0xff]
    %v3071 = vld [vmem:[%s3055 + $0x78] sm:$0xff]
    %3072 = vmatprep.subr.mxu0 0.0
    %3073 = vmatpush1.msra.mxu0 %v3056
    %3074 = vmatprep.subr.mxu0 0.0
    %3075 = vmatpush1.msra.mxu0 %v3057
    %3076 = vmatprep.subr.mxu0 0.0
    %3077 = vmatpush1.msra.mxu0 %v3058
    %3078 = vmatprep.subr.mxu0 0.0
    %3079 = vmatpush1.msra.mxu0 %v3059
    %3080 = vmatprep.subr.mxu0 0.0
    %3081 = vmatpush1.msra.mxu0 %v3060
    %3082 = vmatprep.subr.mxu0 0.0
    %3083 = vmatpush1.msra.mxu0 %v3061
    %3084 = vmatprep.subr.mxu0 0.0
    %3085 = vmatpush1.msra.mxu0 %v3062
    %3086 = vmatprep.subr.mxu0 0.0
    %3087 = vmatpush1.msra.mxu0 %v3063
    %3088 = vmatprep.subr.mxu0 0.0
    %3089 = vmatpush1.msra.mxu0 %v3064
    %3090 = vmatprep.subr.mxu0 0.0
    %3091 = vmatpush1.msra.mxu0 %v3065
    %3092 = vmatprep.subr.mxu0 0.0
    %3093 = vmatpush1.msra.mxu0 %v3066
    %3094 = vmatprep.subr.mxu0 0.0
    %3095 = vmatpush1.msra.mxu0 %v3067
    %3096 = vmatprep.subr.mxu0 0.0
    %3097 = vmatpush1.msra.mxu0 %v3068
    %3098 = vmatprep.subr.mxu0 0.0
    %3099 = vmatpush1.msra.mxu0 %v3069
    %3100 = vmatprep.subr.mxu0 0.0
    %3101 = vmatpush1.msra.mxu0 %v3070
    %3102 = vmatprep.subr.mxu0 0.0
    %3103 = vmatpush1.msra.mxu0 %v3071
    %3104 = vmatprep.subr.mxu0 0.0
    %3105 = vmatpush1.msra.mxu0 0.0
    %3106 = vmatprep.subr.mxu0 0.0
    %3107 = vmatpush1.msra.mxu0 0.0
    %3108 = vmatprep.subr.mxu0 0.0
    %3109 = vmatpush1.msra.mxu0 0.0
    %3110 = vmatprep.subr.mxu0 0.0
    %3111 = vmatpush1.msra.mxu0 0.0
    %3112 = vmatprep.subr.mxu0 0.0
    %3113 = vmatpush1.msra.mxu0 0.0
    %3114 = vmatprep.subr.mxu0 0.0
    %3115 = vmatpush1.msra.mxu0 0.0
    %3116 = vmatprep.subr.mxu0 0.0
    %3117 = vmatpush1.msra.mxu0 0.0
    %3118 = vmatprep.subr.mxu0 0.0
    %3119 = vmatpush1.msra.mxu0 0.0
    %3120 = vmatprep.subr.mxu0 0.0
    %3121 = vmatpush1.msra.mxu0 0.0
    %3122 = vmatprep.subr.mxu0 0.0
    %3123 = vmatpush1.msra.mxu0 0.0
    %3124 = vmatprep.subr.mxu0 0.0
    %3125 = vmatpush1.msra.mxu0 0.0
    %3126 = vmatprep.subr.mxu0 0.0
    %3127 = vmatpush1.msra.mxu0 0.0
    %3128 = vmatprep.subr.mxu0 0.0
    %3129 = vmatpush1.msra.mxu0 0.0
    %3130 = vmatprep.subr.mxu0 0.0
    %3131 = vmatpush1.msra.mxu0 0.0
    %3132 = vmatprep.subr.mxu0 0.0
    %3133 = vmatpush1.msra.mxu0 0.0
    %3134 = vmatprep.subr.mxu0 0.0
    %3135 = vmatpush1.msra.mxu0 0.0
    %3136 = vmatprep.mubr.f32.mxu0 0.0
    %3137 = vmatmul.mubr.f32.gmra.mrb[0].mxu0 %v3036
    %v3138 = vpop.f32.mrb[0].mxu0
    %v3139 = vadd.f32 0.0, %v3138
    %v3140 = vpop.f32.mrb[0].mxu0
    %3141 = vdwg.mxu0
    %3142 = vmatprep.subr.mxu0 0.0
    %3143 = vmatpush1.msra.mxu0 %v3039
    %3144 = vmatprep.subr.mxu0 0.0
    %3145 = vmatpush1.msra.mxu0 %v3040
    %3146 = vmatprep.subr.mxu0 0.0
    %3147 = vmatpush1.msra.mxu0 %v3041
    %3148 = vmatprep.subr.mxu0 0.0
    %3149 = vmatpush1.msra.mxu0 %v3042
    %3150 = vmatprep.subr.mxu0 0.0
    %3151 = vmatpush1.msra.mxu0 %v3043
    %3152 = vmatprep.subr.mxu0 0.0
    %3153 = vmatpush1.msra.mxu0 %v3044
    %3154 = vmatprep.subr.mxu0 0.0
    %3155 = vmatpush1.msra.mxu0 %v3045
    %3156 = vmatprep.subr.mxu0 0.0
    %3157 = vmatpush1.msra.mxu0 %v3046
    %3158 = vmatprep.subr.mxu0 0.0
    %3159 = vmatpush1.msra.mxu0 %v3047
    %3160 = vmatprep.subr.mxu0 0.0
    %3161 = vmatpush1.msra.mxu0 %v3048
    %3162 = vmatprep.subr.mxu0 0.0
    %3163 = vmatpush1.msra.mxu0 %v3049
    %3164 = vmatprep.subr.mxu0 0.0
    %3165 = vmatpush1.msra.mxu0 %v3050
    %3166 = vmatprep.subr.mxu0 0.0
    %3167 = vmatpush1.msra.mxu0 %v3051
    %3168 = vmatprep.subr.mxu0 0.0
    %3169 = vmatpush1.msra.mxu0 %v3052
    %3170 = vmatprep.subr.mxu0 0.0
    %3171 = vmatpush1.msra.mxu0 %v3053
    %3172 = vmatprep.subr.mxu0 0.0
    %3173 = vmatpush1.msra.mxu0 %v3054
    %3174 = vmatprep.subr.mxu0 0.0
    %3175 = vmatpush1.msra.mxu0 0.0
    %3176 = vmatprep.subr.mxu0 0.0
    %3177 = vmatpush1.msra.mxu0 0.0
    %3178 = vmatprep.subr.mxu0 0.0
    %3179 = vmatpush1.msra.mxu0 0.0
    %3180 = vmatprep.subr.mxu0 0.0
    %3181 = vmatpush1.msra.mxu0 0.0
    %3182 = vmatprep.subr.mxu0 0.0
    %3183 = vmatpush1.msra.mxu0 0.0
    %3184 = vmatprep.subr.mxu0 0.0
    %3185 = vmatpush1.msra.mxu0 0.0
    %3186 = vmatprep.subr.mxu0 0.0
    %3187 = vmatpush1.msra.mxu0 0.0
    %3188 = vmatprep.subr.mxu0 0.0
    %3189 = vmatpush1.msra.mxu0 0.0
    %3190 = vmatprep.subr.mxu0 0.0
    %3191 = vmatpush1.msra.mxu0 0.0
    %3192 = vmatprep.subr.mxu0 0.0
    %3193 = vmatpush1.msra.mxu0 0.0
    %3194 = vmatprep.subr.mxu0 0.0
    %3195 = vmatpush1.msra.mxu0 0.0
    %3196 = vmatprep.subr.mxu0 0.0
    %3197 = vmatpush1.msra.mxu0 0.0
    %3198 = vmatprep.subr.mxu0 0.0
    %3199 = vmatpush1.msra.mxu0 0.0
    %3200 = vmatprep.subr.mxu0 0.0
    %3201 = vmatpush1.msra.mxu0 0.0
    %3202 = vmatprep.subr.mxu0 0.0
    %3203 = vmatpush1.msra.mxu0 0.0
    %3204 = vmatprep.subr.mxu0 0.0
    %3205 = vmatpush1.msra.mxu0 0.0
    %3206 = vmatprep.mubr.f32.mxu0 0.0
    %3207 = vmatmul.mubr.f32.gmra.mrb[0].mxu0 %v3035
    %v3208 = vpop.f32.mrb[0].mxu0
    %v3209 = vadd.f32 %v3139, %v3208
    %v3210 = vpop.f32.mrb[0].mxu0
    %3211 = vdwg.mxu0
    %s3212 = scalar_lea.vmem [#allocation4], 256
    %v3213 = vld [vmem:[%s3212] sm:$0xff]
    %v3214 = vld [vmem:[%s3212 + $0x8] sm:$0xff]
    %v3215 = vld [vmem:[%s3212 + $0x10] sm:$0xff]
    %v3216 = vld [vmem:[%s3212 + $0x18] sm:$0xff]
    %v3217 = vld [vmem:[%s3212 + $0x20] sm:$0xff]
    %v3218 = vld [vmem:[%s3212 + $0x28] sm:$0xff]
    %v3219 = vld [vmem:[%s3212 + $0x30] sm:$0xff]
    %v3220 = vld [vmem:[%s3212 + $0x38] sm:$0xff]
    %v3221 = vld [vmem:[%s3212 + $0x40] sm:$0xff]
    %v3222 = vld [vmem:[%s3212 + $0x48] sm:$0xff]
    %v3223 = vld [vmem:[%s3212 + $0x50] sm:$0xff]
    %v3224 = vld [vmem:[%s3212 + $0x58] sm:$0xff]
    %v3225 = vld [vmem:[%s3212 + $0x60] sm:$0xff]
    %v3226 = vld [vmem:[%s3212 + $0x68] sm:$0xff]
    %v3227 = vld [vmem:[%s3212 + $0x70] sm:$0xff]
    %v3228 = vld [vmem:[%s3212 + $0x78] sm:$0xff]
    %3229 = vmatprep.subr.mxu0 0.0
    %3230 = vmatpush1.msra.mxu0 %v3213
    %3231 = vmatprep.subr.mxu0 0.0
    %3232 = vmatpush1.msra.mxu0 %v3214
    %3233 = vmatprep.subr.mxu0 0.0
    %3234 = vmatpush1.msra.mxu0 %v3215
    %3235 = vmatprep.subr.mxu0 0.0
    %3236 = vmatpush1.msra.mxu0 %v3216
    %3237 = vmatprep.subr.mxu0 0.0
    %3238 = vmatpush1.msra.mxu0 %v3217
    %3239 = vmatprep.subr.mxu0 0.0
    %3240 = vmatpush1.msra.mxu0 %v3218
    %3241 = vmatprep.subr.mxu0 0.0
    %3242 = vmatpush1.msra.mxu0 %v3219
    %3243 = vmatprep.subr.mxu0 0.0
    %3244 = vmatpush1.msra.mxu0 %v3220
    %3245 = vmatprep.subr.mxu0 0.0
    %3246 = vmatpush1.msra.mxu0 %v3221
    %3247 = vmatprep.subr.mxu0 0.0
    %3248 = vmatpush1.msra.mxu0 %v3222
    %3249 = vmatprep.subr.mxu0 0.0
    %3250 = vmatpush1.msra.mxu0 %v3223
    %3251 = vmatprep.subr.mxu0 0.0
    %3252 = vmatpush1.msra.mxu0 %v3224
    %3253 = vmatprep.subr.mxu0 0.0
    %3254 = vmatpush1.msra.mxu0 %v3225
    %3255 = vmatprep.subr.mxu0 0.0
    %3256 = vmatpush1.msra.mxu0 %v3226
    %3257 = vmatprep.subr.mxu0 0.0
    %3258 = vmatpush1.msra.mxu0 %v3227
    %3259 = vmatprep.subr.mxu0 0.0
    %3260 = vmatpush1.msra.mxu0 %v3228
    %3261 = vmatprep.subr.mxu0 0.0
    %3262 = vmatpush1.msra.mxu0 0.0
    %3263 = vmatprep.subr.mxu0 0.0
    %3264 = vmatpush1.msra.mxu0 0.0
    %3265 = vmatprep.subr.mxu0 0.0
    %3266 = vmatpush1.msra.mxu0 0.0
    %3267 = vmatprep.subr.mxu0 0.0
    %3268 = vmatpush1.msra.mxu0 0.0
    %3269 = vmatprep.subr.mxu0 0.0
    %3270 = vmatpush1.msra.mxu0 0.0
    %3271 = vmatprep.subr.mxu0 0.0
    %3272 = vmatpush1.msra.mxu0 0.0
    %3273 = vmatprep.subr.mxu0 0.0
    %3274 = vmatpush1.msra.mxu0 0.0
    %3275 = vmatprep.subr.mxu0 0.0
    %3276 = vmatpush1.msra.mxu0 0.0
    %3277 = vmatprep.subr.mxu0 0.0
    %3278 = vmatpush1.msra.mxu0 0.0
    %3279 = vmatprep.subr.mxu0 0.0
    %3280 = vmatpush1.msra.mxu0 0.0
    %3281 = vmatprep.subr.mxu0 0.0
    %3282 = vmatpush1.msra.mxu0 0.0
    %3283 = vmatprep.subr.mxu0 0.0
    %3284 = vmatpush1.msra.mxu0 0.0
    %3285 = vmatprep.subr.mxu0 0.0
    %3286 = vmatpush1.msra.mxu0 0.0
    %3287 = vmatprep.subr.mxu0 0.0
    %3288 = vmatpush1.msra.mxu0 0.0
    %3289 = vmatprep.subr.mxu0 0.0
    %3290 = vmatpush1.msra.mxu0 0.0
    %3291 = vmatprep.subr.mxu0 0.0
    %3292 = vmatpush1.msra.mxu0 0.0
    %3293 = vmatprep.mubr.f32.mxu0 0.0
    %3294 = vmatmul.mubr.f32.gmra.mrb[0].mxu0 %v3037
    %v3295 = vpop.f32.mrb[0].mxu0
    %v3296 = vadd.f32 0.0, %v3295
    %v3297 = vpop.f32.mrb[0].mxu0
    %3298 = vdwg.mxu0
    %v3299 = vadd.f32 %v3209, %v3296
    %s3300 = scalar_lea.vmem [#allocation4], 384
    %v3301 = vld [vmem:[%s3300] sm:$0xff]
    %v3302 = vld [vmem:[%s3300 + $0x8] sm:$0xff]
    %v3303 = vld [vmem:[%s3300 + $0x10] sm:$0xff]
    %v3304 = vld [vmem:[%s3300 + $0x18] sm:$0xff]
    %v3305 = vld [vmem:[%s3300 + $0x20] sm:$0xff]
    %v3306 = vld [vmem:[%s3300 + $0x28] sm:$0xff]
    %v3307 = vld [vmem:[%s3300 + $0x30] sm:$0xff]
    %v3308 = vld [vmem:[%s3300 + $0x38] sm:$0xff]
    %v3309 = vld [vmem:[%s3300 + $0x40] sm:$0xff]
    %v3310 = vld [vmem:[%s3300 + $0x48] sm:$0xff]
    %v3311 = vld [vmem:[%s3300 + $0x50] sm:$0xff]
    %v3312 = vld [vmem:[%s3300 + $0x58] sm:$0xff]
    %v3313 = vld [vmem:[%s3300 + $0x60] sm:$0xff]
    %v3314 = vld [vmem:[%s3300 + $0x68] sm:$0xff]
    %v3315 = vld [vmem:[%s3300 + $0x70] sm:$0xff]
    %v3316 = vld [vmem:[%s3300 + $0x78] sm:$0xff]
    %3317 = vmatprep.subr.mxu0 0.0
    %3318 = vmatpush1.msra.mxu0 %v3301
    %3319 = vmatprep.subr.mxu0 0.0
    %3320 = vmatpush1.msra.mxu0 %v3302
    %3321 = vmatprep.subr.mxu0 0.0
    %3322 = vmatpush1.msra.mxu0 %v3303
    %3323 = vmatprep.subr.mxu0 0.0
    %3324 = vmatpush1.msra.mxu0 %v3304
    %3325 = vmatprep.subr.mxu0 0.0
    %3326 = vmatpush1.msra.mxu0 %v3305
    %3327 = vmatprep.subr.mxu0 0.0
    %3328 = vmatpush1.msra.mxu0 %v3306
    %3329 = vmatprep.subr.mxu0 0.0
    %3330 = vmatpush1.msra.mxu0 %v3307
    %3331 = vmatprep.subr.mxu0 0.0
    %3332 = vmatpush1.msra.mxu0 %v3308
    %3333 = vmatprep.subr.mxu0 0.0
    %3334 = vmatpush1.msra.mxu0 %v3309
    %3335 = vmatprep.subr.mxu0 0.0
    %3336 = vmatpush1.msra.mxu0 %v3310
    %3337 = vmatprep.subr.mxu0 0.0
    %3338 = vmatpush1.msra.mxu0 %v3311
    %3339 = vmatprep.subr.mxu0 0.0
    %3340 = vmatpush1.msra.mxu0 %v3312
    %3341 = vmatprep.subr.mxu0 0.0
    %3342 = vmatpush1.msra.mxu0 %v3313
    %3343 = vmatprep.subr.mxu0 0.0
    %3344 = vmatpush1.msra.mxu0 %v3314
    %3345 = vmatprep.subr.mxu0 0.0
    %3346 = vmatpush1.msra.mxu0 %v3315
    %3347 = vmatprep.subr.mxu0 0.0
    %3348 = vmatpush1.msra.mxu0 %v3316
    %3349 = vmatprep.subr.mxu0 0.0
    %3350 = vmatpush1.msra.mxu0 0.0
    %3351 = vmatprep.subr.mxu0 0.0
    %3352 = vmatpush1.msra.mxu0 0.0
    %3353 = vmatprep.subr.mxu0 0.0
    %3354 = vmatpush1.msra.mxu0 0.0
    %3355 = vmatprep.subr.mxu0 0.0
    %3356 = vmatpush1.msra.mxu0 0.0
    %3357 = vmatprep.subr.mxu0 0.0
    %3358 = vmatpush1.msra.mxu0 0.0
    %3359 = vmatprep.subr.mxu0 0.0
    %3360 = vmatpush1.msra.mxu0 0.0
    %3361 = vmatprep.subr.mxu0 0.0
    %3362 = vmatpush1.msra.mxu0 0.0
    %3363 = vmatprep.subr.mxu0 0.0
    %3364 = vmatpush1.msra.mxu0 0.0
    %3365 = vmatprep.subr.mxu0 0.0
    %3366 = vmatpush1.msra.mxu0 0.0
    %3367 = vmatprep.subr.mxu0 0.0
    %3368 = vmatpush1.msra.mxu0 0.0
    %3369 = vmatprep.subr.mxu0 0.0
    %3370 = vmatpush1.msra.mxu0 0.0
    %3371 = vmatprep.subr.mxu0 0.0
    %3372 = vmatpush1.msra.mxu0 0.0
    %3373 = vmatprep.subr.mxu0 0.0
    %3374 = vmatpush1.msra.mxu0 0.0
    %3375 = vmatprep.subr.mxu0 0.0
    %3376 = vmatpush1.msra.mxu0 0.0
    %3377 = vmatprep.subr.mxu0 0.0
    %3378 = vmatpush1.msra.mxu0 0.0
    %3379 = vmatprep.subr.mxu0 0.0
    %3380 = vmatpush1.msra.mxu0 0.0
    %3381 = vmatprep.mubr.f32.mxu0 0.0
    %3382 = vmatmul.mubr.f32.gmra.mrb[0].mxu0 %v3038
    %v3383 = vpop.f32.mrb[0].mxu0
    %v3384 = vadd.f32 0.0, %v3383
    %v3385 = vpop.f32.mrb[0].mxu0
    %3386 = vdwg.mxu0
    %v3387 = vadd.f32 %v3299, %v3384
    %v3388 = vld [vmem:[%s6] sm:$0x1]
    %v3390 = vlaneseq
    %v3391 = vshrl.u32 %v3390, 7
    %v3392 = vsub.s32 0, %v3391
    %v3393 = vrot.slane %v3388, %v3392
    %v3395 = vadd.f32 %v3387, %v3393
    %v3396 = vmax.f32 %v3395, 0.0
    %v3397 = vld [vmem:[#allocation6] sm:$0xff]
    %v3398 = vld [vmem:[#allocation6 + $0x8] sm:$0xff]
    %v3399 = vld [vmem:[#allocation6 + $0x10] sm:$0xff]
    %v3400 = vld [vmem:[#allocation6 + $0x18] sm:$0xff]
    %v3401 = vld [vmem:[#allocation6 + $0x20] sm:$0xff]
    %v3402 = vld [vmem:[#allocation6 + $0x28] sm:$0xff]
    %v3403 = vld [vmem:[#allocation6 + $0x30] sm:$0xff]
    %v3404 = vld [vmem:[#allocation6 + $0x38] sm:$0xff]
    %v3405 = vld [vmem:[#allocation6 + $0x40] sm:$0xff]
    %v3406 = vld [vmem:[#allocation6 + $0x48] sm:$0xff]
    %v3407 = vld [vmem:[#allocation6 + $0x50] sm:$0xff]
    %v3408 = vld [vmem:[#allocation6 + $0x58] sm:$0xff]
    %v3409 = vld [vmem:[#allocation6 + $0x60] sm:$0xff]
    %v3410 = vld [vmem:[#allocation6 + $0x68] sm:$0xff]
    %v3411 = vld [vmem:[#allocation6 + $0x70] sm:$0xff]
    %v3412 = vld [vmem:[#allocation6 + $0x78] sm:$0xff]
    %v3413 = vld [vmem:[%s8] sm:$0x1]
    %v3415 = vlaneseq
    %v3416 = vshrl.u32 %v3415, 7
    %v3417 = vsub.s32 0, %v3416
    %v3418 = vrot.slane %v3413, %v3417
    %3420 = vmatprep.subr.mxu0 0.0
    %3421 = vmatpush1.msra.mxu0 %v3397
    %3422 = vmatprep.subr.mxu0 0.0
    %3423 = vmatpush1.msra.mxu0 %v3398
    %3424 = vmatprep.subr.mxu0 0.0
    %3425 = vmatpush1.msra.mxu0 %v3399
    %3426 = vmatprep.subr.mxu0 0.0
    %3427 = vmatpush1.msra.mxu0 %v3400
    %3428 = vmatprep.subr.mxu0 0.0
    %3429 = vmatpush1.msra.mxu0 %v3401
    %3430 = vmatprep.subr.mxu0 0.0
    %3431 = vmatpush1.msra.mxu0 %v3402
    %3432 = vmatprep.subr.mxu0 0.0
    %3433 = vmatpush1.msra.mxu0 %v3403
    %3434 = vmatprep.subr.mxu0 0.0
    %3435 = vmatpush1.msra.mxu0 %v3404
    %3436 = vmatprep.subr.mxu0 0.0
    %3437 = vmatpush1.msra.mxu0 %v3405
    %3438 = vmatprep.subr.mxu0 0.0
    %3439 = vmatpush1.msra.mxu0 %v3406
    %3440 = vmatprep.subr.mxu0 0.0
    %3441 = vmatpush1.msra.mxu0 %v3407
    %3442 = vmatprep.subr.mxu0 0.0
    %3443 = vmatpush1.msra.mxu0 %v3408
    %3444 = vmatprep.subr.mxu0 0.0
    %3445 = vmatpush1.msra.mxu0 %v3409
    %3446 = vmatprep.subr.mxu0 0.0
    %3447 = vmatpush1.msra.mxu0 %v3410
    %3448 = vmatprep.subr.mxu0 0.0
    %3449 = vmatpush1.msra.mxu0 %v3411
    %3450 = vmatprep.subr.mxu0 0.0
    %3451 = vmatpush1.msra.mxu0 %v3412
    %3452 = vmatprep.subr.mxu0 0.0
    %3453 = vmatpush1.msra.mxu0 0.0
    %3454 = vmatprep.subr.mxu0 0.0
    %3455 = vmatpush1.msra.mxu0 0.0
    %3456 = vmatprep.subr.mxu0 0.0
    %3457 = vmatpush1.msra.mxu0 0.0
    %3458 = vmatprep.subr.mxu0 0.0
    %3459 = vmatpush1.msra.mxu0 0.0
    %3460 = vmatprep.subr.mxu0 0.0
    %3461 = vmatpush1.msra.mxu0 0.0
    %3462 = vmatprep.subr.mxu0 0.0
    %3463 = vmatpush1.msra.mxu0 0.0
    %3464 = vmatprep.subr.mxu0 0.0
    %3465 = vmatpush1.msra.mxu0 0.0
    %3466 = vmatprep.subr.mxu0 0.0
    %3467 = vmatpush1.msra.mxu0 0.0
    %3468 = vmatprep.subr.mxu0 0.0
    %3469 = vmatpush1.msra.mxu0 0.0
    %3470 = vmatprep.subr.mxu0 0.0
    %3471 = vmatpush1.msra.mxu0 0.0
    %3472 = vmatprep.subr.mxu0 0.0
    %3473 = vmatpush1.msra.mxu0 0.0
    %3474 = vmatprep.subr.mxu0 0.0
    %3475 = vmatpush1.msra.mxu0 0.0
    %3476 = vmatprep.subr.mxu0 0.0
    %3477 = vmatpush1.msra.mxu0 0.0
    %3478 = vmatprep.subr.mxu0 0.0
    %3479 = vmatpush1.msra.mxu0 0.0
    %3480 = vmatprep.subr.mxu0 0.0
    %3481 = vmatpush1.msra.mxu0 0.0
    %3482 = vmatprep.subr.mxu0 0.0
    %3483 = vmatpush1.msra.mxu0 0.0
    %3484 = vmatprep.mubr.f32.mxu0 0.0
    %3485 = vmatmul.mubr.f32.gmra.mrb[0].mxu0 %v3396
    %v3486 = vpop.f32.mrb[0].mxu0
    %v3487 = vadd.f32 %v3418, %v3486
    %v3488 = vpop.f32.mrb[0].mxu0
    %3489 = vdwg.mxu0
    %v3490 = vmax.f32 %v3487, 0.0
    %v3491 = vld [vmem:[#allocation7] sm:$0xff]
    %v3492 = vld [vmem:[#allocation7 + $0x8] sm:$0xff]
    %v3493 = vld [vmem:[#allocation7 + $0x10] sm:$0xff]
    %v3494 = vld [vmem:[#allocation7 + $0x18] sm:$0xff]
    %v3495 = vld [vmem:[#allocation7 + $0x20] sm:$0xff]
    %v3496 = vld [vmem:[#allocation7 + $0x28] sm:$0xff]
    %v3497 = vld [vmem:[#allocation7 + $0x30] sm:$0xff]
    %v3498 = vld [vmem:[#allocation7 + $0x38] sm:$0xff]
    %v3499 = vld [vmem:[#allocation7 + $0x40] sm:$0xff]
    %v3500 = vld [vmem:[#allocation7 + $0x48] sm:$0xff]
    %v3501 = vld [vmem:[#allocation7 + $0x50] sm:$0xff]
    %v3502 = vld [vmem:[#allocation7 + $0x58] sm:$0xff]
    %v3503 = vld [vmem:[#allocation7 + $0x60] sm:$0xff]
    %v3504 = vld [vmem:[#allocation7 + $0x68] sm:$0xff]
    %v3505 = vld [vmem:[#allocation7 + $0x70] sm:$0xff]
    %v3506 = vld [vmem:[#allocation7 + $0x78] sm:$0xff]
    %v3507 = vld [vmem:[%s10] sm:$0x1]
    %v3509 = vlaneseq
    %v3510 = vshrl.u32 %v3509, 7
    %v3511 = vsub.s32 0, %v3510
    %v3512 = vrot.slane %v3507, %v3511
    %3514 = vmatprep.subr.mxu0 0.0
    %3515 = vmatpush1.msra.mxu0 %v3491
    %3516 = vmatprep.subr.mxu0 0.0
    %3517 = vmatpush1.msra.mxu0 %v3492
    %3518 = vmatprep.subr.mxu0 0.0
    %3519 = vmatpush1.msra.mxu0 %v3493
    %3520 = vmatprep.subr.mxu0 0.0
    %3521 = vmatpush1.msra.mxu0 %v3494
    %3522 = vmatprep.subr.mxu0 0.0
    %3523 = vmatpush1.msra.mxu0 %v3495
    %3524 = vmatprep.subr.mxu0 0.0
    %3525 = vmatpush1.msra.mxu0 %v3496
    %3526 = vmatprep.subr.mxu0 0.0
    %3527 = vmatpush1.msra.mxu0 %v3497
    %3528 = vmatprep.subr.mxu0 0.0
    %3529 = vmatpush1.msra.mxu0 %v3498
    %3530 = vmatprep.subr.mxu0 0.0
    %3531 = vmatpush1.msra.mxu0 %v3499
    %3532 = vmatprep.subr.mxu0 0.0
    %3533 = vmatpush1.msra.mxu0 %v3500
    %3534 = vmatprep.subr.mxu0 0.0
    %3535 = vmatpush1.msra.mxu0 %v3501
    %3536 = vmatprep.subr.mxu0 0.0
    %3537 = vmatpush1.msra.mxu0 %v3502
    %3538 = vmatprep.subr.mxu0 0.0
    %3539 = vmatpush1.msra.mxu0 %v3503
    %3540 = vmatprep.subr.mxu0 0.0
    %3541 = vmatpush1.msra.mxu0 %v3504
    %3542 = vmatprep.subr.mxu0 0.0
    %3543 = vmatpush1.msra.mxu0 %v3505
    %3544 = vmatprep.subr.mxu0 0.0
    %3545 = vmatpush1.msra.mxu0 %v3506
    %3546 = vmatprep.subr.mxu0 0.0
    %3547 = vmatpush1.msra.mxu0 0.0
    %3548 = vmatprep.subr.mxu0 0.0
    %3549 = vmatpush1.msra.mxu0 0.0
    %3550 = vmatprep.subr.mxu0 0.0
    %3551 = vmatpush1.msra.mxu0 0.0
    %3552 = vmatprep.subr.mxu0 0.0
    %3553 = vmatpush1.msra.mxu0 0.0
    %3554 = vmatprep.subr.mxu0 0.0
    %3555 = vmatpush1.msra.mxu0 0.0
    %3556 = vmatprep.subr.mxu0 0.0
    %3557 = vmatpush1.msra.mxu0 0.0
    %3558 = vmatprep.subr.mxu0 0.0
    %3559 = vmatpush1.msra.mxu0 0.0
    %3560 = vmatprep.subr.mxu0 0.0
    %3561 = vmatpush1.msra.mxu0 0.0
    %3562 = vmatprep.subr.mxu0 0.0
    %3563 = vmatpush1.msra.mxu0 0.0
    %3564 = vmatprep.subr.mxu0 0.0
    %3565 = vmatpush1.msra.mxu0 0.0
    %3566 = vmatprep.subr.mxu0 0.0
    %3567 = vmatpush1.msra.mxu0 0.0
    %3568 = vmatprep.subr.mxu0 0.0
    %3569 = vmatpush1.msra.mxu0 0.0
    %3570 = vmatprep.subr.mxu0 0.0
    %3571 = vmatpush1.msra.mxu0 0.0
    %3572 = vmatprep.subr.mxu0 0.0
    %3573 = vmatpush1.msra.mxu0 0.0
    %3574 = vmatprep.subr.mxu0 0.0
    %3575 = vmatpush1.msra.mxu0 0.0
    %3576 = vmatprep.subr.mxu0 0.0
    %3577 = vmatpush1.msra.mxu0 0.0
    %3578 = vmatprep.mubr.f32.mxu0 0.0
    %3579 = vmatmul.mubr.f32.gmra.mrb[0].mxu0 %v3490
    %v3580 = vpop.f32.mrb[0].mxu0
    %v3581 = vadd.f32 %v3512, %v3580
    %v3582 = vpop.f32.mrb[0].mxu0
    %3583 = vdwg.mxu0
    %3584 = vst [vmem:[%s11] sm:$0xff] %v3581
    // Predicated region
    $region62: #{_forward_padded.1} parent=1 // pred_check
      _
    $region63: #{_forward_padded.1} parent=1 // pred_check_branch
      %3586 = sbr.rel (0) target = $region65
    $region64: #{_forward_padded.1} parent=1 // pred_region
      _
    $region65: #{_forward_padded.1} parent=1 // pred_fallthru
      _
    // Predicated region
    $region66: #{_forward_padded.1} parent=1 // pred_check
      _
    $region67: #{_forward_padded.1} parent=1 // pred_check_branch
      %3588 = sbr.rel (0) target = $region69
    $region68: #{_forward_padded.1} parent=1 // pred_region
      _
    $region69: #{_forward_padded.1} parent=1 // pred_fallthru
      _
    %3589 = vsyncpa [#allocation3], 1
    %3590 = vsyncpa [#allocation5], 1
    %3591 = vsyncpa [#allocation8], 1

</llo_original>
